<compile_context>
chip_gen: v7x
topology: tpu7x:2x2x1
jax: 0.10.0
libtpu: 0.0.40
codegen_flags: <defaults>
</compile_context>

<pallas_src>
import functools

import jax
import jax.numpy as jnp
from jax import lax
from jax.experimental import pallas as pl
from jax.experimental.pallas import tpu as pltpu


# ----------------------------------------------------------------------------
# Fused MHA kernel.  One grid step == one (batch b, q-tile qi, head-step hs).
#   q_ref : (1, tq, H) bf16      k_ref/v_ref : (1, Lk, H) bf16
#   wq/wk/wv_ref : (H, H) bf16, torch (out, in) layout, resident in VMEM
#   wfcT_ref     : (H, H) bf16, pre-transposed to (in, out), resident in VMEM
#   o_ref : (1, tq, H) f32  (resident across the head-step axis; accumulator)
# ----------------------------------------------------------------------------
def _mha_kernel(q_ref, k_ref, v_ref, wq_ref, wk_ref, wv_ref, wfcT_ref, o_ref,
                *, scale, head, heads_per_step):
    hstep = pl.program_id(2)
    dproj = heads_per_step * head
    row0 = pl.multiple_of(hstep * dproj, 128)

    bf16 = jnp.bfloat16
    f32 = jnp.float32

    qx = q_ref[0]                                   # (tq, H)  bf16
    kx = k_ref[0]                                   # (Lk, H)  bf16
    vx = v_ref[0]                                   # (Lk, H)  bf16

    # Head-step weight slices: dynamic SUBLANE slices, 128-aligned offsets.
    wq_h = wq_ref[pl.ds(row0, dproj), :]            # (dproj, H) (out, in)
    wk_h = wk_ref[pl.ds(row0, dproj), :]
    wv_h = wv_ref[pl.ds(row0, dproj), :]
    wfc_h = wfcT_ref[pl.ds(row0, dproj), :]         # (dproj, H) (in, out)

    # x @ W.T: contract the last dims of both operands (no transposes).
    cdims = (((1,), (1,)), ((), ()))
    q = lax.dot_general(qx, wq_h, cdims, preferred_element_type=f32)  # (tq, dproj)
    k = lax.dot_general(kx, wk_h, cdims, preferred_element_type=f32)  # (Lk, dproj)
    v = lax.dot_general(vx, wv_h, cdims, preferred_element_type=f32)  # (Lk, dproj)

    # Fold 1/sqrt(Dh) into q (O(tq*dproj) mults, not O(tq*Lk)).
    qs = (q * scale).astype(bf16)
    kb = k.astype(bf16)
    vb = v.astype(bf16)

    # Per-head attention (softmax in f32).  heads_per_step is a static Python
    # constant (1 or 2), so this loop is unrolled at trace time.
    # TODO(synk): for very long Lk, replace the materialized (tq, Lk) scores
    # with a KV-tiled online-softmax (flash) loop to bound VMEM / vreg use.
    outs = []
    for j in range(heads_per_step):
        sl = slice(j * head, (j + 1) * head)
        s = lax.dot_general(qs[:, sl], kb[:, sl], cdims,
                            preferred_element_type=f32)               # (tq, Lk)
        m = jnp.max(s, axis=-1, keepdims=True)
        p = jnp.exp(s - m)
        l = jnp.sum(p, axis=-1, keepdims=True)
        o = jnp.dot(p.astype(bf16), vb[:, sl],
                    preferred_element_type=f32)                       # (tq, head)
        o = o * pl.reciprocal(l, approx=True)
        outs.append(o.astype(bf16))
    o_step = outs[0] if heads_per_step == 1 else jnp.concatenate(outs, axis=-1)

    # Fused output projection: this head-step's contribution to the output.
    contrib = jnp.dot(o_step, wfc_h, preferred_element_type=f32)      # (tq, H)

    # Accumulate directly into the resident f32 output block (no scratch).
    @pl.when(hstep == 0)
    def _():
        o_ref[0] = contrib

    @pl.when(hstep > 0)
    def _():
        o_ref[0] += contrib


def _pick_q_tile(lq):
    for t in (512, 256, 128):
        if lq > t and lq % t == 0:
            return t
    return lq


# ----------------------------------------------------------------------------
# Module forward
# ----------------------------------------------------------------------------
def multi_head_attention(query, key, value, attn_mask, params, num_heads):
    # TODO(synk): the reference's `mask` is a tuple of ints whose use would
    # raise; attn_mask is accepted here but unused (no masking applied).
    # TODO(synk): the reference calls undefined `self.dropout`; dropout omitted.
    del attn_mask
    wq, wk, wv, wfc = params          # torch Linear layout: (out, in)

    B, Lq, H = query.shape
    Bk, Lk, Hk = key.shape
    assert Bk == B and Hk == H and value.shape == (B, Lk, H)
    assert H % num_heads == 0
    head = H // num_heads
    # TODO(synk): head sizes that are not lane-aligned (multiples of 128) would
    # need padded / masked head slices; the spec's module has head = 256.
    assert head % 128 == 0, "head_size must be a multiple of 128 lanes"
    scale = head ** (-0.5)

    # Pack 2 heads per grid step when head == 128 so the projection / PV / fc
    # matmuls present >=256-wide operands to the 256x256 MXUs of v6e/v7x.
    heads_per_step = 2 if (head == 128 and num_heads % 2 == 0) else 1
    n_head_steps = num_heads // heads_per_step

    # Lq-tile axis (parallel): bounds q/out/score working set, extra megacore
    # parallelism on v7x when B is small.
    tq = _pick_q_tile(Lq)
    n_q_tiles = Lq // tq

    # Cast activations and weights to bf16 ONCE in the wrapper: halves the
    # HBM->VMEM DMA bytes and removes per-head in-kernel VPU casts.
    bf16 = jnp.bfloat16
    query_b = query.astype(bf16)
    key_b = key.astype(bf16)
    value_b = value.astype(bf16)
    wq_b = wq.astype(bf16)
    wk_b = wk.astype(bf16)
    wv_b = wv.astype(bf16)
    wfcT_b = wfc.T.astype(bf16)       # pre-transpose fc once: y = x @ wfcT

    kern = functools.partial(_mha_kernel, scale=scale, head=head,
                             heads_per_step=heads_per_step)

    return pl.pallas_call(
        kern,
        out_shape=jax.ShapeDtypeStruct((B, Lq, H), jnp.float32),
        grid_spec=pltpu.PrefetchScalarGridSpec(
            num_scalar_prefetch=0,
            grid=(B, n_q_tiles, n_head_steps),
            in_specs=[
                pl.BlockSpec((1, tq, H), lambda b, qi, hs: (b, qi, 0)),   # query
                pl.BlockSpec((1, Lk, H), lambda b, qi, hs: (b, 0, 0)),    # key
                pl.BlockSpec((1, Lk, H), lambda b, qi, hs: (b, 0, 0)),    # value
                # Full weight matrices with constant block index: DMA'd once,
                # never re-fetched as b / qi / hs iterate.
                pl.BlockSpec((H, H), lambda b, qi, hs: (0, 0)),           # wq
                pl.BlockSpec((H, H), lambda b, qi, hs: (0, 0)),           # wk
                pl.BlockSpec((H, H), lambda b, qi, hs: (0, 0)),           # wv
                pl.BlockSpec((H, H), lambda b, qi, hs: (0, 0)),           # wfc^T
            ],
            out_specs=pl.BlockSpec((1, tq, H), lambda b, qi, hs: (b, qi, 0)),
        ),
        compiler_params=pltpu.CompilerParams(
            dimension_semantics=("parallel", "parallel", "arbitrary")),
    )(query_b, key_b, value_b, wq_b, wk_b, wv_b, wfcT_b)


# ----------------------------------------------------------------------------
# Pure-JAX reference with the same mixed precision (bf16 MXU operands,
# f32 accumulation, f32 softmax) for a tight correctness check.
# ----------------------------------------------------------------------------
def reference(query, key, value, params, num_heads):
    bf = jnp.bfloat16
    wq, wk, wv, wfc = params          # (out, in) torch layout
    B, Lq, H = query.shape
    _, Lk, _ = key.shape
    Dh = H // num_heads
    scale = Dh ** (-0.5)

    def proj(x, w):                   # x @ W.T
        return jnp.einsum("bli,oi->blo", x.astype(bf), w.astype(bf),
                          preferred_element_type=jnp.float32)

    q = proj(query, wq).reshape(B, Lq, num_heads, Dh).transpose(0, 2, 1, 3)
    k = proj(key, wk).reshape(B, Lk, num_heads, Dh).transpose(0, 2, 1, 3)
    v = proj(value, wv).reshape(B, Lk, num_heads, Dh).transpose(0, 2, 1, 3)
    s = jnp.einsum("bhqd,bhkd->bhqk", (q * scale).astype(bf), k.astype(bf),
                   preferred_element_type=jnp.float32)
    p = jax.nn.softmax(s, axis=-1)
    o = jnp.einsum("bhqk,bhkd->bhqd", p.astype(bf), v.astype(bf),
                   preferred_element_type=jnp.float32)
    o = o.transpose(0, 2, 1, 3).reshape(B, Lq, H)
    return jnp.einsum("blh,oh->blo", o.astype(bf), wfc.astype(bf),
                      preferred_element_type=jnp.float32)


if __name__ == "__main__":
    # Small shapes consistent with the module (hidden divisible by num_heads,
    # lane-aligned head size).  head = 512/4 = 128 exercises the
    # 2-heads-per-step packing path for the 256x256 MXUs.
    B, Lq, Lk = 2, 128, 256
    hidden_size, num_heads = 512, 4
    dtype = jnp.float32

    root = jax.random.PRNGKey(0)
    ks = jax.random.split(root, 8)
    query = jax.random.normal(ks[0], (B, Lq, hidden_size), dtype)
    key_in = jax.random.normal(ks[1], (B, Lk, hidden_size), dtype)
    value = jax.random.normal(ks[2], (B, Lk, hidden_size), dtype)
    attn_mask = (Lq, Lk)   # as passed by the reference forward (unused, see TODO)

    # Deterministic params in torch Linear layout (out_features, in_features).
    winit = 1.0 / (hidden_size ** 0.5)
    params = tuple(
        jax.random.uniform(ks[3 + i], (hidden_size, hidden_size), dtype,
                           minval=-winit, maxval=winit)
        for i in range(4)
    )

    out = multi_head_attention(query, key_in, value, attn_mask, params, num_heads)
    out = jax.block_until_ready(out)

    ref = reference(query, key_in, value, params, num_heads)
    assert out.shape == (B, Lq, hidden_size)
    max_err = float(jnp.max(jnp.abs(out - ref)))
    assert jnp.allclose(out, ref, atol=5e-3, rtol=5e-3), max_err

    print("KERNEL_OK")
</pallas_src>

<mosaic_0001>
module attributes {stable_mosaic.version = 11 : i64} {
  func.func @_mha_kernel(%arg0: i32, %arg1: i32, %arg2: i32, %arg3: memref<1x128x512xbf16, #tpu.memory_space<vmem>>, %arg4: memref<1x256x512xbf16, #tpu.memory_space<vmem>>, %arg5: memref<1x256x512xbf16, #tpu.memory_space<vmem>>, %arg6: memref<512x512xbf16, #tpu.memory_space<vmem>>, %arg7: memref<512x512xbf16, #tpu.memory_space<vmem>>, %arg8: memref<512x512xbf16, #tpu.memory_space<vmem>>, %arg9: memref<512x512xbf16, #tpu.memory_space<vmem>>, %arg10: memref<1x128x512xf32, #tpu.memory_space<vmem>>) attributes {dimension_semantics = [#tpu.dimension_semantics<parallel>, #tpu.dimension_semantics<parallel>, #tpu.dimension_semantics<arbitrary>], iteration_bounds = array<i64: 2, 1, 2>, scalar_prefetch = 0 : i64, scratch_operands = 0 : i64, tpu.core_type = #tpu.core_type<tc>, window_params = [{transform_indices = @transform_0, window_bounds = array<i64: 1, 128, 512>}, {transform_indices = @transform_1, window_bounds = array<i64: 1, 256, 512>}, {transform_indices = @transform_2, window_bounds = array<i64: 1, 256, 512>}, {pipeline_mode = #tpu.pipeline_mode<synchronous>, transform_indices = @transform_3, window_bounds = array<i64: 512, 512>}, {pipeline_mode = #tpu.pipeline_mode<synchronous>, transform_indices = @transform_4, window_bounds = array<i64: 512, 512>}, {pipeline_mode = #tpu.pipeline_mode<synchronous>, transform_indices = @transform_5, window_bounds = array<i64: 512, 512>}, {pipeline_mode = #tpu.pipeline_mode<synchronous>, transform_indices = @transform_6, window_bounds = array<i64: 512, 512>}, {transform_indices = @transform_7, window_bounds = array<i64: 1, 128, 512>}]} {
    %c256_i32 = arith.constant 256 : i32
    %0 = arith.muli %arg2, %c256_i32 : i32
    %1 = tpu.assume_multiple %0, 128 : i32
    %c0 = arith.constant 0 : index
    %c0_0 = arith.constant 0 : index
    %c0_1 = arith.constant 0 : index
    %2 = vector.load %arg3[%c0, %c0_0, %c0_1] : memref<1x128x512xbf16, #tpu.memory_space<vmem>>, vector<1x128x512xbf16>
    %3 = vector.shape_cast %2 : vector<1x128x512xbf16> to vector<128x512xbf16>
    %c0_2 = arith.constant 0 : index
    %c0_3 = arith.constant 0 : index
    %c0_4 = arith.constant 0 : index
    %4 = vector.load %arg4[%c0_2, %c0_3, %c0_4] : memref<1x256x512xbf16, #tpu.memory_space<vmem>>, vector<1x256x512xbf16>
    %5 = vector.shape_cast %4 : vector<1x256x512xbf16> to vector<256x512xbf16>
    %c0_5 = arith.constant 0 : index
    %c0_6 = arith.constant 0 : index
    %c0_7 = arith.constant 0 : index
    %6 = vector.load %arg5[%c0_5, %c0_6, %c0_7] : memref<1x256x512xbf16, #tpu.memory_space<vmem>>, vector<1x256x512xbf16>
    %7 = vector.shape_cast %6 : vector<1x256x512xbf16> to vector<256x512xbf16>
    %8 = arith.index_cast %1 : i32 to index
    %c0_8 = arith.constant 0 : index
    %9 = vector.load %arg6[%8, %c0_8] : memref<512x512xbf16, #tpu.memory_space<vmem>>, vector<256x512xbf16>
    %10 = arith.index_cast %1 : i32 to index
    %c0_9 = arith.constant 0 : index
    %11 = vector.load %arg7[%10, %c0_9] : memref<512x512xbf16, #tpu.memory_space<vmem>>, vector<256x512xbf16>
    %12 = arith.index_cast %1 : i32 to index
    %c0_10 = arith.constant 0 : index
    %13 = vector.load %arg8[%12, %c0_10] : memref<512x512xbf16, #tpu.memory_space<vmem>>, vector<256x512xbf16>
    %14 = arith.index_cast %1 : i32 to index
    %c0_11 = arith.constant 0 : index
    %15 = vector.load %arg9[%14, %c0_11] : memref<512x512xbf16, #tpu.memory_space<vmem>>, vector<256x512xbf16>
    %cst = arith.constant dense<0.000000e+00> : vector<128x256xf32>
    %16 = tpu.matmul %3, %9, %cst {dimension_numbers = #tpu.dot_dimension_numbers<[1], [1], [0], [0], [0, 0, 1, 0], [], []>} : vector<128x512xbf16>, vector<256x512xbf16>, vector<128x256xf32> -> vector<128x256xf32>
    %cst_12 = arith.constant dense<0.000000e+00> : vector<256x256xf32>
    %17 = tpu.matmul %5, %11, %cst_12 {dimension_numbers = #tpu.dot_dimension_numbers<[1], [1], [0], [0], [0, 0, 1, 0], [], []>} : vector<256x512xbf16>, vector<256x512xbf16>, vector<256x256xf32> -> vector<256x256xf32>
    %cst_13 = arith.constant dense<0.000000e+00> : vector<256x256xf32>
    %18 = tpu.matmul %7, %13, %cst_13 {dimension_numbers = #tpu.dot_dimension_numbers<[1], [1], [0], [0], [0, 0, 1, 0], [], []>} : vector<256x512xbf16>, vector<256x512xbf16>, vector<256x256xf32> -> vector<256x256xf32>
    %cst_14 = arith.constant 0.0883883461 : f32
    %19 = vector.broadcast %cst_14 : f32 to vector<128x256xf32>
    %20 = arith.mulf %16, %19 : vector<128x256xf32>
    %21 = arith.truncf %20 : vector<128x256xf32> to vector<128x256xbf16>
    %22 = arith.truncf %17 : vector<256x256xf32> to vector<256x256xbf16>
    %23 = arith.truncf %18 : vector<256x256xf32> to vector<256x256xbf16>
    %24 = vector.extract_strided_slice %21 {offsets = [0, 0], sizes = [128, 128], strides = [1, 1]} : vector<128x256xbf16> to vector<128x128xbf16>
    %25 = vector.extract_strided_slice %22 {offsets = [0, 0], sizes = [256, 128], strides = [1, 1]} : vector<256x256xbf16> to vector<256x128xbf16>
    %cst_15 = arith.constant dense<0.000000e+00> : vector<128x256xf32>
    %26 = tpu.matmul %24, %25, %cst_15 {dimension_numbers = #tpu.dot_dimension_numbers<[1], [1], [0], [0], [0, 0, 1, 0], [], []>} : vector<128x128xbf16>, vector<256x128xbf16>, vector<128x256xf32> -> vector<128x256xf32>
    %cst_16 = arith.constant dense<0xFF800000> : vector<128xf32>
    %27 = vector.multi_reduction <maximumf>, %26, %cst_16 [1] : vector<128x256xf32> to vector<128xf32>
    %28 = vector.shape_cast %27 : vector<128xf32> to vector<128x1xf32>
    %29 = vector.broadcast %28 : vector<128x1xf32> to vector<128x256xf32>
    %30 = arith.subf %26, %29 : vector<128x256xf32>
    %31 = math.exp %30 : vector<128x256xf32>
    %cst_17 = arith.constant dense<0.000000e+00> : vector<128xf32>
    %32 = vector.multi_reduction <add>, %31, %cst_17 [1] : vector<128x256xf32> to vector<128xf32>
    %33 = vector.shape_cast %32 : vector<128xf32> to vector<128x1xf32>
    %34 = arith.truncf %31 : vector<128x256xf32> to vector<128x256xbf16>
    %35 = vector.extract_strided_slice %23 {offsets = [0, 0], sizes = [256, 128], strides = [1, 1]} : vector<256x256xbf16> to vector<256x128xbf16>
    %cst_18 = arith.constant dense<0.000000e+00> : vector<128x128xf32>
    %36 = tpu.matmul %34, %35, %cst_18 {dimension_numbers = #tpu.dot_dimension_numbers<[1], [0], [0], [1], [0, 0, 1, 1], [], []>} : vector<128x256xbf16>, vector<256x128xbf16>, vector<128x128xf32> -> vector<128x128xf32>
    %37 = tpu.reciprocal %33 {approx = true} : vector<128x1xf32> -> vector<128x1xf32>
    %38 = vector.broadcast %37 : vector<128x1xf32> to vector<128x128xf32>
    %39 = arith.mulf %36, %38 : vector<128x128xf32>
    %40 = arith.truncf %39 : vector<128x128xf32> to vector<128x128xbf16>
    %41 = vector.extract_strided_slice %21 {offsets = [0, 128], sizes = [128, 128], strides = [1, 1]} : vector<128x256xbf16> to vector<128x128xbf16>
    %42 = vector.extract_strided_slice %22 {offsets = [0, 128], sizes = [256, 128], strides = [1, 1]} : vector<256x256xbf16> to vector<256x128xbf16>
    %cst_19 = arith.constant dense<0.000000e+00> : vector<128x256xf32>
    %43 = tpu.matmul %41, %42, %cst_19 {dimension_numbers = #tpu.dot_dimension_numbers<[1], [1], [0], [0], [0, 0, 1, 0], [], []>} : vector<128x128xbf16>, vector<256x128xbf16>, vector<128x256xf32> -> vector<128x256xf32>
    %cst_20 = arith.constant dense<0xFF800000> : vector<128xf32>
    %44 = vector.multi_reduction <maximumf>, %43, %cst_20 [1] : vector<128x256xf32> to vector<128xf32>
    %45 = vector.shape_cast %44 : vector<128xf32> to vector<128x1xf32>
    %46 = vector.broadcast %45 : vector<128x1xf32> to vector<128x256xf32>
    %47 = arith.subf %43, %46 : vector<128x256xf32>
    %48 = math.exp %47 : vector<128x256xf32>
    %cst_21 = arith.constant dense<0.000000e+00> : vector<128xf32>
    %49 = vector.multi_reduction <add>, %48, %cst_21 [1] : vector<128x256xf32> to vector<128xf32>
    %50 = vector.shape_cast %49 : vector<128xf32> to vector<128x1xf32>
    %51 = arith.truncf %48 : vector<128x256xf32> to vector<128x256xbf16>
    %52 = vector.extract_strided_slice %23 {offsets = [0, 128], sizes = [256, 128], strides = [1, 1]} : vector<256x256xbf16> to vector<256x128xbf16>
    %cst_22 = arith.constant dense<0.000000e+00> : vector<128x128xf32>
    %53 = tpu.matmul %51, %52, %cst_22 {dimension_numbers = #tpu.dot_dimension_numbers<[1], [0], [0], [1], [0, 0, 1, 1], [], []>} : vector<128x256xbf16>, vector<256x128xbf16>, vector<128x128xf32> -> vector<128x128xf32>
    %54 = tpu.reciprocal %50 {approx = true} : vector<128x1xf32> -> vector<128x1xf32>
    %55 = vector.broadcast %54 : vector<128x1xf32> to vector<128x128xf32>
    %56 = arith.mulf %53, %55 : vector<128x128xf32>
    %57 = arith.truncf %56 : vector<128x128xf32> to vector<128x128xbf16>
    %58 = tpu.concatenate %40, %57 in 1 : vector<128x128xbf16>, vector<128x128xbf16> -> vector<128x256xbf16>
    %cst_23 = arith.constant dense<0.000000e+00> : vector<128x512xf32>
    %59 = tpu.matmul %58, %15, %cst_23 {dimension_numbers = #tpu.dot_dimension_numbers<[1], [0], [0], [1], [0, 0, 1, 1], [], []>} : vector<128x256xbf16>, vector<256x512xbf16>, vector<128x512xf32> -> vector<128x512xf32>
    %c0_i32 = arith.constant 0 : i32
    %60 = arith.cmpi eq, %arg2, %c0_i32 : i32
    %61 = arith.extui %60 : i1 to i32
    %c0_i32_24 = arith.constant 0 : i32
    %62 = arith.cmpi ne, %61, %c0_i32_24 : i32
    scf.if %62 {
      %c0_27 = arith.constant 0 : index
      %c0_28 = arith.constant 0 : index
      %c0_29 = arith.constant 0 : index
      %66 = vector.load %arg10[%c0_27, %c0_28, %c0_29] : memref<1x128x512xf32, #tpu.memory_space<vmem>>, vector<1x128x512xf32>
      %67 = vector.shape_cast %66 : vector<1x128x512xf32> to vector<128x512xf32>
      %68 = vector.shape_cast %59 : vector<128x512xf32> to vector<1x128x512xf32>
      tpu.vector_store %arg10[%c0_27, %c0_28, %c0_29], %68 {strides = array<i32>} : memref<1x128x512xf32, #tpu.memory_space<vmem>>, vector<1x128x512xf32>,
    } else {
    }
    %c0_i32_25 = arith.constant 0 : i32
    %63 = arith.cmpi sgt, %arg2, %c0_i32_25 : i32
    %64 = arith.extui %63 : i1 to i32
    %c0_i32_26 = arith.constant 0 : i32
    %65 = arith.cmpi ne, %64, %c0_i32_26 : i32
    scf.if %65 {
      %c0_27 = arith.constant 0 : index
      %c0_28 = arith.constant 0 : index
      %c0_29 = arith.constant 0 : index
      %66 = vector.load %arg10[%c0_27, %c0_28, %c0_29] : memref<1x128x512xf32, #tpu.memory_space<vmem>>, vector<1x128x512xf32>
      %67 = vector.shape_cast %66 : vector<1x128x512xf32> to vector<128x512xf32>
      %68 = arith.addf %67, %59 : vector<128x512xf32>
      %c0_30 = arith.constant 0 : index
      %c0_31 = arith.constant 0 : index
      %c0_32 = arith.constant 0 : index
      %69 = vector.load %arg10[%c0_30, %c0_31, %c0_32] : memref<1x128x512xf32, #tpu.memory_space<vmem>>, vector<1x128x512xf32>
      %70 = vector.shape_cast %69 : vector<1x128x512xf32> to vector<128x512xf32>
      %71 = vector.shape_cast %68 : vector<128x512xf32> to vector<1x128x512xf32>
      tpu.vector_store %arg10[%c0_30, %c0_31, %c0_32], %71 {strides = array<i32>} : memref<1x128x512xf32, #tpu.memory_space<vmem>>, vector<1x128x512xf32>,
    } else {
    }
    return
  }
  func.func @transform_0(%arg0: i32, %arg1: i32, %arg2: i32) -> (i32, i32, i32) {
    %c0_i32 = arith.constant 0 : i32
    %c0_i32_0 = arith.constant 0 : i32
    return %arg0, %arg1, %c0_i32 : i32, i32, i32
  }
  func.func @transform_1(%arg0: i32, %arg1: i32, %arg2: i32) -> (i32, i32, i32) {
    %c0_i32 = arith.constant 0 : i32
    %c0_i32_0 = arith.constant 0 : i32
    %c0_i32_1 = arith.constant 0 : i32
    return %arg0, %c0_i32, %c0_i32_0 : i32, i32, i32
  }
  func.func @transform_2(%arg0: i32, %arg1: i32, %arg2: i32) -> (i32, i32, i32) {
    %c0_i32 = arith.constant 0 : i32
    %c0_i32_0 = arith.constant 0 : i32
    %c0_i32_1 = arith.constant 0 : i32
    return %arg0, %c0_i32, %c0_i32_0 : i32, i32, i32
  }
  func.func @transform_3(%arg0: i32, %arg1: i32, %arg2: i32) -> (i32, i32) {
    %c0_i32 = arith.constant 0 : i32
    %c0_i32_0 = arith.constant 0 : i32
    %c0_i32_1 = arith.constant 0 : i32
    return %c0_i32, %c0_i32_0 : i32, i32
  }
  func.func @transform_4(%arg0: i32, %arg1: i32, %arg2: i32) -> (i32, i32) {
    %c0_i32 = arith.constant 0 : i32
    %c0_i32_0 = arith.constant 0 : i32
    %c0_i32_1 = arith.constant 0 : i32
    return %c0_i32, %c0_i32_0 : i32, i32
  }
  func.func @transform_5(%arg0: i32, %arg1: i32, %arg2: i32) -> (i32, i32) {
    %c0_i32 = arith.constant 0 : i32
    %c0_i32_0 = arith.constant 0 : i32
    %c0_i32_1 = arith.constant 0 : i32
    return %c0_i32, %c0_i32_0 : i32, i32
  }
  func.func @transform_6(%arg0: i32, %arg1: i32, %arg2: i32) -> (i32, i32) {
    %c0_i32 = arith.constant 0 : i32
    %c0_i32_0 = arith.constant 0 : i32
    %c0_i32_1 = arith.constant 0 : i32
    return %c0_i32, %c0_i32_0 : i32, i32
  }
  func.func @transform_7(%arg0: i32, %arg1: i32, %arg2: i32) -> (i32, i32, i32) {
    %c0_i32 = arith.constant 0 : i32
    %c0_i32_0 = arith.constant 0 : i32
    return %arg0, %arg1, %c0_i32 : i32, i32, i32
  }
}

</mosaic_0001>

<llo_original>
// kernel: tpu_custom_call.1
$region0: #{tpu_custom_call.1}
  #allocation0 [shape = 'u32[]', space=smem, size = 0x4, offset = 0x4, fixed_abs, tag = 'smem constant byte address 0x4 - core index']
  #allocation1 [shape = 'u32[144,128]{1,0:T(1,128)}', space=vmem, size = 0x12000, scoped, tag = 'internal scratch']
  %s0 = inlined_call_operand.hbm [shape: bf16[2,128,512], index: 0, kind: input, shape index: {}]
  %s1 = inlined_call_operand.hbm [shape: bf16[2,256,512], index: 1, kind: input, shape index: {}]
  %s2 = inlined_call_operand.hbm [shape: bf16[2,256,512], index: 2, kind: input, shape index: {}]
  %s3 = inlined_call_operand.hbm [shape: bf16[512,512], index: 3, kind: input, shape index: {}]
  %s4 = inlined_call_operand.hbm [shape: bf16[512,512], index: 4, kind: input, shape index: {}]
  %s5 = inlined_call_operand.hbm [shape: bf16[512,512], index: 5, kind: input, shape index: {}]
  %s6 = inlined_call_operand.hbm [shape: bf16[512,512], index: 6, kind: input, shape index: {}]
  %s7 = inlined_call_operand.hbm [shape: f32[2,128,512], index: 7, kind: output, shape index: {}]
  %s8 = sld [smem:[#allocation0]]
  $region97: #{tpu_custom_call.1} parent=0
    _
  %s10 = ssub.s32 1, %s8
  %s11 = scalar_select 0, %s10, %s8
  $region1: #{tpu_custom_call.1} parent=0
    #allocation2 [shape = 'u8[262144]{0}', space=vmem, size = 0x40000, scoped, tag = 'input window, operand 0']
    #allocation3 [shape = 's32[2]{0}', space=sflag, size = 0x8, scoped, tag = 'scoped memory for tpu_custom_call.1']
    #allocation4 [shape = 's32[2]{0}', space=sflag, size = 0x8, scoped, tag = 'scoped memory for tpu_custom_call.1']
    #allocation5 [shape = 'u8[524288]{0}', space=vmem, size = 0x80000, scoped, tag = 'input window, operand 1']
    #allocation6 [shape = 's32[2]{0}', space=sflag, size = 0x8, scoped, tag = 'scoped memory for tpu_custom_call.1']
    #allocation7 [shape = 'u8[524288]{0}', space=vmem, size = 0x80000, scoped, tag = 'input window, operand 2']
    #allocation8 [shape = 'u8[524288]{0}', space=vmem, size = 0x80000, scoped, tag = 'input window, operand 3, single buffered']
    #allocation9 [shape = 's32[1]{0}', space=sflag, size = 0x4, scoped, tag = 'scoped memory for tpu_custom_call.1']
    #allocation10 [shape = 'u8[524288]{0}', space=vmem, size = 0x80000, scoped, tag = 'input window, operand 4, single buffered']
    #allocation11 [shape = 'u8[524288]{0}', space=vmem, size = 0x80000, scoped, tag = 'input window, operand 5, single buffered']
    #allocation12 [shape = 's32[1]{0}', space=sflag, size = 0x4, scoped, tag = 'scoped memory for tpu_custom_call.1']
    #allocation13 [shape = 'u8[524288]{0}', space=vmem, size = 0x80000, scoped, tag = 'input window, operand 6, single buffered']
    #allocation14 [shape = 'u8[524288]{0}', space=vmem, size = 0x80000, scoped, tag = 'output window, operand 0']
    %12 = vsyncpa [#allocation3], 0
    %s13 = scalar_lea.sflag [#allocation3], 1
    %14 = vsyncpa %s13, 0
    %15 = vsyncpa [#allocation6], 0
    %s16 = scalar_lea.sflag [#allocation6], 1
    %17 = vsyncpa %s16, 0
    %18 = vsyncpa [#allocation9], 0
    %19 = vsyncpa [#allocation12], 0
    %20 = vsyncpa [#allocation4], 0
    %s21 = scalar_lea.sflag [#allocation4], 1
    %22 = vsyncpa %s21, 0
    loop: start=0, step=1, limit=6
    $region2: #{tpu_custom_call.1} parent=1 // loop_pre_header
      _
    $region3: #{tpu_custom_call.1} parent=1 // loop_header
      %s24 = sphi 0, %s28
      %p25 = scmp.ge.s32.totalorder %s24, 6
      %s31 = sphi 0, %s50
      %s32 = sphi 0, %s46
      %s33 = sphi 0, %s42
      %s34 = sphi 0, %s31
      %s35 = sphi 0, %s32
      %s36 = sphi 0, %s33
      %s37 = sphi 0, %s34
      %s38 = sphi 0, %s35
      %s39 = sphi 0, %s36
      %s55 = sphi 0, %s57
      %s58 = sphi 0, %s55
      %s59 = sphi 0, %s58
      %s75 = sphi 0, %s59
      %s81 = sphi 0, %s83
      %s84 = sphi 0, %s81
      %s85 = sphi 0, %s84
      %s101 = sphi 0, %s85
      %s107 = sphi 0, %s109
      %s110 = sphi 0, %s107
      %s111 = sphi 0, %s110
      %s127 = sphi 0, %s111
      %s131 = sphi 0, %s131
      %s133 = sphi 0, %s131
      %s134 = sphi 0, %s133
      %s148 = sphi 0, %s134
      %s152 = sphi 0, %s152
      %s154 = sphi 0, %s152
      %s155 = sphi 0, %s154
      %s169 = sphi 0, %s155
      %s173 = sphi 0, %s173
      %s175 = sphi 0, %s173
      %s176 = sphi 0, %s175
      %s190 = sphi 0, %s176
      %s194 = sphi 0, %s194
      %s196 = sphi 0, %s194
      %s197 = sphi 0, %s196
      %s211 = sphi 0, %s197
      %s219 = sphi 0, %s221
      %s222 = sphi 0, %s219
      %s223 = sphi 0, %s222
      %s239 = sphi 0, %s223
    $region4: #{tpu_custom_call.1} parent=1 // loop_header_branch
      %27 = sbr.rel (%p25) target = $region8
    $region5: #{tpu_custom_call.1} parent=1 // loop_body
      %s29 = ssub.s32 %s24, 1
      %s30 = ssub.s32 %s24, 2
      %s40 = sadd.s32 1, %s33
      %p41 = scmp.ge.s32.totalorder %s40, 2
      %s42 = scalar_select %p41, 0, %s40
      %s43 = sadd.s32 1, %s32
      %s44 = scalar_select %p41, %s43, %s32
      %p45 = scmp.ge.s32.totalorder %s44, 1
      %s46 = scalar_select %p45, 0, %s44
      %s47 = sadd.s32 1, %s31
      %s48 = scalar_select %p45, %s47, %s31
      %p49 = scmp.ge.s32.totalorder %s48, 2
      %s50 = scalar_select %p49, 0, %s48
      %s51 = ssub.s32 %s31, %s50
      %s52 = ssub.s32 %s32, %s46
      %s53 = sor.u32 %s51, %s52
      %p54 = scmp.eq.s32.totalorder %s53, 0
      %s56 = sadd.s32 %s55, 1
      %s57 = scalar_select %p54, %s55, %s56
      %p60 = pneg %p54
      %p61 = scmp.eq.s32.totalorder %s24, 3
      %p62 = por %p60, %p61
      %p63 = scmp.ne.s32.totalorder %s55, %s58
      %p64 = scmp.eq.s32.totalorder %s24, 0
      %p65 = por %p63, %p64
      %p66 = scmp.ne.s32.totalorder %s55, %s58
      %p67 = scmp.eq.s32.totalorder %s29, 3
      %p68 = por %p66, %p67
      %p69 = scmp.ne.s32.totalorder %s58, %s59
      %p70 = scmp.eq.s32.totalorder %s29, 0
      %p71 = por %p69, %p70
      %p72 = scmp.ne.s32.totalorder %s58, %s59
      %p73 = scmp.eq.s32.totalorder %s30, 3
      %p74 = por %p72, %p73
      %p76 = scmp.ne.s32.totalorder %s59, %s75
      %p77 = scmp.eq.s32.totalorder %s30, 0
      %p78 = por %p76, %p77
      %s79 = ssub.s32 %s31, %s50
      %p80 = scmp.eq.s32.totalorder %s79, 0
      %s82 = sadd.s32 %s81, 1
      %s83 = scalar_select %p80, %s81, %s82
      %p86 = pneg %p80
      %p87 = scmp.eq.s32.totalorder %s24, 3
      %p88 = por %p86, %p87
      %p89 = scmp.ne.s32.totalorder %s81, %s84
      %p90 = scmp.eq.s32.totalorder %s24, 0
      %p91 = por %p89, %p90
      %p92 = scmp.ne.s32.totalorder %s81, %s84
      %p93 = scmp.eq.s32.totalorder %s29, 3
      %p94 = por %p92, %p93
      %p95 = scmp.ne.s32.totalorder %s84, %s85
      %p96 = scmp.eq.s32.totalorder %s29, 0
      %p97 = por %p95, %p96
      %p98 = scmp.ne.s32.totalorder %s84, %s85
      %p99 = scmp.eq.s32.totalorder %s30, 3
      %p100 = por %p98, %p99
      %p102 = scmp.ne.s32.totalorder %s85, %s101
      %p103 = scmp.eq.s32.totalorder %s30, 0
      %p104 = por %p102, %p103
      %s105 = ssub.s32 %s31, %s50
      %p106 = scmp.eq.s32.totalorder %s105, 0
      %s108 = sadd.s32 %s107, 1
      %s109 = scalar_select %p106, %s107, %s108
      %p112 = pneg %p106
      %p113 = scmp.eq.s32.totalorder %s24, 3
      %p114 = por %p112, %p113
      %p115 = scmp.ne.s32.totalorder %s107, %s110
      %p116 = scmp.eq.s32.totalorder %s24, 0
      %p117 = por %p115, %p116
      %p118 = scmp.ne.s32.totalorder %s107, %s110
      %p119 = scmp.eq.s32.totalorder %s29, 3
      %p120 = por %p118, %p119
      %p121 = scmp.ne.s32.totalorder %s110, %s111
      %p122 = scmp.eq.s32.totalorder %s29, 0
      %p123 = por %p121, %p122
      %p124 = scmp.ne.s32.totalorder %s110, %s111
      %p125 = scmp.eq.s32.totalorder %s30, 3
      %p126 = por %p124, %p125
      %p128 = scmp.ne.s32.totalorder %s111, %s127
      %p129 = scmp.eq.s32.totalorder %s30, 0
      %p130 = por %p128, %p129
      %s132 = sadd.s32 %s131, 1
      %p135 = scmp.eq.s32.totalorder %s24, 3
      %p136 = scmp.ne.s32.totalorder %s131, %s133
      %p137 = scmp.eq.s32.totalorder %s24, 0
      %p138 = por %p136, %p137
      %p139 = scmp.ne.s32.totalorder %s131, %s133
      %p140 = scmp.eq.s32.totalorder %s29, 3
      %p141 = por %p139, %p140
      %p142 = scmp.ne.s32.totalorder %s133, %s134
      %p143 = scmp.eq.s32.totalorder %s29, 0
      %p144 = por %p142, %p143
      %p145 = scmp.ne.s32.totalorder %s133, %s134
      %p146 = scmp.eq.s32.totalorder %s30, 3
      %p147 = por %p145, %p146
      %p149 = scmp.ne.s32.totalorder %s134, %s148
      %p150 = scmp.eq.s32.totalorder %s30, 0
      %p151 = por %p149, %p150
      %s153 = sadd.s32 %s152, 1
      %p156 = scmp.eq.s32.totalorder %s24, 3
      %p157 = scmp.ne.s32.totalorder %s152, %s154
      %p158 = scmp.eq.s32.totalorder %s24, 0
      %p159 = por %p157, %p158
      %p160 = scmp.ne.s32.totalorder %s152, %s154
      %p161 = scmp.eq.s32.totalorder %s29, 3
      %p162 = por %p160, %p161
      %p163 = scmp.ne.s32.totalorder %s154, %s155
      %p164 = scmp.eq.s32.totalorder %s29, 0
      %p165 = por %p163, %p164
      %p166 = scmp.ne.s32.totalorder %s154, %s155
      %p167 = scmp.eq.s32.totalorder %s30, 3
      %p168 = por %p166, %p167
      %p170 = scmp.ne.s32.totalorder %s155, %s169
      %p171 = scmp.eq.s32.totalorder %s30, 0
      %p172 = por %p170, %p171
      %s174 = sadd.s32 %s173, 1
      %p177 = scmp.eq.s32.totalorder %s24, 3
      %p178 = scmp.ne.s32.totalorder %s173, %s175
      %p179 = scmp.eq.s32.totalorder %s24, 0
      %p180 = por %p178, %p179
      %p181 = scmp.ne.s32.totalorder %s173, %s175
      %p182 = scmp.eq.s32.totalorder %s29, 3
      %p183 = por %p181, %p182
      %p184 = scmp.ne.s32.totalorder %s175, %s176
      %p185 = scmp.eq.s32.totalorder %s29, 0
      %p186 = por %p184, %p185
      %p187 = scmp.ne.s32.totalorder %s175, %s176
      %p188 = scmp.eq.s32.totalorder %s30, 3
      %p189 = por %p187, %p188
      %p191 = scmp.ne.s32.totalorder %s176, %s190
      %p192 = scmp.eq.s32.totalorder %s30, 0
      %p193 = por %p191, %p192
      %s195 = sadd.s32 %s194, 1
      %p198 = scmp.eq.s32.totalorder %s24, 3
      %p199 = scmp.ne.s32.totalorder %s194, %s196
      %p200 = scmp.eq.s32.totalorder %s24, 0
      %p201 = por %p199, %p200
      %p202 = scmp.ne.s32.totalorder %s194, %s196
      %p203 = scmp.eq.s32.totalorder %s29, 3
      %p204 = por %p202, %p203
      %p205 = scmp.ne.s32.totalorder %s196, %s197
      %p206 = scmp.eq.s32.totalorder %s29, 0
      %p207 = por %p205, %p206
      %p208 = scmp.ne.s32.totalorder %s196, %s197
      %p209 = scmp.eq.s32.totalorder %s30, 3
      %p210 = por %p208, %p209
      %p212 = scmp.ne.s32.totalorder %s197, %s211
      %p213 = scmp.eq.s32.totalorder %s30, 0
      %p214 = por %p212, %p213
      %s215 = ssub.s32 %s31, %s50
      %s216 = ssub.s32 %s32, %s46
      %s217 = sor.u32 %s215, %s216
      %p218 = scmp.eq.s32.totalorder %s217, 0
      %s220 = sadd.s32 %s219, 1
      %s221 = scalar_select %p218, %s219, %s220
      %p224 = pneg %p218
      %p225 = scmp.eq.s32.totalorder %s24, 3
      %p226 = por %p224, %p225
      %p227 = scmp.ne.s32.totalorder %s219, %s222
      %p228 = scmp.eq.s32.totalorder %s24, 0
      %p229 = por %p227, %p228
      %p230 = scmp.ne.s32.totalorder %s219, %s222
      %p231 = scmp.eq.s32.totalorder %s29, 3
      %p232 = por %p230, %p231
      %p233 = scmp.ne.s32.totalorder %s222, %s223
      %p234 = scmp.eq.s32.totalorder %s29, 0
      %p235 = por %p233, %p234
      %p236 = scmp.ne.s32.totalorder %s222, %s223
      %p237 = scmp.eq.s32.totalorder %s30, 3
      %p238 = por %p236, %p237
      %p240 = scmp.ne.s32.totalorder %s223, %s239
      %p241 = scmp.eq.s32.totalorder %s30, 0
      %p242 = por %p240, %p241
      %p243 = scmp.le.s32.totalorder 1, %s24
      %p244 = scmp.lt.s32.totalorder %s24, 5
      %p245 = pnand %p243, %p244
      %p246 = pneg %p245
      // Predicated region
      $region9: #{tpu_custom_call.1} parent=5 // pred_check
        _
      $region10: #{tpu_custom_call.1} parent=5 // pred_check_branch
        %248 = sbr.rel (%p245) target = $region12
      $region11: #{tpu_custom_call.1} parent=5 // pred_region
        %s249 = ssub.s32 %s24, 1
        // Predicated region
        $region13: #{tpu_custom_call.1} parent=11 // pred_check
          %p250 = pneg %p144
        $region14: #{tpu_custom_call.1} parent=11 // pred_check_branch
          %252 = sbr.rel (%p250) target = $region16
        $region15: #{tpu_custom_call.1} parent=11 // pred_region
          %s254 = ssub.s32 16384, 16384
          %255 = vsyncadd [#allocation9], %s254
          %s256 = sshll.u32 [#allocation8], 4
          %s257 = int_to_ptr.vmem [resolvable:$true] %s256
          %262 = dma.hbm_to_vmem [thread:$0]  %s3, 16384, %s257, [#allocation9], 256, 256, 16
        $region16: #{tpu_custom_call.1} parent=11 // pred_fallthru
          _
        // Predicated region
        $region17: #{tpu_custom_call.1} parent=11 // pred_check
          %p263 = pneg %p165
        $region18: #{tpu_custom_call.1} parent=11 // pred_check_branch
          %265 = sbr.rel (%p263) target = $region20
        $region19: #{tpu_custom_call.1} parent=11 // pred_region
          %s267 = ssub.s32 16384, 16384
          %268 = vsyncadd [#allocation9], %s267
          %s269 = sshll.u32 [#allocation10], 4
          %s270 = int_to_ptr.vmem [resolvable:$true] %s269
          %275 = dma.hbm_to_vmem [thread:$0]  %s4, 16384, %s270, [#allocation9], 256, 256, 16
        $region20: #{tpu_custom_call.1} parent=11 // pred_fallthru
          _
        // Predicated region
        $region21: #{tpu_custom_call.1} parent=11 // pred_check
          %p276 = pneg %p186
        $region22: #{tpu_custom_call.1} parent=11 // pred_check_branch
          %278 = sbr.rel (%p276) target = $region24
        $region23: #{tpu_custom_call.1} parent=11 // pred_region
          %s280 = ssub.s32 16384, 16384
          %281 = vsyncadd [#allocation12], %s280
          %s282 = sshll.u32 [#allocation11], 4
          %s283 = int_to_ptr.vmem [resolvable:$true] %s282
          %288 = dma.hbm_to_vmem [thread:$0]  %s5, 16384, %s283, [#allocation12], 256, 256, 16
        $region24: #{tpu_custom_call.1} parent=11 // pred_fallthru
          _
        // Predicated region
        $region25: #{tpu_custom_call.1} parent=11 // pred_check
          %p289 = pneg %p207
        $region26: #{tpu_custom_call.1} parent=11 // pred_check_branch
          %291 = sbr.rel (%p289) target = $region28
        $region27: #{tpu_custom_call.1} parent=11 // pred_region
          %s293 = ssub.s32 16384, 16384
          %294 = vsyncadd [#allocation12], %s293
          %s295 = sshll.u32 [#allocation13], 4
          %s296 = int_to_ptr.vmem [resolvable:$true] %s295
          %301 = dma.hbm_to_vmem [thread:$0]  %s6, 16384, %s296, [#allocation12], 256, 256, 16
        $region28: #{tpu_custom_call.1} parent=11 // pred_fallthru
          _
      $region12: #{tpu_custom_call.1} parent=5 // pred_fallthru
        _
      %p302 = scmp.lt.s32.totalorder %s24, 4
      // Predicated region
      $region29: #{tpu_custom_call.1} parent=5 // pred_check
        %p303 = pneg %p302
      $region30: #{tpu_custom_call.1} parent=5 // pred_check_branch
        %305 = sbr.rel (%p303) target = $region32
      $region31: #{tpu_custom_call.1} parent=5 // pred_region
        // Predicated region
        $region33: #{tpu_custom_call.1} parent=31 // pred_check
          %p306 = pneg %p65
        $region34: #{tpu_custom_call.1} parent=31 // pred_check_branch
          %308 = sbr.rel (%p306) target = $region36
        $region35: #{tpu_custom_call.1} parent=31 // pred_region
          %s309 = sand.u32 %s55, 1
          %s310 = scalar_lea.sflag [#allocation3], %s309
          %s311 = sand.u32 %s55, 1
          %s312 = smul.addr %s311, 256
          %s313 = scalar_lea.vmem [#allocation2], %s312
          %s314 = smul.u32 16, %s32
          %s316 = ssub.s32 4096, 4096
          %317 = vsyncadd %s310, %s316
          %s318 = smul.addr %s314, 4
          %s319 = smul.addr %s31, 64
          %s320 = sadd.s32 %s318, %s319
          %s321 = smul.addr %s320, 64
          %s322 = scalar_lea.hbm %s0, %s321
          %s323 = sshll.u32 %s313, 4
          %s324 = int_to_ptr.vmem [resolvable:$true] %s323
          %329 = dma.hbm_to_vmem [thread:$0]  %s322, 4096, %s324, %s310, 256, 256, 16
        $region36: #{tpu_custom_call.1} parent=31 // pred_fallthru
          _
        // Predicated region
        $region37: #{tpu_custom_call.1} parent=31 // pred_check
          %p330 = pneg %p91
        $region38: #{tpu_custom_call.1} parent=31 // pred_check_branch
          %332 = sbr.rel (%p330) target = $region40
        $region39: #{tpu_custom_call.1} parent=31 // pred_region
          %s333 = sand.u32 %s24, 1
          %s334 = scalar_lea.sflag [#allocation6], %s333
          %s335 = sand.u32 %s81, 1
          %s336 = smul.addr %s335, 512
          %s337 = scalar_lea.vmem [#allocation5], %s336
          %s339 = ssub.s32 8192, 8192
          %340 = vsyncadd %s334, %s339
          %s341 = smul.addr %s31, 128
          %s342 = smul.addr %s341, 64
          %s343 = scalar_lea.hbm %s1, %s342
          %s344 = sshll.u32 %s337, 4
          %s345 = int_to_ptr.vmem [resolvable:$true] %s344
          %350 = dma.hbm_to_vmem [thread:$0]  %s343, 8192, %s345, %s334, 256, 256, 16
        $region40: #{tpu_custom_call.1} parent=31 // pred_fallthru
          _
        // Predicated region
        $region41: #{tpu_custom_call.1} parent=31 // pred_check
          %p351 = pneg %p117
        $region42: #{tpu_custom_call.1} parent=31 // pred_check_branch
          %353 = sbr.rel (%p351) target = $region44
        $region43: #{tpu_custom_call.1} parent=31 // pred_region
          %s354 = sand.u32 %s24, 1
          %s355 = scalar_lea.sflag [#allocation6], %s354
          %s356 = sand.u32 %s107, 1
          %s357 = smul.addr %s356, 512
          %s358 = scalar_lea.vmem [#allocation7], %s357
          %s360 = ssub.s32 8192, 8192
          %361 = vsyncadd %s355, %s360
          %s362 = smul.addr %s31, 128
          %s363 = smul.addr %s362, 64
          %s364 = scalar_lea.hbm %s2, %s363
          %s365 = sshll.u32 %s358, 4
          %s366 = int_to_ptr.vmem [resolvable:$true] %s365
          %371 = dma.hbm_to_vmem [thread:$0]  %s364, 8192, %s366, %s355, 256, 256, 16
        $region44: #{tpu_custom_call.1} parent=31 // pred_fallthru
          _
      $region32: #{tpu_custom_call.1} parent=5 // pred_fallthru
        _
      %p372 = scmp.le.s32.totalorder 1, %s24
      %p373 = scmp.lt.s32.totalorder %s24, 5
      %p374 = pnand %p372, %p373
      %p375 = pneg %p374
      // Predicated region
      $region45: #{tpu_custom_call.1} parent=5 // pred_check
        _
      $region46: #{tpu_custom_call.1} parent=5 // pred_check_branch
        %377 = sbr.rel (%p374) target = $region48
      $region47: #{tpu_custom_call.1} parent=5 // pred_region
        %s378 = ssub.s32 %s24, 1
        %s379 = sand.u32 %s58, 1
        %s380 = scalar_lea.sflag [#allocation3], %s379
        %s381 = sand.u32 %s58, 1
        %s382 = smul.addr %s381, 256
        %s383 = scalar_lea.vmem [#allocation2], %s382
        // Predicated region
        $region49: #{tpu_custom_call.1} parent=47 // pred_check
          %p384 = pneg %p71
        $region50: #{tpu_custom_call.1} parent=47 // pred_check_branch
          %386 = sbr.rel (%p384) target = $region52
        $region51: #{tpu_custom_call.1} parent=47 // pred_region
          %387 = dma.done %s380, 4096
        $region52: #{tpu_custom_call.1} parent=47 // pred_fallthru
          _
        %s388 = sand.u32 %s29, 1
        %s389 = scalar_lea.sflag [#allocation6], %s388
        %s390 = sand.u32 %s84, 1
        %s391 = smul.addr %s390, 512
        %s392 = scalar_lea.vmem [#allocation5], %s391
        // Predicated region
        $region53: #{tpu_custom_call.1} parent=47 // pred_check
          %p393 = pneg %p97
        $region54: #{tpu_custom_call.1} parent=47 // pred_check_branch
          %395 = sbr.rel (%p393) target = $region56
        $region55: #{tpu_custom_call.1} parent=47 // pred_region
          %396 = dma.done %s389, 8192
        $region56: #{tpu_custom_call.1} parent=47 // pred_fallthru
          _
        %s397 = sand.u32 %s29, 1
        %s398 = scalar_lea.sflag [#allocation6], %s397
        %s399 = sand.u32 %s110, 1
        %s400 = smul.addr %s399, 512
        %s401 = scalar_lea.vmem [#allocation7], %s400
        // Predicated region
        $region57: #{tpu_custom_call.1} parent=47 // pred_check
          %p402 = pneg %p123
        $region58: #{tpu_custom_call.1} parent=47 // pred_check_branch
          %404 = sbr.rel (%p402) target = $region60
        $region59: #{tpu_custom_call.1} parent=47 // pred_region
          %405 = dma.done %s398, 8192
        $region60: #{tpu_custom_call.1} parent=47 // pred_fallthru
          _
        // Predicated region
        $region61: #{tpu_custom_call.1} parent=47 // pred_check
          %p406 = pneg %p144
        $region62: #{tpu_custom_call.1} parent=47 // pred_check_branch
          %408 = sbr.rel (%p406) target = $region64
        $region63: #{tpu_custom_call.1} parent=47 // pred_region
          %409 = dma.done [#allocation9], 16384
        $region64: #{tpu_custom_call.1} parent=47 // pred_fallthru
          _
        // Predicated region
        $region65: #{tpu_custom_call.1} parent=47 // pred_check
          %p410 = pneg %p165
        $region66: #{tpu_custom_call.1} parent=47 // pred_check_branch
          %412 = sbr.rel (%p410) target = $region68
        $region67: #{tpu_custom_call.1} parent=47 // pred_region
          %413 = dma.done [#allocation9], 16384
        $region68: #{tpu_custom_call.1} parent=47 // pred_fallthru
          _
        // Predicated region
        $region69: #{tpu_custom_call.1} parent=47 // pred_check
          %p414 = pneg %p186
        $region70: #{tpu_custom_call.1} parent=47 // pred_check_branch
          %416 = sbr.rel (%p414) target = $region72
        $region71: #{tpu_custom_call.1} parent=47 // pred_region
          %417 = dma.done [#allocation12], 16384
        $region72: #{tpu_custom_call.1} parent=47 // pred_fallthru
          _
        // Predicated region
        $region73: #{tpu_custom_call.1} parent=47 // pred_check
          %p418 = pneg %p207
        $region74: #{tpu_custom_call.1} parent=47 // pred_check_branch
          %420 = sbr.rel (%p418) target = $region76
        $region75: #{tpu_custom_call.1} parent=47 // pred_region
          %421 = dma.done [#allocation12], 16384
        $region76: #{tpu_custom_call.1} parent=47 // pred_fallthru
          _
        %s422 = sand.u32 %s58, 1
        %s423 = scalar_lea.sflag [#allocation3], %s422
        %s424 = sand.u32 %s58, 1
        %s425 = smul.addr %s424, 256
        %s426 = scalar_lea.vmem [#allocation2], %s425
        %p427 = pneg %p71
        %p428 = pneg %p68
        %s429 = sand.u32 %s29, 1
        %s430 = scalar_lea.sflag [#allocation6], %s429
        %s431 = sand.u32 %s84, 1
        %s432 = smul.addr %s431, 512
        %s433 = scalar_lea.vmem [#allocation5], %s432
        %p434 = pneg %p97
        %p435 = pneg %p94
        %s436 = sand.u32 %s29, 1
        %s437 = scalar_lea.sflag [#allocation6], %s436
        %s438 = sand.u32 %s110, 1
        %s439 = smul.addr %s438, 512
        %s440 = scalar_lea.vmem [#allocation7], %s439
        %p441 = pneg %p123
        %p442 = pneg %p120
        %p443 = pneg %p144
        %p444 = pneg %p141
        %p445 = pneg %p165
        %p446 = pneg %p162
        %p447 = pneg %p186
        %p448 = pneg %p183
        %p449 = pneg %p207
        %p450 = pneg %p204
        %p451 = pneg %p235
        %p452 = pneg %p232
        %s453 = sand.u32 %s222, 1
        %s454 = scalar_lea.sflag [#allocation4], %s453
        %s455 = sand.u32 %s222, 1
        %s456 = smul.addr %s455, 512
        %s457 = scalar_lea.vmem [#allocation14], %s456
        %s458 = smul.u32 16, %s35
        %s459 = smul.u32 16, %s35
        %s461 = smul.u32 %s36, 256
        %v462 = vld [vmem:[%s383] sm:$0xff]
        %v463 = vld [vmem:[%s383 + $0x8] sm:$0xff]
        %v464 = vld [vmem:[%s383 + $0x10] sm:$0xff]
        %v465 = vld [vmem:[%s383 + $0x18] sm:$0xff]
        %v466 = vld [vmem:[%s383 + $0x20] sm:$0xff]
        %v467 = vld [vmem:[%s383 + $0x28] sm:$0xff]
        %v468 = vld [vmem:[%s383 + $0x30] sm:$0xff]
        %v469 = vld [vmem:[%s383 + $0x38] sm:$0xff]
        %v470 = vld [vmem:[%s383 + $0x40] sm:$0xff]
        %v471 = vld [vmem:[%s383 + $0x48] sm:$0xff]
        %v472 = vld [vmem:[%s383 + $0x50] sm:$0xff]
        %v473 = vld [vmem:[%s383 + $0x58] sm:$0xff]
        %v474 = vld [vmem:[%s383 + $0x60] sm:$0xff]
        %v475 = vld [vmem:[%s383 + $0x68] sm:$0xff]
        %v476 = vld [vmem:[%s383 + $0x70] sm:$0xff]
        %v477 = vld [vmem:[%s383 + $0x78] sm:$0xff]
        %v478 = vld [vmem:[%s383 + $0x80] sm:$0xff]
        %v479 = vld [vmem:[%s383 + $0x88] sm:$0xff]
        %v480 = vld [vmem:[%s383 + $0x90] sm:$0xff]
        %v481 = vld [vmem:[%s383 + $0x98] sm:$0xff]
        %v482 = vld [vmem:[%s383 + $0xa0] sm:$0xff]
        %v483 = vld [vmem:[%s383 + $0xa8] sm:$0xff]
        %v484 = vld [vmem:[%s383 + $0xb0] sm:$0xff]
        %v485 = vld [vmem:[%s383 + $0xb8] sm:$0xff]
        %v486 = vld [vmem:[%s383 + $0xc0] sm:$0xff]
        %v487 = vld [vmem:[%s383 + $0xc8] sm:$0xff]
        %v488 = vld [vmem:[%s383 + $0xd0] sm:$0xff]
        %v489 = vld [vmem:[%s383 + $0xd8] sm:$0xff]
        %v490 = vld [vmem:[%s383 + $0xe0] sm:$0xff]
        %v491 = vld [vmem:[%s383 + $0xe8] sm:$0xff]
        %v492 = vld [vmem:[%s383 + $0xf0] sm:$0xff]
        %v493 = vld [vmem:[%s383 + $0xf8] sm:$0xff]
        %v494 = vld [vmem:[%s392] sm:$0xff]
        %v495 = vld [vmem:[%s392 + $0x8] sm:$0xff]
        %v496 = vld [vmem:[%s392 + $0x10] sm:$0xff]
        %v497 = vld [vmem:[%s392 + $0x18] sm:$0xff]
        %v498 = vld [vmem:[%s392 + $0x20] sm:$0xff]
        %v499 = vld [vmem:[%s392 + $0x28] sm:$0xff]
        %v500 = vld [vmem:[%s392 + $0x30] sm:$0xff]
        %v501 = vld [vmem:[%s392 + $0x38] sm:$0xff]
        %v502 = vld [vmem:[%s392 + $0x40] sm:$0xff]
        %v503 = vld [vmem:[%s392 + $0x48] sm:$0xff]
        %v504 = vld [vmem:[%s392 + $0x50] sm:$0xff]
        %v505 = vld [vmem:[%s392 + $0x58] sm:$0xff]
        %v506 = vld [vmem:[%s392 + $0x60] sm:$0xff]
        %v507 = vld [vmem:[%s392 + $0x68] sm:$0xff]
        %v508 = vld [vmem:[%s392 + $0x70] sm:$0xff]
        %v509 = vld [vmem:[%s392 + $0x78] sm:$0xff]
        %v510 = vld [vmem:[%s392 + $0x80] sm:$0xff]
        %v511 = vld [vmem:[%s392 + $0x88] sm:$0xff]
        %v512 = vld [vmem:[%s392 + $0x90] sm:$0xff]
        %v513 = vld [vmem:[%s392 + $0x98] sm:$0xff]
        %v514 = vld [vmem:[%s392 + $0xa0] sm:$0xff]
        %v515 = vld [vmem:[%s392 + $0xa8] sm:$0xff]
        %v516 = vld [vmem:[%s392 + $0xb0] sm:$0xff]
        %v517 = vld [vmem:[%s392 + $0xb8] sm:$0xff]
        %v518 = vld [vmem:[%s392 + $0xc0] sm:$0xff]
        %v519 = vld [vmem:[%s392 + $0xc8] sm:$0xff]
        %v520 = vld [vmem:[%s392 + $0xd0] sm:$0xff]
        %v521 = vld [vmem:[%s392 + $0xd8] sm:$0xff]
        %v522 = vld [vmem:[%s392 + $0xe0] sm:$0xff]
        %v523 = vld [vmem:[%s392 + $0xe8] sm:$0xff]
        %v524 = vld [vmem:[%s392 + $0xf0] sm:$0xff]
        %v525 = vld [vmem:[%s392 + $0xf8] sm:$0xff]
        %v526 = vld [vmem:[%s392 + $0x100] sm:$0xff]
        %v527 = vld [vmem:[%s392 + $0x108] sm:$0xff]
        %v528 = vld [vmem:[%s392 + $0x110] sm:$0xff]
        %v529 = vld [vmem:[%s392 + $0x118] sm:$0xff]
        %v530 = vld [vmem:[%s392 + $0x120] sm:$0xff]
        %v531 = vld [vmem:[%s392 + $0x128] sm:$0xff]
        %v532 = vld [vmem:[%s392 + $0x130] sm:$0xff]
        %v533 = vld [vmem:[%s392 + $0x138] sm:$0xff]
        %v534 = vld [vmem:[%s392 + $0x140] sm:$0xff]
        %v535 = vld [vmem:[%s392 + $0x148] sm:$0xff]
        %v536 = vld [vmem:[%s392 + $0x150] sm:$0xff]
        %v537 = vld [vmem:[%s392 + $0x158] sm:$0xff]
        %v538 = vld [vmem:[%s392 + $0x160] sm:$0xff]
        %v539 = vld [vmem:[%s392 + $0x168] sm:$0xff]
        %v540 = vld [vmem:[%s392 + $0x170] sm:$0xff]
        %v541 = vld [vmem:[%s392 + $0x178] sm:$0xff]
        %v542 = vld [vmem:[%s392 + $0x180] sm:$0xff]
        %v543 = vld [vmem:[%s392 + $0x188] sm:$0xff]
        %v544 = vld [vmem:[%s392 + $0x190] sm:$0xff]
        %v545 = vld [vmem:[%s392 + $0x198] sm:$0xff]
        %v546 = vld [vmem:[%s392 + $0x1a0] sm:$0xff]
        %v547 = vld [vmem:[%s392 + $0x1a8] sm:$0xff]
        %v548 = vld [vmem:[%s392 + $0x1b0] sm:$0xff]
        %v549 = vld [vmem:[%s392 + $0x1b8] sm:$0xff]
        %v550 = vld [vmem:[%s392 + $0x1c0] sm:$0xff]
        %v551 = vld [vmem:[%s392 + $0x1c8] sm:$0xff]
        %v552 = vld [vmem:[%s392 + $0x1d0] sm:$0xff]
        %v553 = vld [vmem:[%s392 + $0x1d8] sm:$0xff]
        %v554 = vld [vmem:[%s392 + $0x1e0] sm:$0xff]
        %v555 = vld [vmem:[%s392 + $0x1e8] sm:$0xff]
        %v556 = vld [vmem:[%s392 + $0x1f0] sm:$0xff]
        %v557 = vld [vmem:[%s392 + $0x1f8] sm:$0xff]
        %v558 = vld [vmem:[%s401] sm:$0xff]
        %v559 = vld [vmem:[%s401 + $0x8] sm:$0xff]
        %v560 = vld [vmem:[%s401 + $0x10] sm:$0xff]
        %v561 = vld [vmem:[%s401 + $0x18] sm:$0xff]
        %v562 = vld [vmem:[%s401 + $0x20] sm:$0xff]
        %v563 = vld [vmem:[%s401 + $0x28] sm:$0xff]
        %v564 = vld [vmem:[%s401 + $0x30] sm:$0xff]
        %v565 = vld [vmem:[%s401 + $0x38] sm:$0xff]
        %v566 = vld [vmem:[%s401 + $0x40] sm:$0xff]
        %v567 = vld [vmem:[%s401 + $0x48] sm:$0xff]
        %v568 = vld [vmem:[%s401 + $0x50] sm:$0xff]
        %v569 = vld [vmem:[%s401 + $0x58] sm:$0xff]
        %v570 = vld [vmem:[%s401 + $0x60] sm:$0xff]
        %v571 = vld [vmem:[%s401 + $0x68] sm:$0xff]
        %v572 = vld [vmem:[%s401 + $0x70] sm:$0xff]
        %v573 = vld [vmem:[%s401 + $0x78] sm:$0xff]
        %v574 = vld [vmem:[%s401 + $0x80] sm:$0xff]
        %v575 = vld [vmem:[%s401 + $0x88] sm:$0xff]
        %v576 = vld [vmem:[%s401 + $0x90] sm:$0xff]
        %v577 = vld [vmem:[%s401 + $0x98] sm:$0xff]
        %v578 = vld [vmem:[%s401 + $0xa0] sm:$0xff]
        %v579 = vld [vmem:[%s401 + $0xa8] sm:$0xff]
        %v580 = vld [vmem:[%s401 + $0xb0] sm:$0xff]
        %v581 = vld [vmem:[%s401 + $0xb8] sm:$0xff]
        %v582 = vld [vmem:[%s401 + $0xc0] sm:$0xff]
        %v583 = vld [vmem:[%s401 + $0xc8] sm:$0xff]
        %v584 = vld [vmem:[%s401 + $0xd0] sm:$0xff]
        %v585 = vld [vmem:[%s401 + $0xd8] sm:$0xff]
        %v586 = vld [vmem:[%s401 + $0xe0] sm:$0xff]
        %v587 = vld [vmem:[%s401 + $0xe8] sm:$0xff]
        %v588 = vld [vmem:[%s401 + $0xf0] sm:$0xff]
        %v589 = vld [vmem:[%s401 + $0xf8] sm:$0xff]
        %v590 = vld [vmem:[%s401 + $0x100] sm:$0xff]
        %v591 = vld [vmem:[%s401 + $0x108] sm:$0xff]
        %v592 = vld [vmem:[%s401 + $0x110] sm:$0xff]
        %v593 = vld [vmem:[%s401 + $0x118] sm:$0xff]
        %v594 = vld [vmem:[%s401 + $0x120] sm:$0xff]
        %v595 = vld [vmem:[%s401 + $0x128] sm:$0xff]
        %v596 = vld [vmem:[%s401 + $0x130] sm:$0xff]
        %v597 = vld [vmem:[%s401 + $0x138] sm:$0xff]
        %v598 = vld [vmem:[%s401 + $0x140] sm:$0xff]
        %v599 = vld [vmem:[%s401 + $0x148] sm:$0xff]
        %v600 = vld [vmem:[%s401 + $0x150] sm:$0xff]
        %v601 = vld [vmem:[%s401 + $0x158] sm:$0xff]
        %v602 = vld [vmem:[%s401 + $0x160] sm:$0xff]
        %v603 = vld [vmem:[%s401 + $0x168] sm:$0xff]
        %v604 = vld [vmem:[%s401 + $0x170] sm:$0xff]
        %v605 = vld [vmem:[%s401 + $0x178] sm:$0xff]
        %v606 = vld [vmem:[%s401 + $0x180] sm:$0xff]
        %v607 = vld [vmem:[%s401 + $0x188] sm:$0xff]
        %v608 = vld [vmem:[%s401 + $0x190] sm:$0xff]
        %v609 = vld [vmem:[%s401 + $0x198] sm:$0xff]
        %v610 = vld [vmem:[%s401 + $0x1a0] sm:$0xff]
        %v611 = vld [vmem:[%s401 + $0x1a8] sm:$0xff]
        %v612 = vld [vmem:[%s401 + $0x1b0] sm:$0xff]
        %v613 = vld [vmem:[%s401 + $0x1b8] sm:$0xff]
        %v614 = vld [vmem:[%s401 + $0x1c0] sm:$0xff]
        %v615 = vld [vmem:[%s401 + $0x1c8] sm:$0xff]
        %v616 = vld [vmem:[%s401 + $0x1d0] sm:$0xff]
        %v617 = vld [vmem:[%s401 + $0x1d8] sm:$0xff]
        %v618 = vld [vmem:[%s401 + $0x1e0] sm:$0xff]
        %v619 = vld [vmem:[%s401 + $0x1e8] sm:$0xff]
        %v620 = vld [vmem:[%s401 + $0x1f0] sm:$0xff]
        %v621 = vld [vmem:[%s401 + $0x1f8] sm:$0xff]
        %s622 = sshra.s32 %s461, 3
        %s623 = sand.u32 %s461, 7
        %s624 = smul.u32 %s622, 4
        %s625 = smul.addr %s624, 4
        %s626 = scalar_lea.vmem [#allocation8], %s625
        %v627 = vld [vmem:[%s626] sm:$0xff]
        %v628 = vld [vmem:[%s626 + $0x8] sm:$0xff]
        %v629 = vld [vmem:[%s626 + $0x10] sm:$0xff]
        %v630 = vld [vmem:[%s626 + $0x18] sm:$0xff]
        %v631 = vld [vmem:[%s626 + $0x20] sm:$0xff]
        %v632 = vld [vmem:[%s626 + $0x28] sm:$0xff]
        %v633 = vld [vmem:[%s626 + $0x30] sm:$0xff]
        %v634 = vld [vmem:[%s626 + $0x38] sm:$0xff]
        %v635 = vld [vmem:[%s626 + $0x40] sm:$0xff]
        %v636 = vld [vmem:[%s626 + $0x48] sm:$0xff]
        %v637 = vld [vmem:[%s626 + $0x50] sm:$0xff]
        %v638 = vld [vmem:[%s626 + $0x58] sm:$0xff]
        %v639 = vld [vmem:[%s626 + $0x60] sm:$0xff]
        %v640 = vld [vmem:[%s626 + $0x68] sm:$0xff]
        %v641 = vld [vmem:[%s626 + $0x70] sm:$0xff]
        %v642 = vld [vmem:[%s626 + $0x78] sm:$0xff]
        %v643 = vld [vmem:[%s626 + $0x80] sm:$0xff]
        %v644 = vld [vmem:[%s626 + $0x88] sm:$0xff]
        %v645 = vld [vmem:[%s626 + $0x90] sm:$0xff]
        %v646 = vld [vmem:[%s626 + $0x98] sm:$0xff]
        %v647 = vld [vmem:[%s626 + $0xa0] sm:$0xff]
        %v648 = vld [vmem:[%s626 + $0xa8] sm:$0xff]
        %v649 = vld [vmem:[%s626 + $0xb0] sm:$0xff]
        %v650 = vld [vmem:[%s626 + $0xb8] sm:$0xff]
        %v651 = vld [vmem:[%s626 + $0xc0] sm:$0xff]
        %v652 = vld [vmem:[%s626 + $0xc8] sm:$0xff]
        %v653 = vld [vmem:[%s626 + $0xd0] sm:$0xff]
        %v654 = vld [vmem:[%s626 + $0xd8] sm:$0xff]
        %v655 = vld [vmem:[%s626 + $0xe0] sm:$0xff]
        %v656 = vld [vmem:[%s626 + $0xe8] sm:$0xff]
        %v657 = vld [vmem:[%s626 + $0xf0] sm:$0xff]
        %v658 = vld [vmem:[%s626 + $0xf8] sm:$0xff]
        %v659 = vld [vmem:[%s626 + $0x100] sm:$0xff]
        %v660 = vld [vmem:[%s626 + $0x108] sm:$0xff]
        %v661 = vld [vmem:[%s626 + $0x110] sm:$0xff]
        %v662 = vld [vmem:[%s626 + $0x118] sm:$0xff]
        %v663 = vld [vmem:[%s626 + $0x120] sm:$0xff]
        %v664 = vld [vmem:[%s626 + $0x128] sm:$0xff]
        %v665 = vld [vmem:[%s626 + $0x130] sm:$0xff]
        %v666 = vld [vmem:[%s626 + $0x138] sm:$0xff]
        %v667 = vld [vmem:[%s626 + $0x140] sm:$0xff]
        %v668 = vld [vmem:[%s626 + $0x148] sm:$0xff]
        %v669 = vld [vmem:[%s626 + $0x150] sm:$0xff]
        %v670 = vld [vmem:[%s626 + $0x158] sm:$0xff]
        %v671 = vld [vmem:[%s626 + $0x160] sm:$0xff]
        %v672 = vld [vmem:[%s626 + $0x168] sm:$0xff]
        %v673 = vld [vmem:[%s626 + $0x170] sm:$0xff]
        %v674 = vld [vmem:[%s626 + $0x178] sm:$0xff]
        %v675 = vld [vmem:[%s626 + $0x180] sm:$0xff]
        %v676 = vld [vmem:[%s626 + $0x188] sm:$0xff]
        %v677 = vld [vmem:[%s626 + $0x190] sm:$0xff]
        %v678 = vld [vmem:[%s626 + $0x198] sm:$0xff]
        %v679 = vld [vmem:[%s626 + $0x1a0] sm:$0xff]
        %v680 = vld [vmem:[%s626 + $0x1a8] sm:$0xff]
        %v681 = vld [vmem:[%s626 + $0x1b0] sm:$0xff]
        %v682 = vld [vmem:[%s626 + $0x1b8] sm:$0xff]
        %v683 = vld [vmem:[%s626 + $0x1c0] sm:$0xff]
        %v684 = vld [vmem:[%s626 + $0x1c8] sm:$0xff]
        %v685 = vld [vmem:[%s626 + $0x1d0] sm:$0xff]
        %v686 = vld [vmem:[%s626 + $0x1d8] sm:$0xff]
        %v687 = vld [vmem:[%s626 + $0x1e0] sm:$0xff]
        %v688 = vld [vmem:[%s626 + $0x1e8] sm:$0xff]
        %v689 = vld [vmem:[%s626 + $0x1f0] sm:$0xff]
        %v690 = vld [vmem:[%s626 + $0x1f8] sm:$0xff]
        %s691 = smul.addr %s624, 4
        %s692 = scalar_lea.vmem [#allocation10], %s691
        %v693 = vld [vmem:[%s692] sm:$0xff]
        %v694 = vld [vmem:[%s692 + $0x8] sm:$0xff]
        %v695 = vld [vmem:[%s692 + $0x10] sm:$0xff]
        %v696 = vld [vmem:[%s692 + $0x18] sm:$0xff]
        %v697 = vld [vmem:[%s692 + $0x20] sm:$0xff]
        %v698 = vld [vmem:[%s692 + $0x28] sm:$0xff]
        %v699 = vld [vmem:[%s692 + $0x30] sm:$0xff]
        %v700 = vld [vmem:[%s692 + $0x38] sm:$0xff]
        %v701 = vld [vmem:[%s692 + $0x40] sm:$0xff]
        %v702 = vld [vmem:[%s692 + $0x48] sm:$0xff]
        %v703 = vld [vmem:[%s692 + $0x50] sm:$0xff]
        %v704 = vld [vmem:[%s692 + $0x58] sm:$0xff]
        %v705 = vld [vmem:[%s692 + $0x60] sm:$0xff]
        %v706 = vld [vmem:[%s692 + $0x68] sm:$0xff]
        %v707 = vld [vmem:[%s692 + $0x70] sm:$0xff]
        %v708 = vld [vmem:[%s692 + $0x78] sm:$0xff]
        %v709 = vld [vmem:[%s692 + $0x80] sm:$0xff]
        %v710 = vld [vmem:[%s692 + $0x88] sm:$0xff]
        %v711 = vld [vmem:[%s692 + $0x90] sm:$0xff]
        %v712 = vld [vmem:[%s692 + $0x98] sm:$0xff]
        %v713 = vld [vmem:[%s692 + $0xa0] sm:$0xff]
        %v714 = vld [vmem:[%s692 + $0xa8] sm:$0xff]
        %v715 = vld [vmem:[%s692 + $0xb0] sm:$0xff]
        %v716 = vld [vmem:[%s692 + $0xb8] sm:$0xff]
        %v717 = vld [vmem:[%s692 + $0xc0] sm:$0xff]
        %v718 = vld [vmem:[%s692 + $0xc8] sm:$0xff]
        %v719 = vld [vmem:[%s692 + $0xd0] sm:$0xff]
        %v720 = vld [vmem:[%s692 + $0xd8] sm:$0xff]
        %v721 = vld [vmem:[%s692 + $0xe0] sm:$0xff]
        %v722 = vld [vmem:[%s692 + $0xe8] sm:$0xff]
        %v723 = vld [vmem:[%s692 + $0xf0] sm:$0xff]
        %v724 = vld [vmem:[%s692 + $0xf8] sm:$0xff]
        %v725 = vld [vmem:[%s692 + $0x100] sm:$0xff]
        %v726 = vld [vmem:[%s692 + $0x108] sm:$0xff]
        %v727 = vld [vmem:[%s692 + $0x110] sm:$0xff]
        %v728 = vld [vmem:[%s692 + $0x118] sm:$0xff]
        %v729 = vld [vmem:[%s692 + $0x120] sm:$0xff]
        %v730 = vld [vmem:[%s692 + $0x128] sm:$0xff]
        %v731 = vld [vmem:[%s692 + $0x130] sm:$0xff]
        %v732 = vld [vmem:[%s692 + $0x138] sm:$0xff]
        %v733 = vld [vmem:[%s692 + $0x140] sm:$0xff]
        %v734 = vld [vmem:[%s692 + $0x148] sm:$0xff]
        %v735 = vld [vmem:[%s692 + $0x150] sm:$0xff]
        %v736 = vld [vmem:[%s692 + $0x158] sm:$0xff]
        %v737 = vld [vmem:[%s692 + $0x160] sm:$0xff]
        %v738 = vld [vmem:[%s692 + $0x168] sm:$0xff]
        %v739 = vld [vmem:[%s692 + $0x170] sm:$0xff]
        %v740 = vld [vmem:[%s692 + $0x178] sm:$0xff]
        %v741 = vld [vmem:[%s692 + $0x180] sm:$0xff]
        %v742 = vld [vmem:[%s692 + $0x188] sm:$0xff]
        %v743 = vld [vmem:[%s692 + $0x190] sm:$0xff]
        %v744 = vld [vmem:[%s692 + $0x198] sm:$0xff]
        %v745 = vld [vmem:[%s692 + $0x1a0] sm:$0xff]
        %v746 = vld [vmem:[%s692 + $0x1a8] sm:$0xff]
        %v747 = vld [vmem:[%s692 + $0x1b0] sm:$0xff]
        %v748 = vld [vmem:[%s692 + $0x1b8] sm:$0xff]
        %v749 = vld [vmem:[%s692 + $0x1c0] sm:$0xff]
        %v750 = vld [vmem:[%s692 + $0x1c8] sm:$0xff]
        %v751 = vld [vmem:[%s692 + $0x1d0] sm:$0xff]
        %v752 = vld [vmem:[%s692 + $0x1d8] sm:$0xff]
        %v753 = vld [vmem:[%s692 + $0x1e0] sm:$0xff]
        %v754 = vld [vmem:[%s692 + $0x1e8] sm:$0xff]
        %v755 = vld [vmem:[%s692 + $0x1f0] sm:$0xff]
        %v756 = vld [vmem:[%s692 + $0x1f8] sm:$0xff]
        %s757 = smul.addr %s624, 4
        %s758 = scalar_lea.vmem [#allocation11], %s757
        %v759 = vld [vmem:[%s758] sm:$0xff]
        %v760 = vld [vmem:[%s758 + $0x8] sm:$0xff]
        %v761 = vld [vmem:[%s758 + $0x10] sm:$0xff]
        %v762 = vld [vmem:[%s758 + $0x18] sm:$0xff]
        %v763 = vld [vmem:[%s758 + $0x20] sm:$0xff]
        %v764 = vld [vmem:[%s758 + $0x28] sm:$0xff]
        %v765 = vld [vmem:[%s758 + $0x30] sm:$0xff]
        %v766 = vld [vmem:[%s758 + $0x38] sm:$0xff]
        %v767 = vld [vmem:[%s758 + $0x40] sm:$0xff]
        %v768 = vld [vmem:[%s758 + $0x48] sm:$0xff]
        %v769 = vld [vmem:[%s758 + $0x50] sm:$0xff]
        %v770 = vld [vmem:[%s758 + $0x58] sm:$0xff]
        %v771 = vld [vmem:[%s758 + $0x60] sm:$0xff]
        %v772 = vld [vmem:[%s758 + $0x68] sm:$0xff]
        %v773 = vld [vmem:[%s758 + $0x70] sm:$0xff]
        %v774 = vld [vmem:[%s758 + $0x78] sm:$0xff]
        %v775 = vld [vmem:[%s758 + $0x80] sm:$0xff]
        %v776 = vld [vmem:[%s758 + $0x88] sm:$0xff]
        %v777 = vld [vmem:[%s758 + $0x90] sm:$0xff]
        %v778 = vld [vmem:[%s758 + $0x98] sm:$0xff]
        %v779 = vld [vmem:[%s758 + $0xa0] sm:$0xff]
        %v780 = vld [vmem:[%s758 + $0xa8] sm:$0xff]
        %v781 = vld [vmem:[%s758 + $0xb0] sm:$0xff]
        %v782 = vld [vmem:[%s758 + $0xb8] sm:$0xff]
        %v783 = vld [vmem:[%s758 + $0xc0] sm:$0xff]
        %v784 = vld [vmem:[%s758 + $0xc8] sm:$0xff]
        %v785 = vld [vmem:[%s758 + $0xd0] sm:$0xff]
        %v786 = vld [vmem:[%s758 + $0xd8] sm:$0xff]
        %v787 = vld [vmem:[%s758 + $0xe0] sm:$0xff]
        %v788 = vld [vmem:[%s758 + $0xe8] sm:$0xff]
        %v789 = vld [vmem:[%s758 + $0xf0] sm:$0xff]
        %v790 = vld [vmem:[%s758 + $0xf8] sm:$0xff]
        %v791 = vld [vmem:[%s758 + $0x100] sm:$0xff]
        %v792 = vld [vmem:[%s758 + $0x108] sm:$0xff]
        %v793 = vld [vmem:[%s758 + $0x110] sm:$0xff]
        %v794 = vld [vmem:[%s758 + $0x118] sm:$0xff]
        %v795 = vld [vmem:[%s758 + $0x120] sm:$0xff]
        %v796 = vld [vmem:[%s758 + $0x128] sm:$0xff]
        %v797 = vld [vmem:[%s758 + $0x130] sm:$0xff]
        %v798 = vld [vmem:[%s758 + $0x138] sm:$0xff]
        %v799 = vld [vmem:[%s758 + $0x140] sm:$0xff]
        %v800 = vld [vmem:[%s758 + $0x148] sm:$0xff]
        %v801 = vld [vmem:[%s758 + $0x150] sm:$0xff]
        %v802 = vld [vmem:[%s758 + $0x158] sm:$0xff]
        %v803 = vld [vmem:[%s758 + $0x160] sm:$0xff]
        %v804 = vld [vmem:[%s758 + $0x168] sm:$0xff]
        %v805 = vld [vmem:[%s758 + $0x170] sm:$0xff]
        %v806 = vld [vmem:[%s758 + $0x178] sm:$0xff]
        %v807 = vld [vmem:[%s758 + $0x180] sm:$0xff]
        %v808 = vld [vmem:[%s758 + $0x188] sm:$0xff]
        %v809 = vld [vmem:[%s758 + $0x190] sm:$0xff]
        %v810 = vld [vmem:[%s758 + $0x198] sm:$0xff]
        %v811 = vld [vmem:[%s758 + $0x1a0] sm:$0xff]
        %v812 = vld [vmem:[%s758 + $0x1a8] sm:$0xff]
        %v813 = vld [vmem:[%s758 + $0x1b0] sm:$0xff]
        %v814 = vld [vmem:[%s758 + $0x1b8] sm:$0xff]
        %v815 = vld [vmem:[%s758 + $0x1c0] sm:$0xff]
        %v816 = vld [vmem:[%s758 + $0x1c8] sm:$0xff]
        %v817 = vld [vmem:[%s758 + $0x1d0] sm:$0xff]
        %v818 = vld [vmem:[%s758 + $0x1d8] sm:$0xff]
        %v819 = vld [vmem:[%s758 + $0x1e0] sm:$0xff]
        %v820 = vld [vmem:[%s758 + $0x1e8] sm:$0xff]
        %v821 = vld [vmem:[%s758 + $0x1f0] sm:$0xff]
        %v822 = vld [vmem:[%s758 + $0x1f8] sm:$0xff]
        %s823 = smul.addr %s624, 4
        %s824 = scalar_lea.vmem [#allocation13], %s823
        %v825 = vld [vmem:[%s824] sm:$0xff]
        %v826 = vld [vmem:[%s824 + $0x8] sm:$0xff]
        %v827 = vld [vmem:[%s824 + $0x10] sm:$0xff]
        %v828 = vld [vmem:[%s824 + $0x18] sm:$0xff]
        %v829 = vld [vmem:[%s824 + $0x20] sm:$0xff]
        %v830 = vld [vmem:[%s824 + $0x28] sm:$0xff]
        %v831 = vld [vmem:[%s824 + $0x30] sm:$0xff]
        %v832 = vld [vmem:[%s824 + $0x38] sm:$0xff]
        %v833 = vld [vmem:[%s824 + $0x40] sm:$0xff]
        %v834 = vld [vmem:[%s824 + $0x48] sm:$0xff]
        %v835 = vld [vmem:[%s824 + $0x50] sm:$0xff]
        %v836 = vld [vmem:[%s824 + $0x58] sm:$0xff]
        %v837 = vld [vmem:[%s824 + $0x60] sm:$0xff]
        %v838 = vld [vmem:[%s824 + $0x68] sm:$0xff]
        %v839 = vld [vmem:[%s824 + $0x70] sm:$0xff]
        %v840 = vld [vmem:[%s824 + $0x78] sm:$0xff]
        %v841 = vld [vmem:[%s824 + $0x80] sm:$0xff]
        %v842 = vld [vmem:[%s824 + $0x88] sm:$0xff]
        %v843 = vld [vmem:[%s824 + $0x90] sm:$0xff]
        %v844 = vld [vmem:[%s824 + $0x98] sm:$0xff]
        %v845 = vld [vmem:[%s824 + $0xa0] sm:$0xff]
        %v846 = vld [vmem:[%s824 + $0xa8] sm:$0xff]
        %v847 = vld [vmem:[%s824 + $0xb0] sm:$0xff]
        %v848 = vld [vmem:[%s824 + $0xb8] sm:$0xff]
        %v849 = vld [vmem:[%s824 + $0xc0] sm:$0xff]
        %v850 = vld [vmem:[%s824 + $0xc8] sm:$0xff]
        %v851 = vld [vmem:[%s824 + $0xd0] sm:$0xff]
        %v852 = vld [vmem:[%s824 + $0xd8] sm:$0xff]
        %v853 = vld [vmem:[%s824 + $0xe0] sm:$0xff]
        %v854 = vld [vmem:[%s824 + $0xe8] sm:$0xff]
        %v855 = vld [vmem:[%s824 + $0xf0] sm:$0xff]
        %v856 = vld [vmem:[%s824 + $0xf8] sm:$0xff]
        %v857 = vld [vmem:[%s824 + $0x100] sm:$0xff]
        %v858 = vld [vmem:[%s824 + $0x108] sm:$0xff]
        %v859 = vld [vmem:[%s824 + $0x110] sm:$0xff]
        %v860 = vld [vmem:[%s824 + $0x118] sm:$0xff]
        %v861 = vld [vmem:[%s824 + $0x120] sm:$0xff]
        %v862 = vld [vmem:[%s824 + $0x128] sm:$0xff]
        %v863 = vld [vmem:[%s824 + $0x130] sm:$0xff]
        %v864 = vld [vmem:[%s824 + $0x138] sm:$0xff]
        %v865 = vld [vmem:[%s824 + $0x140] sm:$0xff]
        %v866 = vld [vmem:[%s824 + $0x148] sm:$0xff]
        %v867 = vld [vmem:[%s824 + $0x150] sm:$0xff]
        %v868 = vld [vmem:[%s824 + $0x158] sm:$0xff]
        %v869 = vld [vmem:[%s824 + $0x160] sm:$0xff]
        %v870 = vld [vmem:[%s824 + $0x168] sm:$0xff]
        %v871 = vld [vmem:[%s824 + $0x170] sm:$0xff]
        %v872 = vld [vmem:[%s824 + $0x178] sm:$0xff]
        %v873 = vld [vmem:[%s824 + $0x180] sm:$0xff]
        %v874 = vld [vmem:[%s824 + $0x188] sm:$0xff]
        %v875 = vld [vmem:[%s824 + $0x190] sm:$0xff]
        %v876 = vld [vmem:[%s824 + $0x198] sm:$0xff]
        %v877 = vld [vmem:[%s824 + $0x1a0] sm:$0xff]
        %v878 = vld [vmem:[%s824 + $0x1a8] sm:$0xff]
        %v879 = vld [vmem:[%s824 + $0x1b0] sm:$0xff]
        %v880 = vld [vmem:[%s824 + $0x1b8] sm:$0xff]
        %v881 = vld [vmem:[%s824 + $0x1c0] sm:$0xff]
        %v882 = vld [vmem:[%s824 + $0x1c8] sm:$0xff]
        %v883 = vld [vmem:[%s824 + $0x1d0] sm:$0xff]
        %v884 = vld [vmem:[%s824 + $0x1d8] sm:$0xff]
        %v885 = vld [vmem:[%s824 + $0x1e0] sm:$0xff]
        %v886 = vld [vmem:[%s824 + $0x1e8] sm:$0xff]
        %v887 = vld [vmem:[%s824 + $0x1f0] sm:$0xff]
        %v888 = vld [vmem:[%s824 + $0x1f8] sm:$0xff]
        %v921 = vunpack.c.l.b16 %v462
        %v922 = vunpack.c.h.b16 %v462
        %v923 = vunpack.c.l.b16 %v463
        %v924 = vunpack.c.h.b16 %v463
        %v925 = vunpack.c.l.b16 %v464
        %v926 = vunpack.c.h.b16 %v464
        %v927 = vunpack.c.l.b16 %v465
        %v928 = vunpack.c.h.b16 %v465
        %v929 = vunpack.c.l.b16 %v466
        %v930 = vunpack.c.h.b16 %v466
        %v931 = vunpack.c.l.b16 %v467
        %v932 = vunpack.c.h.b16 %v467
        %v933 = vunpack.c.l.b16 %v468
        %v934 = vunpack.c.h.b16 %v468
        %v935 = vunpack.c.l.b16 %v469
        %v936 = vunpack.c.h.b16 %v469
        %v937 = vunpack.c.l.b16 %v470
        %v938 = vunpack.c.h.b16 %v470
        %v939 = vunpack.c.l.b16 %v471
        %v940 = vunpack.c.h.b16 %v471
        %v941 = vunpack.c.l.b16 %v472
        %v942 = vunpack.c.h.b16 %v472
        %v943 = vunpack.c.l.b16 %v473
        %v944 = vunpack.c.h.b16 %v473
        %v945 = vunpack.c.l.b16 %v474
        %v946 = vunpack.c.h.b16 %v474
        %v947 = vunpack.c.l.b16 %v475
        %v948 = vunpack.c.h.b16 %v475
        %v949 = vunpack.c.l.b16 %v476
        %v950 = vunpack.c.h.b16 %v476
        %v951 = vunpack.c.l.b16 %v477
        %v952 = vunpack.c.h.b16 %v477
        %v953 = vunpack.c.l.b16 %v478
        %v954 = vunpack.c.h.b16 %v478
        %v955 = vunpack.c.l.b16 %v479
        %v956 = vunpack.c.h.b16 %v479
        %v957 = vunpack.c.l.b16 %v480
        %v958 = vunpack.c.h.b16 %v480
        %v959 = vunpack.c.l.b16 %v481
        %v960 = vunpack.c.h.b16 %v481
        %v961 = vunpack.c.l.b16 %v482
        %v962 = vunpack.c.h.b16 %v482
        %v963 = vunpack.c.l.b16 %v483
        %v964 = vunpack.c.h.b16 %v483
        %v965 = vunpack.c.l.b16 %v484
        %v966 = vunpack.c.h.b16 %v484
        %v967 = vunpack.c.l.b16 %v485
        %v968 = vunpack.c.h.b16 %v485
        %v969 = vunpack.c.l.b16 %v486
        %v970 = vunpack.c.h.b16 %v486
        %v971 = vunpack.c.l.b16 %v487
        %v972 = vunpack.c.h.b16 %v487
        %v973 = vunpack.c.l.b16 %v488
        %v974 = vunpack.c.h.b16 %v488
        %v975 = vunpack.c.l.b16 %v489
        %v976 = vunpack.c.h.b16 %v489
        %v977 = vunpack.c.l.b16 %v490
        %v978 = vunpack.c.h.b16 %v490
        %v979 = vunpack.c.l.b16 %v491
        %v980 = vunpack.c.h.b16 %v491
        %v981 = vunpack.c.l.b16 %v492
        %v982 = vunpack.c.h.b16 %v492
        %v983 = vunpack.c.l.b16 %v493
        %v984 = vunpack.c.h.b16 %v493
        %v985 = vpack.c.b16 %v925, %v921
        %v986 = vpack.c.b16 %v926, %v922
        %v987 = vpack.c.b16 %v927, %v923
        %v988 = vpack.c.b16 %v928, %v924
        %v989 = vpack.c.b16 %v933, %v929
        %v990 = vpack.c.b16 %v934, %v930
        %v991 = vpack.c.b16 %v935, %v931
        %v992 = vpack.c.b16 %v936, %v932
        %v993 = vpack.c.b16 %v941, %v937
        %v994 = vpack.c.b16 %v942, %v938
        %v995 = vpack.c.b16 %v943, %v939
        %v996 = vpack.c.b16 %v944, %v940
        %v997 = vpack.c.b16 %v949, %v945
        %v998 = vpack.c.b16 %v950, %v946
        %v999 = vpack.c.b16 %v951, %v947
        %v1000 = vpack.c.b16 %v952, %v948
        %v1001 = vpack.c.b16 %v957, %v953
        %v1002 = vpack.c.b16 %v958, %v954
        %v1003 = vpack.c.b16 %v959, %v955
        %v1004 = vpack.c.b16 %v960, %v956
        %v1005 = vpack.c.b16 %v965, %v961
        %v1006 = vpack.c.b16 %v966, %v962
        %v1007 = vpack.c.b16 %v967, %v963
        %v1008 = vpack.c.b16 %v968, %v964
        %v1009 = vpack.c.b16 %v973, %v969
        %v1010 = vpack.c.b16 %v974, %v970
        %v1011 = vpack.c.b16 %v975, %v971
        %v1012 = vpack.c.b16 %v976, %v972
        %v1013 = vpack.c.b16 %v981, %v977
        %v1014 = vpack.c.b16 %v982, %v978
        %v1015 = vpack.c.b16 %v983, %v979
        %v1016 = vpack.c.b16 %v984, %v980
        %v1113 = vunpack.c.l.b16 %v627
        %v1114 = vunpack.c.h.b16 %v627
        %v1115 = vunpack.c.l.b16 %v628
        %v1116 = vunpack.c.h.b16 %v628
        %v1117 = vunpack.c.l.b16 %v629
        %v1118 = vunpack.c.h.b16 %v629
        %v1119 = vunpack.c.l.b16 %v630
        %v1120 = vunpack.c.h.b16 %v630
        %v1121 = vunpack.c.l.b16 %v631
        %v1122 = vunpack.c.h.b16 %v631
        %v1123 = vunpack.c.l.b16 %v632
        %v1124 = vunpack.c.h.b16 %v632
        %v1125 = vunpack.c.l.b16 %v633
        %v1126 = vunpack.c.h.b16 %v633
        %v1127 = vunpack.c.l.b16 %v634
        %v1128 = vunpack.c.h.b16 %v634
        %v1129 = vunpack.c.l.b16 %v635
        %v1130 = vunpack.c.h.b16 %v635
        %v1131 = vunpack.c.l.b16 %v636
        %v1132 = vunpack.c.h.b16 %v636
        %v1133 = vunpack.c.l.b16 %v637
        %v1134 = vunpack.c.h.b16 %v637
        %v1135 = vunpack.c.l.b16 %v638
        %v1136 = vunpack.c.h.b16 %v638
        %v1137 = vunpack.c.l.b16 %v639
        %v1138 = vunpack.c.h.b16 %v639
        %v1139 = vunpack.c.l.b16 %v640
        %v1140 = vunpack.c.h.b16 %v640
        %v1141 = vunpack.c.l.b16 %v641
        %v1142 = vunpack.c.h.b16 %v641
        %v1143 = vunpack.c.l.b16 %v642
        %v1144 = vunpack.c.h.b16 %v642
        %v1145 = vunpack.c.l.b16 %v643
        %v1146 = vunpack.c.h.b16 %v643
        %v1147 = vunpack.c.l.b16 %v644
        %v1148 = vunpack.c.h.b16 %v644
        %v1149 = vunpack.c.l.b16 %v645
        %v1150 = vunpack.c.h.b16 %v645
        %v1151 = vunpack.c.l.b16 %v646
        %v1152 = vunpack.c.h.b16 %v646
        %v1153 = vunpack.c.l.b16 %v647
        %v1154 = vunpack.c.h.b16 %v647
        %v1155 = vunpack.c.l.b16 %v648
        %v1156 = vunpack.c.h.b16 %v648
        %v1157 = vunpack.c.l.b16 %v649
        %v1158 = vunpack.c.h.b16 %v649
        %v1159 = vunpack.c.l.b16 %v650
        %v1160 = vunpack.c.h.b16 %v650
        %v1161 = vunpack.c.l.b16 %v651
        %v1162 = vunpack.c.h.b16 %v651
        %v1163 = vunpack.c.l.b16 %v652
        %v1164 = vunpack.c.h.b16 %v652
        %v1165 = vunpack.c.l.b16 %v653
        %v1166 = vunpack.c.h.b16 %v653
        %v1167 = vunpack.c.l.b16 %v654
        %v1168 = vunpack.c.h.b16 %v654
        %v1169 = vunpack.c.l.b16 %v655
        %v1170 = vunpack.c.h.b16 %v655
        %v1171 = vunpack.c.l.b16 %v656
        %v1172 = vunpack.c.h.b16 %v656
        %v1173 = vunpack.c.l.b16 %v657
        %v1174 = vunpack.c.h.b16 %v657
        %v1175 = vunpack.c.l.b16 %v658
        %v1176 = vunpack.c.h.b16 %v658
        %v1177 = vunpack.c.l.b16 %v659
        %v1178 = vunpack.c.h.b16 %v659
        %v1179 = vunpack.c.l.b16 %v660
        %v1180 = vunpack.c.h.b16 %v660
        %v1181 = vunpack.c.l.b16 %v661
        %v1182 = vunpack.c.h.b16 %v661
        %v1183 = vunpack.c.l.b16 %v662
        %v1184 = vunpack.c.h.b16 %v662
        %v1185 = vunpack.c.l.b16 %v663
        %v1186 = vunpack.c.h.b16 %v663
        %v1187 = vunpack.c.l.b16 %v664
        %v1188 = vunpack.c.h.b16 %v664
        %v1189 = vunpack.c.l.b16 %v665
        %v1190 = vunpack.c.h.b16 %v665
        %v1191 = vunpack.c.l.b16 %v666
        %v1192 = vunpack.c.h.b16 %v666
        %v1193 = vunpack.c.l.b16 %v667
        %v1194 = vunpack.c.h.b16 %v667
        %v1195 = vunpack.c.l.b16 %v668
        %v1196 = vunpack.c.h.b16 %v668
        %v1197 = vunpack.c.l.b16 %v669
        %v1198 = vunpack.c.h.b16 %v669
        %v1199 = vunpack.c.l.b16 %v670
        %v1200 = vunpack.c.h.b16 %v670
        %v1201 = vunpack.c.l.b16 %v671
        %v1202 = vunpack.c.h.b16 %v671
        %v1203 = vunpack.c.l.b16 %v672
        %v1204 = vunpack.c.h.b16 %v672
        %v1205 = vunpack.c.l.b16 %v673
        %v1206 = vunpack.c.h.b16 %v673
        %v1207 = vunpack.c.l.b16 %v674
        %v1208 = vunpack.c.h.b16 %v674
        %v1209 = vunpack.c.l.b16 %v675
        %v1210 = vunpack.c.h.b16 %v675
        %v1211 = vunpack.c.l.b16 %v676
        %v1212 = vunpack.c.h.b16 %v676
        %v1213 = vunpack.c.l.b16 %v677
        %v1214 = vunpack.c.h.b16 %v677
        %v1215 = vunpack.c.l.b16 %v678
        %v1216 = vunpack.c.h.b16 %v678
        %v1217 = vunpack.c.l.b16 %v679
        %v1218 = vunpack.c.h.b16 %v679
        %v1219 = vunpack.c.l.b16 %v680
        %v1220 = vunpack.c.h.b16 %v680
        %v1221 = vunpack.c.l.b16 %v681
        %v1222 = vunpack.c.h.b16 %v681
        %v1223 = vunpack.c.l.b16 %v682
        %v1224 = vunpack.c.h.b16 %v682
        %v1225 = vunpack.c.l.b16 %v683
        %v1226 = vunpack.c.h.b16 %v683
        %v1227 = vunpack.c.l.b16 %v684
        %v1228 = vunpack.c.h.b16 %v684
        %v1229 = vunpack.c.l.b16 %v685
        %v1230 = vunpack.c.h.b16 %v685
        %v1231 = vunpack.c.l.b16 %v686
        %v1232 = vunpack.c.h.b16 %v686
        %v1233 = vunpack.c.l.b16 %v687
        %v1234 = vunpack.c.h.b16 %v687
        %v1235 = vunpack.c.l.b16 %v688
        %v1236 = vunpack.c.h.b16 %v688
        %v1237 = vunpack.c.l.b16 %v689
        %v1238 = vunpack.c.h.b16 %v689
        %v1239 = vunpack.c.l.b16 %v690
        %v1240 = vunpack.c.h.b16 %v690
        %v1241 = vpack.c.b16 %v1117, %v1113
        %v1242 = vpack.c.b16 %v1118, %v1114
        %v1243 = vpack.c.b16 %v1119, %v1115
        %v1244 = vpack.c.b16 %v1120, %v1116
        %v1245 = vpack.c.b16 %v1125, %v1121
        %v1246 = vpack.c.b16 %v1126, %v1122
        %v1247 = vpack.c.b16 %v1127, %v1123
        %v1248 = vpack.c.b16 %v1128, %v1124
        %v1249 = vpack.c.b16 %v1133, %v1129
        %v1250 = vpack.c.b16 %v1134, %v1130
        %v1251 = vpack.c.b16 %v1135, %v1131
        %v1252 = vpack.c.b16 %v1136, %v1132
        %v1253 = vpack.c.b16 %v1141, %v1137
        %v1254 = vpack.c.b16 %v1142, %v1138
        %v1255 = vpack.c.b16 %v1143, %v1139
        %v1256 = vpack.c.b16 %v1144, %v1140
        %v1257 = vpack.c.b16 %v1149, %v1145
        %v1258 = vpack.c.b16 %v1150, %v1146
        %v1259 = vpack.c.b16 %v1151, %v1147
        %v1260 = vpack.c.b16 %v1152, %v1148
        %v1261 = vpack.c.b16 %v1157, %v1153
        %v1262 = vpack.c.b16 %v1158, %v1154
        %v1263 = vpack.c.b16 %v1159, %v1155
        %v1264 = vpack.c.b16 %v1160, %v1156
        %v1265 = vpack.c.b16 %v1165, %v1161
        %v1266 = vpack.c.b16 %v1166, %v1162
        %v1267 = vpack.c.b16 %v1167, %v1163
        %v1268 = vpack.c.b16 %v1168, %v1164
        %v1269 = vpack.c.b16 %v1173, %v1169
        %v1270 = vpack.c.b16 %v1174, %v1170
        %v1271 = vpack.c.b16 %v1175, %v1171
        %v1272 = vpack.c.b16 %v1176, %v1172
        %v1273 = vpack.c.b16 %v1181, %v1177
        %v1274 = vpack.c.b16 %v1182, %v1178
        %v1275 = vpack.c.b16 %v1183, %v1179
        %v1276 = vpack.c.b16 %v1184, %v1180
        %v1277 = vpack.c.b16 %v1189, %v1185
        %v1278 = vpack.c.b16 %v1190, %v1186
        %v1279 = vpack.c.b16 %v1191, %v1187
        %v1280 = vpack.c.b16 %v1192, %v1188
        %v1281 = vpack.c.b16 %v1197, %v1193
        %v1282 = vpack.c.b16 %v1198, %v1194
        %v1283 = vpack.c.b16 %v1199, %v1195
        %v1284 = vpack.c.b16 %v1200, %v1196
        %v1285 = vpack.c.b16 %v1205, %v1201
        %v1286 = vpack.c.b16 %v1206, %v1202
        %v1287 = vpack.c.b16 %v1207, %v1203
        %v1288 = vpack.c.b16 %v1208, %v1204
        %v1289 = vpack.c.b16 %v1213, %v1209
        %v1290 = vpack.c.b16 %v1214, %v1210
        %v1291 = vpack.c.b16 %v1215, %v1211
        %v1292 = vpack.c.b16 %v1216, %v1212
        %v1293 = vpack.c.b16 %v1221, %v1217
        %v1294 = vpack.c.b16 %v1222, %v1218
        %v1295 = vpack.c.b16 %v1223, %v1219
        %v1296 = vpack.c.b16 %v1224, %v1220
        %v1297 = vpack.c.b16 %v1229, %v1225
        %v1298 = vpack.c.b16 %v1230, %v1226
        %v1299 = vpack.c.b16 %v1231, %v1227
        %v1300 = vpack.c.b16 %v1232, %v1228
        %v1301 = vpack.c.b16 %v1237, %v1233
        %v1302 = vpack.c.b16 %v1238, %v1234
        %v1303 = vpack.c.b16 %v1239, %v1235
        %v1304 = vpack.c.b16 %v1240, %v1236
        %1369 = vmatprep.subr.bf16.mxu0 %v1242
        %1370 = vmatpush1.bf16.xpose.msra.mxu0 %v1241
        %1371 = vmatprep.subr.bf16.mxu0 %v1246
        %1372 = vmatpush1.bf16.xpose.msra.mxu0 %v1245
        %1373 = vmatprep.subr.bf16.mxu0 %v1250
        %1374 = vmatpush1.bf16.xpose.msra.mxu0 %v1249
        %1375 = vmatprep.subr.bf16.mxu0 %v1254
        %1376 = vmatpush1.bf16.xpose.msra.mxu0 %v1253
        %1377 = vmatprep.subr.bf16.mxu0 %v1258
        %1378 = vmatpush1.bf16.xpose.msra.mxu0 %v1257
        %1379 = vmatprep.subr.bf16.mxu0 %v1262
        %1380 = vmatpush1.bf16.xpose.msra.mxu0 %v1261
        %1381 = vmatprep.subr.bf16.mxu0 %v1266
        %1382 = vmatpush1.bf16.xpose.msra.mxu0 %v1265
        %1383 = vmatprep.subr.bf16.mxu0 %v1270
        %1384 = vmatpush1.bf16.xpose.msra.mxu0 %v1269
        %1385 = vmatprep.subr.bf16.mxu0 %v1274
        %1386 = vmatpush1.bf16.xpose.msra.mxu0 %v1273
        %1387 = vmatprep.subr.bf16.mxu0 %v1278
        %1388 = vmatpush1.bf16.xpose.msra.mxu0 %v1277
        %1389 = vmatprep.subr.bf16.mxu0 %v1282
        %1390 = vmatpush1.bf16.xpose.msra.mxu0 %v1281
        %1391 = vmatprep.subr.bf16.mxu0 %v1286
        %1392 = vmatpush1.bf16.xpose.msra.mxu0 %v1285
        %1393 = vmatprep.subr.bf16.mxu0 %v1290
        %1394 = vmatpush1.bf16.xpose.msra.mxu0 %v1289
        %1395 = vmatprep.subr.bf16.mxu0 %v1294
        %1396 = vmatpush1.bf16.xpose.msra.mxu0 %v1293
        %1397 = vmatprep.subr.bf16.mxu0 %v1298
        %1398 = vmatpush1.bf16.xpose.msra.mxu0 %v1297
        %1399 = vmatprep.subr.bf16.mxu0 %v1302
        %1400 = vmatpush1.bf16.xpose.msra.mxu0 %v1301
        %1401 = vmatprep.mubr.bf16.mxu0 %v986
        %1402 = vmatmul.mubr.bf16.gmra.mrb[0].mxu0 %v985
        %v1403 = vpop.f32.mrb[0].mxu0
        %v1404 = vadd.f32 0.0, %v1403
        %v1405 = vpop.f32.mrb[0].mxu0
        %v1406 = vadd.f32 0.0, %v1405
        %v1407 = vpop.f32.mrb[0].mxu0
        %v1408 = vadd.f32 0.0, %v1407
        %v1409 = vpop.f32.mrb[0].mxu0
        %v1410 = vadd.f32 0.0, %v1409
        %1411 = vmatprep.mubr.bf16.mxu0 %v990
        %1412 = vmatmul.mubr.bf16.gmra.mrb[0].mxu0 %v989
        %v1413 = vpop.f32.mrb[0].mxu0
        %v1414 = vadd.f32 0.0, %v1413
        %v1415 = vpop.f32.mrb[0].mxu0
        %v1416 = vadd.f32 0.0, %v1415
        %v1417 = vpop.f32.mrb[0].mxu0
        %v1418 = vadd.f32 0.0, %v1417
        %v1419 = vpop.f32.mrb[0].mxu0
        %v1420 = vadd.f32 0.0, %v1419
        %1421 = vmatprep.mubr.bf16.mxu0 %v994
        %1422 = vmatmul.mubr.bf16.gmra.mrb[0].mxu0 %v993
        %v1423 = vpop.f32.mrb[0].mxu0
        %v1424 = vadd.f32 0.0, %v1423
        %v1425 = vpop.f32.mrb[0].mxu0
        %v1426 = vadd.f32 0.0, %v1425
        %v1427 = vpop.f32.mrb[0].mxu0
        %v1428 = vadd.f32 0.0, %v1427
        %v1429 = vpop.f32.mrb[0].mxu0
        %v1430 = vadd.f32 0.0, %v1429
        %1431 = vmatprep.mubr.bf16.mxu0 %v998
        %1432 = vmatmul.mubr.bf16.gmra.mrb[0].mxu0 %v997
        %v1433 = vpop.f32.mrb[0].mxu0
        %v1434 = vadd.f32 0.0, %v1433
        %v1435 = vpop.f32.mrb[0].mxu0
        %v1436 = vadd.f32 0.0, %v1435
        %v1437 = vpop.f32.mrb[0].mxu0
        %v1438 = vadd.f32 0.0, %v1437
        %v1439 = vpop.f32.mrb[0].mxu0
        %v1440 = vadd.f32 0.0, %v1439
        %1441 = vmatprep.mubr.bf16.mxu0 %v1002
        %1442 = vmatmul.mubr.bf16.gmra.mrb[0].mxu0 %v1001
        %v1443 = vpop.f32.mrb[0].mxu0
        %v1444 = vadd.f32 0.0, %v1443
        %v1445 = vpop.f32.mrb[0].mxu0
        %v1446 = vadd.f32 0.0, %v1445
        %v1447 = vpop.f32.mrb[0].mxu0
        %v1448 = vadd.f32 0.0, %v1447
        %v1449 = vpop.f32.mrb[0].mxu0
        %v1450 = vadd.f32 0.0, %v1449
        %1451 = vmatprep.mubr.bf16.mxu0 %v1006
        %1452 = vmatmul.mubr.bf16.gmra.mrb[0].mxu0 %v1005
        %v1453 = vpop.f32.mrb[0].mxu0
        %v1454 = vadd.f32 0.0, %v1453
        %v1455 = vpop.f32.mrb[0].mxu0
        %v1456 = vadd.f32 0.0, %v1455
        %v1457 = vpop.f32.mrb[0].mxu0
        %v1458 = vadd.f32 0.0, %v1457
        %v1459 = vpop.f32.mrb[0].mxu0
        %v1460 = vadd.f32 0.0, %v1459
        %1461 = vmatprep.mubr.bf16.mxu0 %v1010
        %1462 = vmatmul.mubr.bf16.gmra.mrb[0].mxu0 %v1009
        %v1463 = vpop.f32.mrb[0].mxu0
        %v1464 = vadd.f32 0.0, %v1463
        %v1465 = vpop.f32.mrb[0].mxu0
        %v1466 = vadd.f32 0.0, %v1465
        %v1467 = vpop.f32.mrb[0].mxu0
        %v1468 = vadd.f32 0.0, %v1467
        %v1469 = vpop.f32.mrb[0].mxu0
        %v1470 = vadd.f32 0.0, %v1469
        %1471 = vmatprep.mubr.bf16.mxu0 %v1014
        %1472 = vmatmul.mubr.bf16.gmra.mrb[0].mxu0 %v1013
        %v1473 = vpop.f32.mrb[0].mxu0
        %v1474 = vadd.f32 0.0, %v1473
        %v1475 = vpop.f32.mrb[0].mxu0
        %v1476 = vadd.f32 0.0, %v1475
        %v1477 = vpop.f32.mrb[0].mxu0
        %v1478 = vadd.f32 0.0, %v1477
        %v1479 = vpop.f32.mrb[0].mxu0
        %v1480 = vadd.f32 0.0, %v1479
        %1481 = vdwg.mxu0
        %1482 = vmatprep.subr.bf16.mxu0 %v1244
        %1483 = vmatpush1.bf16.xpose.msra.mxu0 %v1243
        %1484 = vmatprep.subr.bf16.mxu0 %v1248
        %1485 = vmatpush1.bf16.xpose.msra.mxu0 %v1247
        %1486 = vmatprep.subr.bf16.mxu0 %v1252
        %1487 = vmatpush1.bf16.xpose.msra.mxu0 %v1251
        %1488 = vmatprep.subr.bf16.mxu0 %v1256
        %1489 = vmatpush1.bf16.xpose.msra.mxu0 %v1255
        %1490 = vmatprep.subr.bf16.mxu0 %v1260
        %1491 = vmatpush1.bf16.xpose.msra.mxu0 %v1259
        %1492 = vmatprep.subr.bf16.mxu0 %v1264
        %1493 = vmatpush1.bf16.xpose.msra.mxu0 %v1263
        %1494 = vmatprep.subr.bf16.mxu0 %v1268
        %1495 = vmatpush1.bf16.xpose.msra.mxu0 %v1267
        %1496 = vmatprep.subr.bf16.mxu0 %v1272
        %1497 = vmatpush1.bf16.xpose.msra.mxu0 %v1271
        %1498 = vmatprep.subr.bf16.mxu0 %v1276
        %1499 = vmatpush1.bf16.xpose.msra.mxu0 %v1275
        %1500 = vmatprep.subr.bf16.mxu0 %v1280
        %1501 = vmatpush1.bf16.xpose.msra.mxu0 %v1279
        %1502 = vmatprep.subr.bf16.mxu0 %v1284
        %1503 = vmatpush1.bf16.xpose.msra.mxu0 %v1283
        %1504 = vmatprep.subr.bf16.mxu0 %v1288
        %1505 = vmatpush1.bf16.xpose.msra.mxu0 %v1287
        %1506 = vmatprep.subr.bf16.mxu0 %v1292
        %1507 = vmatpush1.bf16.xpose.msra.mxu0 %v1291
        %1508 = vmatprep.subr.bf16.mxu0 %v1296
        %1509 = vmatpush1.bf16.xpose.msra.mxu0 %v1295
        %1510 = vmatprep.subr.bf16.mxu0 %v1300
        %1511 = vmatpush1.bf16.xpose.msra.mxu0 %v1299
        %1512 = vmatprep.subr.bf16.mxu0 %v1304
        %1513 = vmatpush1.bf16.xpose.msra.mxu0 %v1303
        %1514 = vmatprep.mubr.bf16.mxu0 %v988
        %1515 = vmatmul.mubr.bf16.gmra.mrb[0].mxu0 %v987
        %v1516 = vpop.f32.mrb[0].mxu0
        %v1517 = vadd.f32 %v1404, %v1516
        %v1518 = vpop.f32.mrb[0].mxu0
        %v1519 = vadd.f32 %v1406, %v1518
        %v1520 = vpop.f32.mrb[0].mxu0
        %v1521 = vadd.f32 %v1408, %v1520
        %v1522 = vpop.f32.mrb[0].mxu0
        %v1523 = vadd.f32 %v1410, %v1522
        %1524 = vmatprep.mubr.bf16.mxu0 %v992
        %1525 = vmatmul.mubr.bf16.gmra.mrb[0].mxu0 %v991
        %v1526 = vpop.f32.mrb[0].mxu0
        %v1527 = vadd.f32 %v1414, %v1526
        %v1528 = vpop.f32.mrb[0].mxu0
        %v1529 = vadd.f32 %v1416, %v1528
        %v1530 = vpop.f32.mrb[0].mxu0
        %v1531 = vadd.f32 %v1418, %v1530
        %v1532 = vpop.f32.mrb[0].mxu0
        %v1533 = vadd.f32 %v1420, %v1532
        %1534 = vmatprep.mubr.bf16.mxu0 %v996
        %1535 = vmatmul.mubr.bf16.gmra.mrb[0].mxu0 %v995
        %v1536 = vpop.f32.mrb[0].mxu0
        %v1537 = vadd.f32 %v1424, %v1536
        %v1538 = vpop.f32.mrb[0].mxu0
        %v1539 = vadd.f32 %v1426, %v1538
        %v1540 = vpop.f32.mrb[0].mxu0
        %v1541 = vadd.f32 %v1428, %v1540
        %v1542 = vpop.f32.mrb[0].mxu0
        %v1543 = vadd.f32 %v1430, %v1542
        %1544 = vmatprep.mubr.bf16.mxu0 %v1000
        %1545 = vmatmul.mubr.bf16.gmra.mrb[0].mxu0 %v999
        %v1546 = vpop.f32.mrb[0].mxu0
        %v1547 = vadd.f32 %v1434, %v1546
        %v1548 = vpop.f32.mrb[0].mxu0
        %v1549 = vadd.f32 %v1436, %v1548
        %v1550 = vpop.f32.mrb[0].mxu0
        %v1551 = vadd.f32 %v1438, %v1550
        %v1552 = vpop.f32.mrb[0].mxu0
        %v1553 = vadd.f32 %v1440, %v1552
        %1554 = vmatprep.mubr.bf16.mxu0 %v1004
        %1555 = vmatmul.mubr.bf16.gmra.mrb[0].mxu0 %v1003
        %v1556 = vpop.f32.mrb[0].mxu0
        %v1557 = vadd.f32 %v1444, %v1556
        %v1558 = vpop.f32.mrb[0].mxu0
        %v1559 = vadd.f32 %v1446, %v1558
        %v1560 = vpop.f32.mrb[0].mxu0
        %v1561 = vadd.f32 %v1448, %v1560
        %v1562 = vpop.f32.mrb[0].mxu0
        %v1563 = vadd.f32 %v1450, %v1562
        %1564 = vmatprep.mubr.bf16.mxu0 %v1008
        %1565 = vmatmul.mubr.bf16.gmra.mrb[0].mxu0 %v1007
        %v1566 = vpop.f32.mrb[0].mxu0
        %v1567 = vadd.f32 %v1454, %v1566
        %v1568 = vpop.f32.mrb[0].mxu0
        %v1569 = vadd.f32 %v1456, %v1568
        %v1570 = vpop.f32.mrb[0].mxu0
        %v1571 = vadd.f32 %v1458, %v1570
        %v1572 = vpop.f32.mrb[0].mxu0
        %v1573 = vadd.f32 %v1460, %v1572
        %1574 = vmatprep.mubr.bf16.mxu0 %v1012
        %1575 = vmatmul.mubr.bf16.gmra.mrb[0].mxu0 %v1011
        %v1576 = vpop.f32.mrb[0].mxu0
        %v1577 = vadd.f32 %v1464, %v1576
        %v1578 = vpop.f32.mrb[0].mxu0
        %v1579 = vadd.f32 %v1466, %v1578
        %v1580 = vpop.f32.mrb[0].mxu0
        %v1581 = vadd.f32 %v1468, %v1580
        %v1582 = vpop.f32.mrb[0].mxu0
        %v1583 = vadd.f32 %v1470, %v1582
        %1584 = vmatprep.mubr.bf16.mxu0 %v1016
        %1585 = vmatmul.mubr.bf16.gmra.mrb[0].mxu0 %v1015
        %v1586 = vpop.f32.mrb[0].mxu0
        %v1587 = vadd.f32 %v1474, %v1586
        %v1588 = vpop.f32.mrb[0].mxu0
        %v1589 = vadd.f32 %v1476, %v1588
        %v1590 = vpop.f32.mrb[0].mxu0
        %v1591 = vadd.f32 %v1478, %v1590
        %v1592 = vpop.f32.mrb[0].mxu0
        %v1593 = vadd.f32 %v1480, %v1592
        %1594 = vdwg.mxu0
        %v1659 = vunpack.c.l.b16 %v494
        %v1660 = vunpack.c.h.b16 %v494
        %v1661 = vunpack.c.l.b16 %v495
        %v1662 = vunpack.c.h.b16 %v495
        %v1663 = vunpack.c.l.b16 %v496
        %v1664 = vunpack.c.h.b16 %v496
        %v1665 = vunpack.c.l.b16 %v497
        %v1666 = vunpack.c.h.b16 %v497
        %v1667 = vunpack.c.l.b16 %v498
        %v1668 = vunpack.c.h.b16 %v498
        %v1669 = vunpack.c.l.b16 %v499
        %v1670 = vunpack.c.h.b16 %v499
        %v1671 = vunpack.c.l.b16 %v500
        %v1672 = vunpack.c.h.b16 %v500
        %v1673 = vunpack.c.l.b16 %v501
        %v1674 = vunpack.c.h.b16 %v501
        %v1675 = vunpack.c.l.b16 %v502
        %v1676 = vunpack.c.h.b16 %v502
        %v1677 = vunpack.c.l.b16 %v503
        %v1678 = vunpack.c.h.b16 %v503
        %v1679 = vunpack.c.l.b16 %v504
        %v1680 = vunpack.c.h.b16 %v504
        %v1681 = vunpack.c.l.b16 %v505
        %v1682 = vunpack.c.h.b16 %v505
        %v1683 = vunpack.c.l.b16 %v506
        %v1684 = vunpack.c.h.b16 %v506
        %v1685 = vunpack.c.l.b16 %v507
        %v1686 = vunpack.c.h.b16 %v507
        %v1687 = vunpack.c.l.b16 %v508
        %v1688 = vunpack.c.h.b16 %v508
        %v1689 = vunpack.c.l.b16 %v509
        %v1690 = vunpack.c.h.b16 %v509
        %v1691 = vunpack.c.l.b16 %v510
        %v1692 = vunpack.c.h.b16 %v510
        %v1693 = vunpack.c.l.b16 %v511
        %v1694 = vunpack.c.h.b16 %v511
        %v1695 = vunpack.c.l.b16 %v512
        %v1696 = vunpack.c.h.b16 %v512
        %v1697 = vunpack.c.l.b16 %v513
        %v1698 = vunpack.c.h.b16 %v513
        %v1699 = vunpack.c.l.b16 %v514
        %v1700 = vunpack.c.h.b16 %v514
        %v1701 = vunpack.c.l.b16 %v515
        %v1702 = vunpack.c.h.b16 %v515
        %v1703 = vunpack.c.l.b16 %v516
        %v1704 = vunpack.c.h.b16 %v516
        %v1705 = vunpack.c.l.b16 %v517
        %v1706 = vunpack.c.h.b16 %v517
        %v1707 = vunpack.c.l.b16 %v518
        %v1708 = vunpack.c.h.b16 %v518
        %v1709 = vunpack.c.l.b16 %v519
        %v1710 = vunpack.c.h.b16 %v519
        %v1711 = vunpack.c.l.b16 %v520
        %v1712 = vunpack.c.h.b16 %v520
        %v1713 = vunpack.c.l.b16 %v521
        %v1714 = vunpack.c.h.b16 %v521
        %v1715 = vunpack.c.l.b16 %v522
        %v1716 = vunpack.c.h.b16 %v522
        %v1717 = vunpack.c.l.b16 %v523
        %v1718 = vunpack.c.h.b16 %v523
        %v1719 = vunpack.c.l.b16 %v524
        %v1720 = vunpack.c.h.b16 %v524
        %v1721 = vunpack.c.l.b16 %v525
        %v1722 = vunpack.c.h.b16 %v525
        %v1723 = vunpack.c.l.b16 %v526
        %v1724 = vunpack.c.h.b16 %v526
        %v1725 = vunpack.c.l.b16 %v527
        %v1726 = vunpack.c.h.b16 %v527
        %v1727 = vunpack.c.l.b16 %v528
        %v1728 = vunpack.c.h.b16 %v528
        %v1729 = vunpack.c.l.b16 %v529
        %v1730 = vunpack.c.h.b16 %v529
        %v1731 = vunpack.c.l.b16 %v530
        %v1732 = vunpack.c.h.b16 %v530
        %v1733 = vunpack.c.l.b16 %v531
        %v1734 = vunpack.c.h.b16 %v531
        %v1735 = vunpack.c.l.b16 %v532
        %v1736 = vunpack.c.h.b16 %v532
        %v1737 = vunpack.c.l.b16 %v533
        %v1738 = vunpack.c.h.b16 %v533
        %v1739 = vunpack.c.l.b16 %v534
        %v1740 = vunpack.c.h.b16 %v534
        %v1741 = vunpack.c.l.b16 %v535
        %v1742 = vunpack.c.h.b16 %v535
        %v1743 = vunpack.c.l.b16 %v536
        %v1744 = vunpack.c.h.b16 %v536
        %v1745 = vunpack.c.l.b16 %v537
        %v1746 = vunpack.c.h.b16 %v537
        %v1747 = vunpack.c.l.b16 %v538
        %v1748 = vunpack.c.h.b16 %v538
        %v1749 = vunpack.c.l.b16 %v539
        %v1750 = vunpack.c.h.b16 %v539
        %v1751 = vunpack.c.l.b16 %v540
        %v1752 = vunpack.c.h.b16 %v540
        %v1753 = vunpack.c.l.b16 %v541
        %v1754 = vunpack.c.h.b16 %v541
        %v1755 = vunpack.c.l.b16 %v542
        %v1756 = vunpack.c.h.b16 %v542
        %v1757 = vunpack.c.l.b16 %v543
        %v1758 = vunpack.c.h.b16 %v543
        %v1759 = vunpack.c.l.b16 %v544
        %v1760 = vunpack.c.h.b16 %v544
        %v1761 = vunpack.c.l.b16 %v545
        %v1762 = vunpack.c.h.b16 %v545
        %v1763 = vunpack.c.l.b16 %v546
        %v1764 = vunpack.c.h.b16 %v546
        %v1765 = vunpack.c.l.b16 %v547
        %v1766 = vunpack.c.h.b16 %v547
        %v1767 = vunpack.c.l.b16 %v548
        %v1768 = vunpack.c.h.b16 %v548
        %v1769 = vunpack.c.l.b16 %v549
        %v1770 = vunpack.c.h.b16 %v549
        %v1771 = vunpack.c.l.b16 %v550
        %v1772 = vunpack.c.h.b16 %v550
        %v1773 = vunpack.c.l.b16 %v551
        %v1774 = vunpack.c.h.b16 %v551
        %v1775 = vunpack.c.l.b16 %v552
        %v1776 = vunpack.c.h.b16 %v552
        %v1777 = vunpack.c.l.b16 %v553
        %v1778 = vunpack.c.h.b16 %v553
        %v1779 = vunpack.c.l.b16 %v554
        %v1780 = vunpack.c.h.b16 %v554
        %v1781 = vunpack.c.l.b16 %v555
        %v1782 = vunpack.c.h.b16 %v555
        %v1783 = vunpack.c.l.b16 %v556
        %v1784 = vunpack.c.h.b16 %v556
        %v1785 = vunpack.c.l.b16 %v557
        %v1786 = vunpack.c.h.b16 %v557
        %v1787 = vpack.c.b16 %v1663, %v1659
        %v1788 = vpack.c.b16 %v1664, %v1660
        %v1789 = vpack.c.b16 %v1665, %v1661
        %v1790 = vpack.c.b16 %v1666, %v1662
        %v1791 = vpack.c.b16 %v1671, %v1667
        %v1792 = vpack.c.b16 %v1672, %v1668
        %v1793 = vpack.c.b16 %v1673, %v1669
        %v1794 = vpack.c.b16 %v1674, %v1670
        %v1795 = vpack.c.b16 %v1679, %v1675
        %v1796 = vpack.c.b16 %v1680, %v1676
        %v1797 = vpack.c.b16 %v1681, %v1677
        %v1798 = vpack.c.b16 %v1682, %v1678
        %v1799 = vpack.c.b16 %v1687, %v1683
        %v1800 = vpack.c.b16 %v1688, %v1684
        %v1801 = vpack.c.b16 %v1689, %v1685
        %v1802 = vpack.c.b16 %v1690, %v1686
        %v1803 = vpack.c.b16 %v1695, %v1691
        %v1804 = vpack.c.b16 %v1696, %v1692
        %v1805 = vpack.c.b16 %v1697, %v1693
        %v1806 = vpack.c.b16 %v1698, %v1694
        %v1807 = vpack.c.b16 %v1703, %v1699
        %v1808 = vpack.c.b16 %v1704, %v1700
        %v1809 = vpack.c.b16 %v1705, %v1701
        %v1810 = vpack.c.b16 %v1706, %v1702
        %v1811 = vpack.c.b16 %v1711, %v1707
        %v1812 = vpack.c.b16 %v1712, %v1708
        %v1813 = vpack.c.b16 %v1713, %v1709
        %v1814 = vpack.c.b16 %v1714, %v1710
        %v1815 = vpack.c.b16 %v1719, %v1715
        %v1816 = vpack.c.b16 %v1720, %v1716
        %v1817 = vpack.c.b16 %v1721, %v1717
        %v1818 = vpack.c.b16 %v1722, %v1718
        %v1819 = vpack.c.b16 %v1727, %v1723
        %v1820 = vpack.c.b16 %v1728, %v1724
        %v1821 = vpack.c.b16 %v1729, %v1725
        %v1822 = vpack.c.b16 %v1730, %v1726
        %v1823 = vpack.c.b16 %v1735, %v1731
        %v1824 = vpack.c.b16 %v1736, %v1732
        %v1825 = vpack.c.b16 %v1737, %v1733
        %v1826 = vpack.c.b16 %v1738, %v1734
        %v1827 = vpack.c.b16 %v1743, %v1739
        %v1828 = vpack.c.b16 %v1744, %v1740
        %v1829 = vpack.c.b16 %v1745, %v1741
        %v1830 = vpack.c.b16 %v1746, %v1742
        %v1831 = vpack.c.b16 %v1751, %v1747
        %v1832 = vpack.c.b16 %v1752, %v1748
        %v1833 = vpack.c.b16 %v1753, %v1749
        %v1834 = vpack.c.b16 %v1754, %v1750
        %v1835 = vpack.c.b16 %v1759, %v1755
        %v1836 = vpack.c.b16 %v1760, %v1756
        %v1837 = vpack.c.b16 %v1761, %v1757
        %v1838 = vpack.c.b16 %v1762, %v1758
        %v1839 = vpack.c.b16 %v1767, %v1763
        %v1840 = vpack.c.b16 %v1768, %v1764
        %v1841 = vpack.c.b16 %v1769, %v1765
        %v1842 = vpack.c.b16 %v1770, %v1766
        %v1843 = vpack.c.b16 %v1775, %v1771
        %v1844 = vpack.c.b16 %v1776, %v1772
        %v1845 = vpack.c.b16 %v1777, %v1773
        %v1846 = vpack.c.b16 %v1778, %v1774
        %v1847 = vpack.c.b16 %v1783, %v1779
        %v1848 = vpack.c.b16 %v1784, %v1780
        %v1849 = vpack.c.b16 %v1785, %v1781
        %v1850 = vpack.c.b16 %v1786, %v1782
        %v1979 = vunpack.c.l.b16 %v693
        %v1980 = vunpack.c.h.b16 %v693
        %v1981 = vunpack.c.l.b16 %v694
        %v1982 = vunpack.c.h.b16 %v694
        %v1983 = vunpack.c.l.b16 %v695
        %v1984 = vunpack.c.h.b16 %v695
        %v1985 = vunpack.c.l.b16 %v696
        %v1986 = vunpack.c.h.b16 %v696
        %v1987 = vunpack.c.l.b16 %v697
        %v1988 = vunpack.c.h.b16 %v697
        %v1989 = vunpack.c.l.b16 %v698
        %v1990 = vunpack.c.h.b16 %v698
        %v1991 = vunpack.c.l.b16 %v699
        %v1992 = vunpack.c.h.b16 %v699
        %v1993 = vunpack.c.l.b16 %v700
        %v1994 = vunpack.c.h.b16 %v700
        %v1995 = vunpack.c.l.b16 %v701
        %v1996 = vunpack.c.h.b16 %v701
        %v1997 = vunpack.c.l.b16 %v702
        %v1998 = vunpack.c.h.b16 %v702
        %v1999 = vunpack.c.l.b16 %v703
        %v2000 = vunpack.c.h.b16 %v703
        %v2001 = vunpack.c.l.b16 %v704
        %v2002 = vunpack.c.h.b16 %v704
        %v2003 = vunpack.c.l.b16 %v705
        %v2004 = vunpack.c.h.b16 %v705
        %v2005 = vunpack.c.l.b16 %v706
        %v2006 = vunpack.c.h.b16 %v706
        %v2007 = vunpack.c.l.b16 %v707
        %v2008 = vunpack.c.h.b16 %v707
        %v2009 = vunpack.c.l.b16 %v708
        %v2010 = vunpack.c.h.b16 %v708
        %v2011 = vunpack.c.l.b16 %v709
        %v2012 = vunpack.c.h.b16 %v709
        %v2013 = vunpack.c.l.b16 %v710
        %v2014 = vunpack.c.h.b16 %v710
        %v2015 = vunpack.c.l.b16 %v711
        %v2016 = vunpack.c.h.b16 %v711
        %v2017 = vunpack.c.l.b16 %v712
        %v2018 = vunpack.c.h.b16 %v712
        %v2019 = vunpack.c.l.b16 %v713
        %v2020 = vunpack.c.h.b16 %v713
        %v2021 = vunpack.c.l.b16 %v714
        %v2022 = vunpack.c.h.b16 %v714
        %v2023 = vunpack.c.l.b16 %v715
        %v2024 = vunpack.c.h.b16 %v715
        %v2025 = vunpack.c.l.b16 %v716
        %v2026 = vunpack.c.h.b16 %v716
        %v2027 = vunpack.c.l.b16 %v717
        %v2028 = vunpack.c.h.b16 %v717
        %v2029 = vunpack.c.l.b16 %v718
        %v2030 = vunpack.c.h.b16 %v718
        %v2031 = vunpack.c.l.b16 %v719
        %v2032 = vunpack.c.h.b16 %v719
        %v2033 = vunpack.c.l.b16 %v720
        %v2034 = vunpack.c.h.b16 %v720
        %v2035 = vunpack.c.l.b16 %v721
        %v2036 = vunpack.c.h.b16 %v721
        %v2037 = vunpack.c.l.b16 %v722
        %v2038 = vunpack.c.h.b16 %v722
        %v2039 = vunpack.c.l.b16 %v723
        %v2040 = vunpack.c.h.b16 %v723
        %v2041 = vunpack.c.l.b16 %v724
        %v2042 = vunpack.c.h.b16 %v724
        %v2043 = vunpack.c.l.b16 %v725
        %v2044 = vunpack.c.h.b16 %v725
        %v2045 = vunpack.c.l.b16 %v726
        %v2046 = vunpack.c.h.b16 %v726
        %v2047 = vunpack.c.l.b16 %v727
        %v2048 = vunpack.c.h.b16 %v727
        %v2049 = vunpack.c.l.b16 %v728
        %v2050 = vunpack.c.h.b16 %v728
        %v2051 = vunpack.c.l.b16 %v729
        %v2052 = vunpack.c.h.b16 %v729
        %v2053 = vunpack.c.l.b16 %v730
        %v2054 = vunpack.c.h.b16 %v730
        %v2055 = vunpack.c.l.b16 %v731
        %v2056 = vunpack.c.h.b16 %v731
        %v2057 = vunpack.c.l.b16 %v732
        %v2058 = vunpack.c.h.b16 %v732
        %v2059 = vunpack.c.l.b16 %v733
        %v2060 = vunpack.c.h.b16 %v733
        %v2061 = vunpack.c.l.b16 %v734
        %v2062 = vunpack.c.h.b16 %v734
        %v2063 = vunpack.c.l.b16 %v735
        %v2064 = vunpack.c.h.b16 %v735
        %v2065 = vunpack.c.l.b16 %v736
        %v2066 = vunpack.c.h.b16 %v736
        %v2067 = vunpack.c.l.b16 %v737
        %v2068 = vunpack.c.h.b16 %v737
        %v2069 = vunpack.c.l.b16 %v738
        %v2070 = vunpack.c.h.b16 %v738
        %v2071 = vunpack.c.l.b16 %v739
        %v2072 = vunpack.c.h.b16 %v739
        %v2073 = vunpack.c.l.b16 %v740
        %v2074 = vunpack.c.h.b16 %v740
        %v2075 = vunpack.c.l.b16 %v741
        %v2076 = vunpack.c.h.b16 %v741
        %v2077 = vunpack.c.l.b16 %v742
        %v2078 = vunpack.c.h.b16 %v742
        %v2079 = vunpack.c.l.b16 %v743
        %v2080 = vunpack.c.h.b16 %v743
        %v2081 = vunpack.c.l.b16 %v744
        %v2082 = vunpack.c.h.b16 %v744
        %v2083 = vunpack.c.l.b16 %v745
        %v2084 = vunpack.c.h.b16 %v745
        %v2085 = vunpack.c.l.b16 %v746
        %v2086 = vunpack.c.h.b16 %v746
        %v2087 = vunpack.c.l.b16 %v747
        %v2088 = vunpack.c.h.b16 %v747
        %v2089 = vunpack.c.l.b16 %v748
        %v2090 = vunpack.c.h.b16 %v748
        %v2091 = vunpack.c.l.b16 %v749
        %v2092 = vunpack.c.h.b16 %v749
        %v2093 = vunpack.c.l.b16 %v750
        %v2094 = vunpack.c.h.b16 %v750
        %v2095 = vunpack.c.l.b16 %v751
        %v2096 = vunpack.c.h.b16 %v751
        %v2097 = vunpack.c.l.b16 %v752
        %v2098 = vunpack.c.h.b16 %v752
        %v2099 = vunpack.c.l.b16 %v753
        %v2100 = vunpack.c.h.b16 %v753
        %v2101 = vunpack.c.l.b16 %v754
        %v2102 = vunpack.c.h.b16 %v754
        %v2103 = vunpack.c.l.b16 %v755
        %v2104 = vunpack.c.h.b16 %v755
        %v2105 = vunpack.c.l.b16 %v756
        %v2106 = vunpack.c.h.b16 %v756
        %v2107 = vpack.c.b16 %v1983, %v1979
        %v2108 = vpack.c.b16 %v1984, %v1980
        %v2109 = vpack.c.b16 %v1985, %v1981
        %v2110 = vpack.c.b16 %v1986, %v1982
        %v2111 = vpack.c.b16 %v1991, %v1987
        %v2112 = vpack.c.b16 %v1992, %v1988
        %v2113 = vpack.c.b16 %v1993, %v1989
        %v2114 = vpack.c.b16 %v1994, %v1990
        %v2115 = vpack.c.b16 %v1999, %v1995
        %v2116 = vpack.c.b16 %v2000, %v1996
        %v2117 = vpack.c.b16 %v2001, %v1997
        %v2118 = vpack.c.b16 %v2002, %v1998
        %v2119 = vpack.c.b16 %v2007, %v2003
        %v2120 = vpack.c.b16 %v2008, %v2004
        %v2121 = vpack.c.b16 %v2009, %v2005
        %v2122 = vpack.c.b16 %v2010, %v2006
        %v2123 = vpack.c.b16 %v2015, %v2011
        %v2124 = vpack.c.b16 %v2016, %v2012
        %v2125 = vpack.c.b16 %v2017, %v2013
        %v2126 = vpack.c.b16 %v2018, %v2014
        %v2127 = vpack.c.b16 %v2023, %v2019
        %v2128 = vpack.c.b16 %v2024, %v2020
        %v2129 = vpack.c.b16 %v2025, %v2021
        %v2130 = vpack.c.b16 %v2026, %v2022
        %v2131 = vpack.c.b16 %v2031, %v2027
        %v2132 = vpack.c.b16 %v2032, %v2028
        %v2133 = vpack.c.b16 %v2033, %v2029
        %v2134 = vpack.c.b16 %v2034, %v2030
        %v2135 = vpack.c.b16 %v2039, %v2035
        %v2136 = vpack.c.b16 %v2040, %v2036
        %v2137 = vpack.c.b16 %v2041, %v2037
        %v2138 = vpack.c.b16 %v2042, %v2038
        %v2139 = vpack.c.b16 %v2047, %v2043
        %v2140 = vpack.c.b16 %v2048, %v2044
        %v2141 = vpack.c.b16 %v2049, %v2045
        %v2142 = vpack.c.b16 %v2050, %v2046
        %v2143 = vpack.c.b16 %v2055, %v2051
        %v2144 = vpack.c.b16 %v2056, %v2052
        %v2145 = vpack.c.b16 %v2057, %v2053
        %v2146 = vpack.c.b16 %v2058, %v2054
        %v2147 = vpack.c.b16 %v2063, %v2059
        %v2148 = vpack.c.b16 %v2064, %v2060
        %v2149 = vpack.c.b16 %v2065, %v2061
        %v2150 = vpack.c.b16 %v2066, %v2062
        %v2151 = vpack.c.b16 %v2071, %v2067
        %v2152 = vpack.c.b16 %v2072, %v2068
        %v2153 = vpack.c.b16 %v2073, %v2069
        %v2154 = vpack.c.b16 %v2074, %v2070
        %v2155 = vpack.c.b16 %v2079, %v2075
        %v2156 = vpack.c.b16 %v2080, %v2076
        %v2157 = vpack.c.b16 %v2081, %v2077
        %v2158 = vpack.c.b16 %v2082, %v2078
        %v2159 = vpack.c.b16 %v2087, %v2083
        %v2160 = vpack.c.b16 %v2088, %v2084
        %v2161 = vpack.c.b16 %v2089, %v2085
        %v2162 = vpack.c.b16 %v2090, %v2086
        %v2163 = vpack.c.b16 %v2095, %v2091
        %v2164 = vpack.c.b16 %v2096, %v2092
        %v2165 = vpack.c.b16 %v2097, %v2093
        %v2166 = vpack.c.b16 %v2098, %v2094
        %v2167 = vpack.c.b16 %v2103, %v2099
        %v2168 = vpack.c.b16 %v2104, %v2100
        %v2169 = vpack.c.b16 %v2105, %v2101
        %v2170 = vpack.c.b16 %v2106, %v2102
        %2235 = vmatprep.subr.bf16.mxu0 %v2108
        %2236 = vmatpush1.bf16.xpose.msra.mxu0 %v2107
        %2237 = vmatprep.subr.bf16.mxu0 %v2112
        %2238 = vmatpush1.bf16.xpose.msra.mxu0 %v2111
        %2239 = vmatprep.subr.bf16.mxu0 %v2116
        %2240 = vmatpush1.bf16.xpose.msra.mxu0 %v2115
        %2241 = vmatprep.subr.bf16.mxu0 %v2120
        %2242 = vmatpush1.bf16.xpose.msra.mxu0 %v2119
        %2243 = vmatprep.subr.bf16.mxu0 %v2124
        %2244 = vmatpush1.bf16.xpose.msra.mxu0 %v2123
        %2245 = vmatprep.subr.bf16.mxu0 %v2128
        %2246 = vmatpush1.bf16.xpose.msra.mxu0 %v2127
        %2247 = vmatprep.subr.bf16.mxu0 %v2132
        %2248 = vmatpush1.bf16.xpose.msra.mxu0 %v2131
        %2249 = vmatprep.subr.bf16.mxu0 %v2136
        %2250 = vmatpush1.bf16.xpose.msra.mxu0 %v2135
        %2251 = vmatprep.subr.bf16.mxu0 %v2140
        %2252 = vmatpush1.bf16.xpose.msra.mxu0 %v2139
        %2253 = vmatprep.subr.bf16.mxu0 %v2144
        %2254 = vmatpush1.bf16.xpose.msra.mxu0 %v2143
        %2255 = vmatprep.subr.bf16.mxu0 %v2148
        %2256 = vmatpush1.bf16.xpose.msra.mxu0 %v2147
        %2257 = vmatprep.subr.bf16.mxu0 %v2152
        %2258 = vmatpush1.bf16.xpose.msra.mxu0 %v2151
        %2259 = vmatprep.subr.bf16.mxu0 %v2156
        %2260 = vmatpush1.bf16.xpose.msra.mxu0 %v2155
        %2261 = vmatprep.subr.bf16.mxu0 %v2160
        %2262 = vmatpush1.bf16.xpose.msra.mxu0 %v2159
        %2263 = vmatprep.subr.bf16.mxu0 %v2164
        %2264 = vmatpush1.bf16.xpose.msra.mxu0 %v2163
        %2265 = vmatprep.subr.bf16.mxu0 %v2168
        %2266 = vmatpush1.bf16.xpose.msra.mxu0 %v2167
        %2267 = vmatprep.mubr.bf16.mxu0 %v1788
        %2268 = vmatmul.mubr.bf16.gmra.mrb[0].mxu0 %v1787
        %v2269 = vpop.f32.mrb[0].mxu0
        %v2270 = vadd.f32 0.0, %v2269
        %v2271 = vpop.f32.mrb[0].mxu0
        %v2272 = vadd.f32 0.0, %v2271
        %v2273 = vpop.f32.mrb[0].mxu0
        %v2274 = vadd.f32 0.0, %v2273
        %v2275 = vpop.f32.mrb[0].mxu0
        %v2276 = vadd.f32 0.0, %v2275
        %2277 = vmatprep.mubr.bf16.mxu0 %v1792
        %2278 = vmatmul.mubr.bf16.gmra.mrb[0].mxu0 %v1791
        %v2279 = vpop.f32.mrb[0].mxu0
        %v2280 = vadd.f32 0.0, %v2279
        %v2281 = vpop.f32.mrb[0].mxu0
        %v2282 = vadd.f32 0.0, %v2281
        %v2283 = vpop.f32.mrb[0].mxu0
        %v2284 = vadd.f32 0.0, %v2283
        %v2285 = vpop.f32.mrb[0].mxu0
        %v2286 = vadd.f32 0.0, %v2285
        %2287 = vmatprep.mubr.bf16.mxu0 %v1796
        %2288 = vmatmul.mubr.bf16.gmra.mrb[0].mxu0 %v1795
        %v2289 = vpop.f32.mrb[0].mxu0
        %v2290 = vadd.f32 0.0, %v2289
        %v2291 = vpop.f32.mrb[0].mxu0
        %v2292 = vadd.f32 0.0, %v2291
        %v2293 = vpop.f32.mrb[0].mxu0
        %v2294 = vadd.f32 0.0, %v2293
        %v2295 = vpop.f32.mrb[0].mxu0
        %v2296 = vadd.f32 0.0, %v2295
        %2297 = vmatprep.mubr.bf16.mxu0 %v1800
        %2298 = vmatmul.mubr.bf16.gmra.mrb[0].mxu0 %v1799
        %v2299 = vpop.f32.mrb[0].mxu0
        %v2300 = vadd.f32 0.0, %v2299
        %v2301 = vpop.f32.mrb[0].mxu0
        %v2302 = vadd.f32 0.0, %v2301
        %v2303 = vpop.f32.mrb[0].mxu0
        %v2304 = vadd.f32 0.0, %v2303
        %v2305 = vpop.f32.mrb[0].mxu0
        %v2306 = vadd.f32 0.0, %v2305
        %2307 = vmatprep.mubr.bf16.mxu0 %v1804
        %2308 = vmatmul.mubr.bf16.gmra.mrb[0].mxu0 %v1803
        %v2309 = vpop.f32.mrb[0].mxu0
        %v2310 = vadd.f32 0.0, %v2309
        %v2311 = vpop.f32.mrb[0].mxu0
        %v2312 = vadd.f32 0.0, %v2311
        %v2313 = vpop.f32.mrb[0].mxu0
        %v2314 = vadd.f32 0.0, %v2313
        %v2315 = vpop.f32.mrb[0].mxu0
        %v2316 = vadd.f32 0.0, %v2315
        %2317 = vmatprep.mubr.bf16.mxu0 %v1808
        %2318 = vmatmul.mubr.bf16.gmra.mrb[0].mxu0 %v1807
        %v2319 = vpop.f32.mrb[0].mxu0
        %v2320 = vadd.f32 0.0, %v2319
        %v2321 = vpop.f32.mrb[0].mxu0
        %v2322 = vadd.f32 0.0, %v2321
        %v2323 = vpop.f32.mrb[0].mxu0
        %v2324 = vadd.f32 0.0, %v2323
        %v2325 = vpop.f32.mrb[0].mxu0
        %v2326 = vadd.f32 0.0, %v2325
        %2327 = vmatprep.mubr.bf16.mxu0 %v1812
        %2328 = vmatmul.mubr.bf16.gmra.mrb[0].mxu0 %v1811
        %v2329 = vpop.f32.mrb[0].mxu0
        %v2330 = vadd.f32 0.0, %v2329
        %v2331 = vpop.f32.mrb[0].mxu0
        %v2332 = vadd.f32 0.0, %v2331
        %v2333 = vpop.f32.mrb[0].mxu0
        %v2334 = vadd.f32 0.0, %v2333
        %v2335 = vpop.f32.mrb[0].mxu0
        %v2336 = vadd.f32 0.0, %v2335
        %2337 = vmatprep.mubr.bf16.mxu0 %v1816
        %2338 = vmatmul.mubr.bf16.gmra.mrb[0].mxu0 %v1815
        %v2339 = vpop.f32.mrb[0].mxu0
        %v2340 = vadd.f32 0.0, %v2339
        %v2341 = vpop.f32.mrb[0].mxu0
        %v2342 = vadd.f32 0.0, %v2341
        %v2343 = vpop.f32.mrb[0].mxu0
        %v2344 = vadd.f32 0.0, %v2343
        %v2345 = vpop.f32.mrb[0].mxu0
        %v2346 = vadd.f32 0.0, %v2345
        %2347 = vmatprep.mubr.bf16.mxu0 %v1820
        %2348 = vmatmul.mubr.bf16.gmra.mrb[0].mxu0 %v1819
        %v2349 = vpop.f32.mrb[0].mxu0
        %v2350 = vadd.f32 0.0, %v2349
        %v2351 = vpop.f32.mrb[0].mxu0
        %v2352 = vadd.f32 0.0, %v2351
        %v2353 = vpop.f32.mrb[0].mxu0
        %v2354 = vadd.f32 0.0, %v2353
        %v2355 = vpop.f32.mrb[0].mxu0
        %v2356 = vadd.f32 0.0, %v2355
        %2357 = vmatprep.mubr.bf16.mxu0 %v1824
        %2358 = vmatmul.mubr.bf16.gmra.mrb[0].mxu0 %v1823
        %v2359 = vpop.f32.mrb[0].mxu0
        %v2360 = vadd.f32 0.0, %v2359
        %v2361 = vpop.f32.mrb[0].mxu0
        %v2362 = vadd.f32 0.0, %v2361
        %v2363 = vpop.f32.mrb[0].mxu0
        %v2364 = vadd.f32 0.0, %v2363
        %v2365 = vpop.f32.mrb[0].mxu0
        %v2366 = vadd.f32 0.0, %v2365
        %2367 = vmatprep.mubr.bf16.mxu0 %v1828
        %2368 = vmatmul.mubr.bf16.gmra.mrb[0].mxu0 %v1827
        %v2369 = vpop.f32.mrb[0].mxu0
        %v2370 = vadd.f32 0.0, %v2369
        %v2371 = vpop.f32.mrb[0].mxu0
        %v2372 = vadd.f32 0.0, %v2371
        %v2373 = vpop.f32.mrb[0].mxu0
        %v2374 = vadd.f32 0.0, %v2373
        %v2375 = vpop.f32.mrb[0].mxu0
        %v2376 = vadd.f32 0.0, %v2375
        %2377 = vmatprep.mubr.bf16.mxu0 %v1832
        %2378 = vmatmul.mubr.bf16.gmra.mrb[0].mxu0 %v1831
        %v2379 = vpop.f32.mrb[0].mxu0
        %v2380 = vadd.f32 0.0, %v2379
        %v2381 = vpop.f32.mrb[0].mxu0
        %v2382 = vadd.f32 0.0, %v2381
        %v2383 = vpop.f32.mrb[0].mxu0
        %v2384 = vadd.f32 0.0, %v2383
        %v2385 = vpop.f32.mrb[0].mxu0
        %v2386 = vadd.f32 0.0, %v2385
        %2387 = vmatprep.mubr.bf16.mxu0 %v1836
        %2388 = vmatmul.mubr.bf16.gmra.mrb[0].mxu0 %v1835
        %v2389 = vpop.f32.mrb[0].mxu0
        %v2390 = vadd.f32 0.0, %v2389
        %v2391 = vpop.f32.mrb[0].mxu0
        %v2392 = vadd.f32 0.0, %v2391
        %v2393 = vpop.f32.mrb[0].mxu0
        %v2394 = vadd.f32 0.0, %v2393
        %v2395 = vpop.f32.mrb[0].mxu0
        %v2396 = vadd.f32 0.0, %v2395
        %2397 = vmatprep.mubr.bf16.mxu0 %v1840
        %2398 = vmatmul.mubr.bf16.gmra.mrb[0].mxu0 %v1839
        %v2399 = vpop.f32.mrb[0].mxu0
        %v2400 = vadd.f32 0.0, %v2399
        %v2401 = vpop.f32.mrb[0].mxu0
        %v2402 = vadd.f32 0.0, %v2401
        %v2403 = vpop.f32.mrb[0].mxu0
        %v2404 = vadd.f32 0.0, %v2403
        %v2405 = vpop.f32.mrb[0].mxu0
        %v2406 = vadd.f32 0.0, %v2405
        %2407 = vmatprep.mubr.bf16.mxu0 %v1844
        %2408 = vmatmul.mubr.bf16.gmra.mrb[0].mxu0 %v1843
        %v2409 = vpop.f32.mrb[0].mxu0
        %v2410 = vadd.f32 0.0, %v2409
        %v2411 = vpop.f32.mrb[0].mxu0
        %v2412 = vadd.f32 0.0, %v2411
        %v2413 = vpop.f32.mrb[0].mxu0
        %v2414 = vadd.f32 0.0, %v2413
        %v2415 = vpop.f32.mrb[0].mxu0
        %v2416 = vadd.f32 0.0, %v2415
        %2417 = vmatprep.mubr.bf16.mxu0 %v1848
        %2418 = vmatmul.mubr.bf16.gmra.mrb[0].mxu0 %v1847
        %v2419 = vpop.f32.mrb[0].mxu0
        %v2420 = vadd.f32 0.0, %v2419
        %v2421 = vpop.f32.mrb[0].mxu0
        %v2422 = vadd.f32 0.0, %v2421
        %v2423 = vpop.f32.mrb[0].mxu0
        %v2424 = vadd.f32 0.0, %v2423
        %v2425 = vpop.f32.mrb[0].mxu0
        %v2426 = vadd.f32 0.0, %v2425
        %2427 = vdwg.mxu0
        %2428 = vmatprep.subr.bf16.mxu0 %v2110
        %2429 = vmatpush1.bf16.xpose.msra.mxu0 %v2109
        %2430 = vmatprep.subr.bf16.mxu0 %v2114
        %2431 = vmatpush1.bf16.xpose.msra.mxu0 %v2113
        %2432 = vmatprep.subr.bf16.mxu0 %v2118
        %2433 = vmatpush1.bf16.xpose.msra.mxu0 %v2117
        %2434 = vmatprep.subr.bf16.mxu0 %v2122
        %2435 = vmatpush1.bf16.xpose.msra.mxu0 %v2121
        %2436 = vmatprep.subr.bf16.mxu0 %v2126
        %2437 = vmatpush1.bf16.xpose.msra.mxu0 %v2125
        %2438 = vmatprep.subr.bf16.mxu0 %v2130
        %2439 = vmatpush1.bf16.xpose.msra.mxu0 %v2129
        %2440 = vmatprep.subr.bf16.mxu0 %v2134
        %2441 = vmatpush1.bf16.xpose.msra.mxu0 %v2133
        %2442 = vmatprep.subr.bf16.mxu0 %v2138
        %2443 = vmatpush1.bf16.xpose.msra.mxu0 %v2137
        %2444 = vmatprep.subr.bf16.mxu0 %v2142
        %2445 = vmatpush1.bf16.xpose.msra.mxu0 %v2141
        %2446 = vmatprep.subr.bf16.mxu0 %v2146
        %2447 = vmatpush1.bf16.xpose.msra.mxu0 %v2145
        %2448 = vmatprep.subr.bf16.mxu0 %v2150
        %2449 = vmatpush1.bf16.xpose.msra.mxu0 %v2149
        %2450 = vmatprep.subr.bf16.mxu0 %v2154
        %2451 = vmatpush1.bf16.xpose.msra.mxu0 %v2153
        %2452 = vmatprep.subr.bf16.mxu0 %v2158
        %2453 = vmatpush1.bf16.xpose.msra.mxu0 %v2157
        %2454 = vmatprep.subr.bf16.mxu0 %v2162
        %2455 = vmatpush1.bf16.xpose.msra.mxu0 %v2161
        %2456 = vmatprep.subr.bf16.mxu0 %v2166
        %2457 = vmatpush1.bf16.xpose.msra.mxu0 %v2165
        %2458 = vmatprep.subr.bf16.mxu0 %v2170
        %2459 = vmatpush1.bf16.xpose.msra.mxu0 %v2169
        %2460 = vmatprep.mubr.bf16.mxu0 %v1790
        %2461 = vmatmul.mubr.bf16.gmra.mrb[0].mxu0 %v1789
        %v2462 = vpop.f32.mrb[0].mxu0
        %v2463 = vadd.f32 %v2270, %v2462
        %v2464 = vpop.f32.mrb[0].mxu0
        %v2465 = vadd.f32 %v2272, %v2464
        %v2466 = vpop.f32.mrb[0].mxu0
        %v2467 = vadd.f32 %v2274, %v2466
        %v2468 = vpop.f32.mrb[0].mxu0
        %v2469 = vadd.f32 %v2276, %v2468
        %2470 = vmatprep.mubr.bf16.mxu0 %v1794
        %2471 = vmatmul.mubr.bf16.gmra.mrb[0].mxu0 %v1793
        %v2472 = vpop.f32.mrb[0].mxu0
        %v2473 = vadd.f32 %v2280, %v2472
        %v2474 = vpop.f32.mrb[0].mxu0
        %v2475 = vadd.f32 %v2282, %v2474
        %v2476 = vpop.f32.mrb[0].mxu0
        %v2477 = vadd.f32 %v2284, %v2476
        %v2478 = vpop.f32.mrb[0].mxu0
        %v2479 = vadd.f32 %v2286, %v2478
        %2480 = vmatprep.mubr.bf16.mxu0 %v1798
        %2481 = vmatmul.mubr.bf16.gmra.mrb[0].mxu0 %v1797
        %v2482 = vpop.f32.mrb[0].mxu0
        %v2483 = vadd.f32 %v2290, %v2482
        %v2484 = vpop.f32.mrb[0].mxu0
        %v2485 = vadd.f32 %v2292, %v2484
        %v2486 = vpop.f32.mrb[0].mxu0
        %v2487 = vadd.f32 %v2294, %v2486
        %v2488 = vpop.f32.mrb[0].mxu0
        %v2489 = vadd.f32 %v2296, %v2488
        %2490 = vmatprep.mubr.bf16.mxu0 %v1802
        %2491 = vmatmul.mubr.bf16.gmra.mrb[0].mxu0 %v1801
        %v2492 = vpop.f32.mrb[0].mxu0
        %v2493 = vadd.f32 %v2300, %v2492
        %v2494 = vpop.f32.mrb[0].mxu0
        %v2495 = vadd.f32 %v2302, %v2494
        %v2496 = vpop.f32.mrb[0].mxu0
        %v2497 = vadd.f32 %v2304, %v2496
        %v2498 = vpop.f32.mrb[0].mxu0
        %v2499 = vadd.f32 %v2306, %v2498
        %2500 = vmatprep.mubr.bf16.mxu0 %v1806
        %2501 = vmatmul.mubr.bf16.gmra.mrb[0].mxu0 %v1805
        %v2502 = vpop.f32.mrb[0].mxu0
        %v2503 = vadd.f32 %v2310, %v2502
        %v2504 = vpop.f32.mrb[0].mxu0
        %v2505 = vadd.f32 %v2312, %v2504
        %v2506 = vpop.f32.mrb[0].mxu0
        %v2507 = vadd.f32 %v2314, %v2506
        %v2508 = vpop.f32.mrb[0].mxu0
        %v2509 = vadd.f32 %v2316, %v2508
        %2510 = vmatprep.mubr.bf16.mxu0 %v1810
        %2511 = vmatmul.mubr.bf16.gmra.mrb[0].mxu0 %v1809
        %v2512 = vpop.f32.mrb[0].mxu0
        %v2513 = vadd.f32 %v2320, %v2512
        %v2514 = vpop.f32.mrb[0].mxu0
        %v2515 = vadd.f32 %v2322, %v2514
        %v2516 = vpop.f32.mrb[0].mxu0
        %v2517 = vadd.f32 %v2324, %v2516
        %v2518 = vpop.f32.mrb[0].mxu0
        %v2519 = vadd.f32 %v2326, %v2518
        %2520 = vmatprep.mubr.bf16.mxu0 %v1814
        %2521 = vmatmul.mubr.bf16.gmra.mrb[0].mxu0 %v1813
        %v2522 = vpop.f32.mrb[0].mxu0
        %v2523 = vadd.f32 %v2330, %v2522
        %v2524 = vpop.f32.mrb[0].mxu0
        %v2525 = vadd.f32 %v2332, %v2524
        %v2526 = vpop.f32.mrb[0].mxu0
        %v2527 = vadd.f32 %v2334, %v2526
        %v2528 = vpop.f32.mrb[0].mxu0
        %v2529 = vadd.f32 %v2336, %v2528
        %2530 = vmatprep.mubr.bf16.mxu0 %v1818
        %2531 = vmatmul.mubr.bf16.gmra.mrb[0].mxu0 %v1817
        %v2532 = vpop.f32.mrb[0].mxu0
        %v2533 = vadd.f32 %v2340, %v2532
        %v2534 = vpop.f32.mrb[0].mxu0
        %v2535 = vadd.f32 %v2342, %v2534
        %v2536 = vpop.f32.mrb[0].mxu0
        %v2537 = vadd.f32 %v2344, %v2536
        %v2538 = vpop.f32.mrb[0].mxu0
        %v2539 = vadd.f32 %v2346, %v2538
        %2540 = vmatprep.mubr.bf16.mxu0 %v1822
        %2541 = vmatmul.mubr.bf16.gmra.mrb[0].mxu0 %v1821
        %v2542 = vpop.f32.mrb[0].mxu0
        %v2543 = vadd.f32 %v2350, %v2542
        %v2544 = vpop.f32.mrb[0].mxu0
        %v2545 = vadd.f32 %v2352, %v2544
        %v2546 = vpop.f32.mrb[0].mxu0
        %v2547 = vadd.f32 %v2354, %v2546
        %v2548 = vpop.f32.mrb[0].mxu0
        %v2549 = vadd.f32 %v2356, %v2548
        %2550 = vmatprep.mubr.bf16.mxu0 %v1826
        %2551 = vmatmul.mubr.bf16.gmra.mrb[0].mxu0 %v1825
        %v2552 = vpop.f32.mrb[0].mxu0
        %v2553 = vadd.f32 %v2360, %v2552
        %v2554 = vpop.f32.mrb[0].mxu0
        %v2555 = vadd.f32 %v2362, %v2554
        %v2556 = vpop.f32.mrb[0].mxu0
        %v2557 = vadd.f32 %v2364, %v2556
        %v2558 = vpop.f32.mrb[0].mxu0
        %v2559 = vadd.f32 %v2366, %v2558
        %2560 = vmatprep.mubr.bf16.mxu0 %v1830
        %2561 = vmatmul.mubr.bf16.gmra.mrb[0].mxu0 %v1829
        %v2562 = vpop.f32.mrb[0].mxu0
        %v2563 = vadd.f32 %v2370, %v2562
        %v2564 = vpop.f32.mrb[0].mxu0
        %v2565 = vadd.f32 %v2372, %v2564
        %v2566 = vpop.f32.mrb[0].mxu0
        %v2567 = vadd.f32 %v2374, %v2566
        %v2568 = vpop.f32.mrb[0].mxu0
        %v2569 = vadd.f32 %v2376, %v2568
        %2570 = vmatprep.mubr.bf16.mxu0 %v1834
        %2571 = vmatmul.mubr.bf16.gmra.mrb[0].mxu0 %v1833
        %v2572 = vpop.f32.mrb[0].mxu0
        %v2573 = vadd.f32 %v2380, %v2572
        %v2574 = vpop.f32.mrb[0].mxu0
        %v2575 = vadd.f32 %v2382, %v2574
        %v2576 = vpop.f32.mrb[0].mxu0
        %v2577 = vadd.f32 %v2384, %v2576
        %v2578 = vpop.f32.mrb[0].mxu0
        %v2579 = vadd.f32 %v2386, %v2578
        %2580 = vmatprep.mubr.bf16.mxu0 %v1838
        %2581 = vmatmul.mubr.bf16.gmra.mrb[0].mxu0 %v1837
        %v2582 = vpop.f32.mrb[0].mxu0
        %v2583 = vadd.f32 %v2390, %v2582
        %v2584 = vpop.f32.mrb[0].mxu0
        %v2585 = vadd.f32 %v2392, %v2584
        %v2586 = vpop.f32.mrb[0].mxu0
        %v2587 = vadd.f32 %v2394, %v2586
        %v2588 = vpop.f32.mrb[0].mxu0
        %v2589 = vadd.f32 %v2396, %v2588
        %2590 = vmatprep.mubr.bf16.mxu0 %v1842
        %2591 = vmatmul.mubr.bf16.gmra.mrb[0].mxu0 %v1841
        %v2592 = vpop.f32.mrb[0].mxu0
        %v2593 = vadd.f32 %v2400, %v2592
        %v2594 = vpop.f32.mrb[0].mxu0
        %v2595 = vadd.f32 %v2402, %v2594
        %v2596 = vpop.f32.mrb[0].mxu0
        %v2597 = vadd.f32 %v2404, %v2596
        %v2598 = vpop.f32.mrb[0].mxu0
        %v2599 = vadd.f32 %v2406, %v2598
        %2600 = vmatprep.mubr.bf16.mxu0 %v1846
        %2601 = vmatmul.mubr.bf16.gmra.mrb[0].mxu0 %v1845
        %v2602 = vpop.f32.mrb[0].mxu0
        %v2603 = vadd.f32 %v2410, %v2602
        %v2604 = vpop.f32.mrb[0].mxu0
        %v2605 = vadd.f32 %v2412, %v2604
        %v2606 = vpop.f32.mrb[0].mxu0
        %v2607 = vadd.f32 %v2414, %v2606
        %v2608 = vpop.f32.mrb[0].mxu0
        %v2609 = vadd.f32 %v2416, %v2608
        %2610 = vmatprep.mubr.bf16.mxu0 %v1850
        %2611 = vmatmul.mubr.bf16.gmra.mrb[0].mxu0 %v1849
        %v2612 = vpop.f32.mrb[0].mxu0
        %v2613 = vadd.f32 %v2420, %v2612
        %v2614 = vpop.f32.mrb[0].mxu0
        %v2615 = vadd.f32 %v2422, %v2614
        %v2616 = vpop.f32.mrb[0].mxu0
        %v2617 = vadd.f32 %v2424, %v2616
        %v2618 = vpop.f32.mrb[0].mxu0
        %v2619 = vadd.f32 %v2426, %v2618
        %2620 = vdwg.mxu0
        %v2685 = vunpack.c.l.b16 %v558
        %v2686 = vunpack.c.h.b16 %v558
        %v2687 = vunpack.c.l.b16 %v559
        %v2688 = vunpack.c.h.b16 %v559
        %v2689 = vunpack.c.l.b16 %v560
        %v2690 = vunpack.c.h.b16 %v560
        %v2691 = vunpack.c.l.b16 %v561
        %v2692 = vunpack.c.h.b16 %v561
        %v2693 = vunpack.c.l.b16 %v562
        %v2694 = vunpack.c.h.b16 %v562
        %v2695 = vunpack.c.l.b16 %v563
        %v2696 = vunpack.c.h.b16 %v563
        %v2697 = vunpack.c.l.b16 %v564
        %v2698 = vunpack.c.h.b16 %v564
        %v2699 = vunpack.c.l.b16 %v565
        %v2700 = vunpack.c.h.b16 %v565
        %v2701 = vunpack.c.l.b16 %v566
        %v2702 = vunpack.c.h.b16 %v566
        %v2703 = vunpack.c.l.b16 %v567
        %v2704 = vunpack.c.h.b16 %v567
        %v2705 = vunpack.c.l.b16 %v568
        %v2706 = vunpack.c.h.b16 %v568
        %v2707 = vunpack.c.l.b16 %v569
        %v2708 = vunpack.c.h.b16 %v569
        %v2709 = vunpack.c.l.b16 %v570
        %v2710 = vunpack.c.h.b16 %v570
        %v2711 = vunpack.c.l.b16 %v571
        %v2712 = vunpack.c.h.b16 %v571
        %v2713 = vunpack.c.l.b16 %v572
        %v2714 = vunpack.c.h.b16 %v572
        %v2715 = vunpack.c.l.b16 %v573
        %v2716 = vunpack.c.h.b16 %v573
        %v2717 = vunpack.c.l.b16 %v574
        %v2718 = vunpack.c.h.b16 %v574
        %v2719 = vunpack.c.l.b16 %v575
        %v2720 = vunpack.c.h.b16 %v575
        %v2721 = vunpack.c.l.b16 %v576
        %v2722 = vunpack.c.h.b16 %v576
        %v2723 = vunpack.c.l.b16 %v577
        %v2724 = vunpack.c.h.b16 %v577
        %v2725 = vunpack.c.l.b16 %v578
        %v2726 = vunpack.c.h.b16 %v578
        %v2727 = vunpack.c.l.b16 %v579
        %v2728 = vunpack.c.h.b16 %v579
        %v2729 = vunpack.c.l.b16 %v580
        %v2730 = vunpack.c.h.b16 %v580
        %v2731 = vunpack.c.l.b16 %v581
        %v2732 = vunpack.c.h.b16 %v581
        %v2733 = vunpack.c.l.b16 %v582
        %v2734 = vunpack.c.h.b16 %v582
        %v2735 = vunpack.c.l.b16 %v583
        %v2736 = vunpack.c.h.b16 %v583
        %v2737 = vunpack.c.l.b16 %v584
        %v2738 = vunpack.c.h.b16 %v584
        %v2739 = vunpack.c.l.b16 %v585
        %v2740 = vunpack.c.h.b16 %v585
        %v2741 = vunpack.c.l.b16 %v586
        %v2742 = vunpack.c.h.b16 %v586
        %v2743 = vunpack.c.l.b16 %v587
        %v2744 = vunpack.c.h.b16 %v587
        %v2745 = vunpack.c.l.b16 %v588
        %v2746 = vunpack.c.h.b16 %v588
        %v2747 = vunpack.c.l.b16 %v589
        %v2748 = vunpack.c.h.b16 %v589
        %v2749 = vunpack.c.l.b16 %v590
        %v2750 = vunpack.c.h.b16 %v590
        %v2751 = vunpack.c.l.b16 %v591
        %v2752 = vunpack.c.h.b16 %v591
        %v2753 = vunpack.c.l.b16 %v592
        %v2754 = vunpack.c.h.b16 %v592
        %v2755 = vunpack.c.l.b16 %v593
        %v2756 = vunpack.c.h.b16 %v593
        %v2757 = vunpack.c.l.b16 %v594
        %v2758 = vunpack.c.h.b16 %v594
        %v2759 = vunpack.c.l.b16 %v595
        %v2760 = vunpack.c.h.b16 %v595
        %v2761 = vunpack.c.l.b16 %v596
        %v2762 = vunpack.c.h.b16 %v596
        %v2763 = vunpack.c.l.b16 %v597
        %v2764 = vunpack.c.h.b16 %v597
        %v2765 = vunpack.c.l.b16 %v598
        %v2766 = vunpack.c.h.b16 %v598
        %v2767 = vunpack.c.l.b16 %v599
        %v2768 = vunpack.c.h.b16 %v599
        %v2769 = vunpack.c.l.b16 %v600
        %v2770 = vunpack.c.h.b16 %v600
        %v2771 = vunpack.c.l.b16 %v601
        %v2772 = vunpack.c.h.b16 %v601
        %v2773 = vunpack.c.l.b16 %v602
        %v2774 = vunpack.c.h.b16 %v602
        %v2775 = vunpack.c.l.b16 %v603
        %v2776 = vunpack.c.h.b16 %v603
        %v2777 = vunpack.c.l.b16 %v604
        %v2778 = vunpack.c.h.b16 %v604
        %v2779 = vunpack.c.l.b16 %v605
        %v2780 = vunpack.c.h.b16 %v605
        %v2781 = vunpack.c.l.b16 %v606
        %v2782 = vunpack.c.h.b16 %v606
        %v2783 = vunpack.c.l.b16 %v607
        %v2784 = vunpack.c.h.b16 %v607
        %v2785 = vunpack.c.l.b16 %v608
        %v2786 = vunpack.c.h.b16 %v608
        %v2787 = vunpack.c.l.b16 %v609
        %v2788 = vunpack.c.h.b16 %v609
        %v2789 = vunpack.c.l.b16 %v610
        %v2790 = vunpack.c.h.b16 %v610
        %v2791 = vunpack.c.l.b16 %v611
        %v2792 = vunpack.c.h.b16 %v611
        %v2793 = vunpack.c.l.b16 %v612
        %v2794 = vunpack.c.h.b16 %v612
        %v2795 = vunpack.c.l.b16 %v613
        %v2796 = vunpack.c.h.b16 %v613
        %v2797 = vunpack.c.l.b16 %v614
        %v2798 = vunpack.c.h.b16 %v614
        %v2799 = vunpack.c.l.b16 %v615
        %v2800 = vunpack.c.h.b16 %v615
        %v2801 = vunpack.c.l.b16 %v616
        %v2802 = vunpack.c.h.b16 %v616
        %v2803 = vunpack.c.l.b16 %v617
        %v2804 = vunpack.c.h.b16 %v617
        %v2805 = vunpack.c.l.b16 %v618
        %v2806 = vunpack.c.h.b16 %v618
        %v2807 = vunpack.c.l.b16 %v619
        %v2808 = vunpack.c.h.b16 %v619
        %v2809 = vunpack.c.l.b16 %v620
        %v2810 = vunpack.c.h.b16 %v620
        %v2811 = vunpack.c.l.b16 %v621
        %v2812 = vunpack.c.h.b16 %v621
        %v2813 = vpack.c.b16 %v2689, %v2685
        %v2814 = vpack.c.b16 %v2690, %v2686
        %v2815 = vpack.c.b16 %v2691, %v2687
        %v2816 = vpack.c.b16 %v2692, %v2688
        %v2817 = vpack.c.b16 %v2697, %v2693
        %v2818 = vpack.c.b16 %v2698, %v2694
        %v2819 = vpack.c.b16 %v2699, %v2695
        %v2820 = vpack.c.b16 %v2700, %v2696
        %v2821 = vpack.c.b16 %v2705, %v2701
        %v2822 = vpack.c.b16 %v2706, %v2702
        %v2823 = vpack.c.b16 %v2707, %v2703
        %v2824 = vpack.c.b16 %v2708, %v2704
        %v2825 = vpack.c.b16 %v2713, %v2709
        %v2826 = vpack.c.b16 %v2714, %v2710
        %v2827 = vpack.c.b16 %v2715, %v2711
        %v2828 = vpack.c.b16 %v2716, %v2712
        %v2829 = vpack.c.b16 %v2721, %v2717
        %v2830 = vpack.c.b16 %v2722, %v2718
        %v2831 = vpack.c.b16 %v2723, %v2719
        %v2832 = vpack.c.b16 %v2724, %v2720
        %v2833 = vpack.c.b16 %v2729, %v2725
        %v2834 = vpack.c.b16 %v2730, %v2726
        %v2835 = vpack.c.b16 %v2731, %v2727
        %v2836 = vpack.c.b16 %v2732, %v2728
        %v2837 = vpack.c.b16 %v2737, %v2733
        %v2838 = vpack.c.b16 %v2738, %v2734
        %v2839 = vpack.c.b16 %v2739, %v2735
        %v2840 = vpack.c.b16 %v2740, %v2736
        %v2841 = vpack.c.b16 %v2745, %v2741
        %v2842 = vpack.c.b16 %v2746, %v2742
        %v2843 = vpack.c.b16 %v2747, %v2743
        %v2844 = vpack.c.b16 %v2748, %v2744
        %v2845 = vpack.c.b16 %v2753, %v2749
        %v2846 = vpack.c.b16 %v2754, %v2750
        %v2847 = vpack.c.b16 %v2755, %v2751
        %v2848 = vpack.c.b16 %v2756, %v2752
        %v2849 = vpack.c.b16 %v2761, %v2757
        %v2850 = vpack.c.b16 %v2762, %v2758
        %v2851 = vpack.c.b16 %v2763, %v2759
        %v2852 = vpack.c.b16 %v2764, %v2760
        %v2853 = vpack.c.b16 %v2769, %v2765
        %v2854 = vpack.c.b16 %v2770, %v2766
        %v2855 = vpack.c.b16 %v2771, %v2767
        %v2856 = vpack.c.b16 %v2772, %v2768
        %v2857 = vpack.c.b16 %v2777, %v2773
        %v2858 = vpack.c.b16 %v2778, %v2774
        %v2859 = vpack.c.b16 %v2779, %v2775
        %v2860 = vpack.c.b16 %v2780, %v2776
        %v2861 = vpack.c.b16 %v2785, %v2781
        %v2862 = vpack.c.b16 %v2786, %v2782
        %v2863 = vpack.c.b16 %v2787, %v2783
        %v2864 = vpack.c.b16 %v2788, %v2784
        %v2865 = vpack.c.b16 %v2793, %v2789
        %v2866 = vpack.c.b16 %v2794, %v2790
        %v2867 = vpack.c.b16 %v2795, %v2791
        %v2868 = vpack.c.b16 %v2796, %v2792
        %v2869 = vpack.c.b16 %v2801, %v2797
        %v2870 = vpack.c.b16 %v2802, %v2798
        %v2871 = vpack.c.b16 %v2803, %v2799
        %v2872 = vpack.c.b16 %v2804, %v2800
        %v2873 = vpack.c.b16 %v2809, %v2805
        %v2874 = vpack.c.b16 %v2810, %v2806
        %v2875 = vpack.c.b16 %v2811, %v2807
        %v2876 = vpack.c.b16 %v2812, %v2808
        %v3005 = vunpack.c.l.b16 %v759
        %v3006 = vunpack.c.h.b16 %v759
        %v3007 = vunpack.c.l.b16 %v760
        %v3008 = vunpack.c.h.b16 %v760
        %v3009 = vunpack.c.l.b16 %v761
        %v3010 = vunpack.c.h.b16 %v761
        %v3011 = vunpack.c.l.b16 %v762
        %v3012 = vunpack.c.h.b16 %v762
        %v3013 = vunpack.c.l.b16 %v763
        %v3014 = vunpack.c.h.b16 %v763
        %v3015 = vunpack.c.l.b16 %v764
        %v3016 = vunpack.c.h.b16 %v764
        %v3017 = vunpack.c.l.b16 %v765
        %v3018 = vunpack.c.h.b16 %v765
        %v3019 = vunpack.c.l.b16 %v766
        %v3020 = vunpack.c.h.b16 %v766
        %v3021 = vunpack.c.l.b16 %v767
        %v3022 = vunpack.c.h.b16 %v767
        %v3023 = vunpack.c.l.b16 %v768
        %v3024 = vunpack.c.h.b16 %v768
        %v3025 = vunpack.c.l.b16 %v769
        %v3026 = vunpack.c.h.b16 %v769
        %v3027 = vunpack.c.l.b16 %v770
        %v3028 = vunpack.c.h.b16 %v770
        %v3029 = vunpack.c.l.b16 %v771
        %v3030 = vunpack.c.h.b16 %v771
        %v3031 = vunpack.c.l.b16 %v772
        %v3032 = vunpack.c.h.b16 %v772
        %v3033 = vunpack.c.l.b16 %v773
        %v3034 = vunpack.c.h.b16 %v773
        %v3035 = vunpack.c.l.b16 %v774
        %v3036 = vunpack.c.h.b16 %v774
        %v3037 = vunpack.c.l.b16 %v775
        %v3038 = vunpack.c.h.b16 %v775
        %v3039 = vunpack.c.l.b16 %v776
        %v3040 = vunpack.c.h.b16 %v776
        %v3041 = vunpack.c.l.b16 %v777
        %v3042 = vunpack.c.h.b16 %v777
        %v3043 = vunpack.c.l.b16 %v778
        %v3044 = vunpack.c.h.b16 %v778
        %v3045 = vunpack.c.l.b16 %v779
        %v3046 = vunpack.c.h.b16 %v779
        %v3047 = vunpack.c.l.b16 %v780
        %v3048 = vunpack.c.h.b16 %v780
        %v3049 = vunpack.c.l.b16 %v781
        %v3050 = vunpack.c.h.b16 %v781
        %v3051 = vunpack.c.l.b16 %v782
        %v3052 = vunpack.c.h.b16 %v782
        %v3053 = vunpack.c.l.b16 %v783
        %v3054 = vunpack.c.h.b16 %v783
        %v3055 = vunpack.c.l.b16 %v784
        %v3056 = vunpack.c.h.b16 %v784
        %v3057 = vunpack.c.l.b16 %v785
        %v3058 = vunpack.c.h.b16 %v785
        %v3059 = vunpack.c.l.b16 %v786
        %v3060 = vunpack.c.h.b16 %v786
        %v3061 = vunpack.c.l.b16 %v787
        %v3062 = vunpack.c.h.b16 %v787
        %v3063 = vunpack.c.l.b16 %v788
        %v3064 = vunpack.c.h.b16 %v788
        %v3065 = vunpack.c.l.b16 %v789
        %v3066 = vunpack.c.h.b16 %v789
        %v3067 = vunpack.c.l.b16 %v790
        %v3068 = vunpack.c.h.b16 %v790
        %v3069 = vunpack.c.l.b16 %v791
        %v3070 = vunpack.c.h.b16 %v791
        %v3071 = vunpack.c.l.b16 %v792
        %v3072 = vunpack.c.h.b16 %v792
        %v3073 = vunpack.c.l.b16 %v793
        %v3074 = vunpack.c.h.b16 %v793
        %v3075 = vunpack.c.l.b16 %v794
        %v3076 = vunpack.c.h.b16 %v794
        %v3077 = vunpack.c.l.b16 %v795
        %v3078 = vunpack.c.h.b16 %v795
        %v3079 = vunpack.c.l.b16 %v796
        %v3080 = vunpack.c.h.b16 %v796
        %v3081 = vunpack.c.l.b16 %v797
        %v3082 = vunpack.c.h.b16 %v797
        %v3083 = vunpack.c.l.b16 %v798
        %v3084 = vunpack.c.h.b16 %v798
        %v3085 = vunpack.c.l.b16 %v799
        %v3086 = vunpack.c.h.b16 %v799
        %v3087 = vunpack.c.l.b16 %v800
        %v3088 = vunpack.c.h.b16 %v800
        %v3089 = vunpack.c.l.b16 %v801
        %v3090 = vunpack.c.h.b16 %v801
        %v3091 = vunpack.c.l.b16 %v802
        %v3092 = vunpack.c.h.b16 %v802
        %v3093 = vunpack.c.l.b16 %v803
        %v3094 = vunpack.c.h.b16 %v803
        %v3095 = vunpack.c.l.b16 %v804
        %v3096 = vunpack.c.h.b16 %v804
        %v3097 = vunpack.c.l.b16 %v805
        %v3098 = vunpack.c.h.b16 %v805
        %v3099 = vunpack.c.l.b16 %v806
        %v3100 = vunpack.c.h.b16 %v806
        %v3101 = vunpack.c.l.b16 %v807
        %v3102 = vunpack.c.h.b16 %v807
        %v3103 = vunpack.c.l.b16 %v808
        %v3104 = vunpack.c.h.b16 %v808
        %v3105 = vunpack.c.l.b16 %v809
        %v3106 = vunpack.c.h.b16 %v809
        %v3107 = vunpack.c.l.b16 %v810
        %v3108 = vunpack.c.h.b16 %v810
        %v3109 = vunpack.c.l.b16 %v811
        %v3110 = vunpack.c.h.b16 %v811
        %v3111 = vunpack.c.l.b16 %v812
        %v3112 = vunpack.c.h.b16 %v812
        %v3113 = vunpack.c.l.b16 %v813
        %v3114 = vunpack.c.h.b16 %v813
        %v3115 = vunpack.c.l.b16 %v814
        %v3116 = vunpack.c.h.b16 %v814
        %v3117 = vunpack.c.l.b16 %v815
        %v3118 = vunpack.c.h.b16 %v815
        %v3119 = vunpack.c.l.b16 %v816
        %v3120 = vunpack.c.h.b16 %v816
        %v3121 = vunpack.c.l.b16 %v817
        %v3122 = vunpack.c.h.b16 %v817
        %v3123 = vunpack.c.l.b16 %v818
        %v3124 = vunpack.c.h.b16 %v818
        %v3125 = vunpack.c.l.b16 %v819
        %v3126 = vunpack.c.h.b16 %v819
        %v3127 = vunpack.c.l.b16 %v820
        %v3128 = vunpack.c.h.b16 %v820
        %v3129 = vunpack.c.l.b16 %v821
        %v3130 = vunpack.c.h.b16 %v821
        %v3131 = vunpack.c.l.b16 %v822
        %v3132 = vunpack.c.h.b16 %v822
        %v3133 = vpack.c.b16 %v3009, %v3005
        %v3134 = vpack.c.b16 %v3010, %v3006
        %v3135 = vpack.c.b16 %v3011, %v3007
        %v3136 = vpack.c.b16 %v3012, %v3008
        %v3137 = vpack.c.b16 %v3017, %v3013
        %v3138 = vpack.c.b16 %v3018, %v3014
        %v3139 = vpack.c.b16 %v3019, %v3015
        %v3140 = vpack.c.b16 %v3020, %v3016
        %v3141 = vpack.c.b16 %v3025, %v3021
        %v3142 = vpack.c.b16 %v3026, %v3022
        %v3143 = vpack.c.b16 %v3027, %v3023
        %v3144 = vpack.c.b16 %v3028, %v3024
        %v3145 = vpack.c.b16 %v3033, %v3029
        %v3146 = vpack.c.b16 %v3034, %v3030
        %v3147 = vpack.c.b16 %v3035, %v3031
        %v3148 = vpack.c.b16 %v3036, %v3032
        %v3149 = vpack.c.b16 %v3041, %v3037
        %v3150 = vpack.c.b16 %v3042, %v3038
        %v3151 = vpack.c.b16 %v3043, %v3039
        %v3152 = vpack.c.b16 %v3044, %v3040
        %v3153 = vpack.c.b16 %v3049, %v3045
        %v3154 = vpack.c.b16 %v3050, %v3046
        %v3155 = vpack.c.b16 %v3051, %v3047
        %v3156 = vpack.c.b16 %v3052, %v3048
        %v3157 = vpack.c.b16 %v3057, %v3053
        %v3158 = vpack.c.b16 %v3058, %v3054
        %v3159 = vpack.c.b16 %v3059, %v3055
        %v3160 = vpack.c.b16 %v3060, %v3056
        %v3161 = vpack.c.b16 %v3065, %v3061
        %v3162 = vpack.c.b16 %v3066, %v3062
        %v3163 = vpack.c.b16 %v3067, %v3063
        %v3164 = vpack.c.b16 %v3068, %v3064
        %v3165 = vpack.c.b16 %v3073, %v3069
        %v3166 = vpack.c.b16 %v3074, %v3070
        %v3167 = vpack.c.b16 %v3075, %v3071
        %v3168 = vpack.c.b16 %v3076, %v3072
        %v3169 = vpack.c.b16 %v3081, %v3077
        %v3170 = vpack.c.b16 %v3082, %v3078
        %v3171 = vpack.c.b16 %v3083, %v3079
        %v3172 = vpack.c.b16 %v3084, %v3080
        %v3173 = vpack.c.b16 %v3089, %v3085
        %v3174 = vpack.c.b16 %v3090, %v3086
        %v3175 = vpack.c.b16 %v3091, %v3087
        %v3176 = vpack.c.b16 %v3092, %v3088
        %v3177 = vpack.c.b16 %v3097, %v3093
        %v3178 = vpack.c.b16 %v3098, %v3094
        %v3179 = vpack.c.b16 %v3099, %v3095
        %v3180 = vpack.c.b16 %v3100, %v3096
        %v3181 = vpack.c.b16 %v3105, %v3101
        %v3182 = vpack.c.b16 %v3106, %v3102
        %v3183 = vpack.c.b16 %v3107, %v3103
        %v3184 = vpack.c.b16 %v3108, %v3104
        %v3185 = vpack.c.b16 %v3113, %v3109
        %v3186 = vpack.c.b16 %v3114, %v3110
        %v3187 = vpack.c.b16 %v3115, %v3111
        %v3188 = vpack.c.b16 %v3116, %v3112
        %v3189 = vpack.c.b16 %v3121, %v3117
        %v3190 = vpack.c.b16 %v3122, %v3118
        %v3191 = vpack.c.b16 %v3123, %v3119
        %v3192 = vpack.c.b16 %v3124, %v3120
        %v3193 = vpack.c.b16 %v3129, %v3125
        %v3194 = vpack.c.b16 %v3130, %v3126
        %v3195 = vpack.c.b16 %v3131, %v3127
        %v3196 = vpack.c.b16 %v3132, %v3128
        %3261 = vmatprep.subr.bf16.mxu0 %v3134
        %3262 = vmatpush1.bf16.xpose.msra.mxu0 %v3133
        %3263 = vmatprep.subr.bf16.mxu0 %v3138
        %3264 = vmatpush1.bf16.xpose.msra.mxu0 %v3137
        %3265 = vmatprep.subr.bf16.mxu0 %v3142
        %3266 = vmatpush1.bf16.xpose.msra.mxu0 %v3141
        %3267 = vmatprep.subr.bf16.mxu0 %v3146
        %3268 = vmatpush1.bf16.xpose.msra.mxu0 %v3145
        %3269 = vmatprep.subr.bf16.mxu0 %v3150
        %3270 = vmatpush1.bf16.xpose.msra.mxu0 %v3149
        %3271 = vmatprep.subr.bf16.mxu0 %v3154
        %3272 = vmatpush1.bf16.xpose.msra.mxu0 %v3153
        %3273 = vmatprep.subr.bf16.mxu0 %v3158
        %3274 = vmatpush1.bf16.xpose.msra.mxu0 %v3157
        %3275 = vmatprep.subr.bf16.mxu0 %v3162
        %3276 = vmatpush1.bf16.xpose.msra.mxu0 %v3161
        %3277 = vmatprep.subr.bf16.mxu0 %v3166
        %3278 = vmatpush1.bf16.xpose.msra.mxu0 %v3165
        %3279 = vmatprep.subr.bf16.mxu0 %v3170
        %3280 = vmatpush1.bf16.xpose.msra.mxu0 %v3169
        %3281 = vmatprep.subr.bf16.mxu0 %v3174
        %3282 = vmatpush1.bf16.xpose.msra.mxu0 %v3173
        %3283 = vmatprep.subr.bf16.mxu0 %v3178
        %3284 = vmatpush1.bf16.xpose.msra.mxu0 %v3177
        %3285 = vmatprep.subr.bf16.mxu0 %v3182
        %3286 = vmatpush1.bf16.xpose.msra.mxu0 %v3181
        %3287 = vmatprep.subr.bf16.mxu0 %v3186
        %3288 = vmatpush1.bf16.xpose.msra.mxu0 %v3185
        %3289 = vmatprep.subr.bf16.mxu0 %v3190
        %3290 = vmatpush1.bf16.xpose.msra.mxu0 %v3189
        %3291 = vmatprep.subr.bf16.mxu0 %v3194
        %3292 = vmatpush1.bf16.xpose.msra.mxu0 %v3193
        %3293 = vmatprep.mubr.bf16.mxu0 %v2814
        %3294 = vmatmul.mubr.bf16.gmra.mrb[0].mxu0 %v2813
        %v3295 = vpop.f32.mrb[0].mxu0
        %v3296 = vadd.f32 0.0, %v3295
        %v3297 = vpop.f32.mrb[0].mxu0
        %v3298 = vadd.f32 0.0, %v3297
        %v3299 = vpop.f32.mrb[0].mxu0
        %v3300 = vadd.f32 0.0, %v3299
        %v3301 = vpop.f32.mrb[0].mxu0
        %v3302 = vadd.f32 0.0, %v3301
        %3303 = vmatprep.mubr.bf16.mxu0 %v2818
        %3304 = vmatmul.mubr.bf16.gmra.mrb[0].mxu0 %v2817
        %v3305 = vpop.f32.mrb[0].mxu0
        %v3306 = vadd.f32 0.0, %v3305
        %v3307 = vpop.f32.mrb[0].mxu0
        %v3308 = vadd.f32 0.0, %v3307
        %v3309 = vpop.f32.mrb[0].mxu0
        %v3310 = vadd.f32 0.0, %v3309
        %v3311 = vpop.f32.mrb[0].mxu0
        %v3312 = vadd.f32 0.0, %v3311
        %3313 = vmatprep.mubr.bf16.mxu0 %v2822
        %3314 = vmatmul.mubr.bf16.gmra.mrb[0].mxu0 %v2821
        %v3315 = vpop.f32.mrb[0].mxu0
        %v3316 = vadd.f32 0.0, %v3315
        %v3317 = vpop.f32.mrb[0].mxu0
        %v3318 = vadd.f32 0.0, %v3317
        %v3319 = vpop.f32.mrb[0].mxu0
        %v3320 = vadd.f32 0.0, %v3319
        %v3321 = vpop.f32.mrb[0].mxu0
        %v3322 = vadd.f32 0.0, %v3321
        %3323 = vmatprep.mubr.bf16.mxu0 %v2826
        %3324 = vmatmul.mubr.bf16.gmra.mrb[0].mxu0 %v2825
        %v3325 = vpop.f32.mrb[0].mxu0
        %v3326 = vadd.f32 0.0, %v3325
        %v3327 = vpop.f32.mrb[0].mxu0
        %v3328 = vadd.f32 0.0, %v3327
        %v3329 = vpop.f32.mrb[0].mxu0
        %v3330 = vadd.f32 0.0, %v3329
        %v3331 = vpop.f32.mrb[0].mxu0
        %v3332 = vadd.f32 0.0, %v3331
        %3333 = vmatprep.mubr.bf16.mxu0 %v2830
        %3334 = vmatmul.mubr.bf16.gmra.mrb[0].mxu0 %v2829
        %v3335 = vpop.f32.mrb[0].mxu0
        %v3336 = vadd.f32 0.0, %v3335
        %v3337 = vpop.f32.mrb[0].mxu0
        %v3338 = vadd.f32 0.0, %v3337
        %v3339 = vpop.f32.mrb[0].mxu0
        %v3340 = vadd.f32 0.0, %v3339
        %v3341 = vpop.f32.mrb[0].mxu0
        %v3342 = vadd.f32 0.0, %v3341
        %3343 = vmatprep.mubr.bf16.mxu0 %v2834
        %3344 = vmatmul.mubr.bf16.gmra.mrb[0].mxu0 %v2833
        %v3345 = vpop.f32.mrb[0].mxu0
        %v3346 = vadd.f32 0.0, %v3345
        %v3347 = vpop.f32.mrb[0].mxu0
        %v3348 = vadd.f32 0.0, %v3347
        %v3349 = vpop.f32.mrb[0].mxu0
        %v3350 = vadd.f32 0.0, %v3349
        %v3351 = vpop.f32.mrb[0].mxu0
        %v3352 = vadd.f32 0.0, %v3351
        %3353 = vmatprep.mubr.bf16.mxu0 %v2838
        %3354 = vmatmul.mubr.bf16.gmra.mrb[0].mxu0 %v2837
        %v3355 = vpop.f32.mrb[0].mxu0
        %v3356 = vadd.f32 0.0, %v3355
        %v3357 = vpop.f32.mrb[0].mxu0
        %v3358 = vadd.f32 0.0, %v3357
        %v3359 = vpop.f32.mrb[0].mxu0
        %v3360 = vadd.f32 0.0, %v3359
        %v3361 = vpop.f32.mrb[0].mxu0
        %v3362 = vadd.f32 0.0, %v3361
        %3363 = vmatprep.mubr.bf16.mxu0 %v2842
        %3364 = vmatmul.mubr.bf16.gmra.mrb[0].mxu0 %v2841
        %v3365 = vpop.f32.mrb[0].mxu0
        %v3366 = vadd.f32 0.0, %v3365
        %v3367 = vpop.f32.mrb[0].mxu0
        %v3368 = vadd.f32 0.0, %v3367
        %v3369 = vpop.f32.mrb[0].mxu0
        %v3370 = vadd.f32 0.0, %v3369
        %v3371 = vpop.f32.mrb[0].mxu0
        %v3372 = vadd.f32 0.0, %v3371
        %3373 = vmatprep.mubr.bf16.mxu0 %v2846
        %3374 = vmatmul.mubr.bf16.gmra.mrb[0].mxu0 %v2845
        %v3375 = vpop.f32.mrb[0].mxu0
        %v3376 = vadd.f32 0.0, %v3375
        %v3377 = vpop.f32.mrb[0].mxu0
        %v3378 = vadd.f32 0.0, %v3377
        %v3379 = vpop.f32.mrb[0].mxu0
        %v3380 = vadd.f32 0.0, %v3379
        %v3381 = vpop.f32.mrb[0].mxu0
        %v3382 = vadd.f32 0.0, %v3381
        %3383 = vmatprep.mubr.bf16.mxu0 %v2850
        %3384 = vmatmul.mubr.bf16.gmra.mrb[0].mxu0 %v2849
        %v3385 = vpop.f32.mrb[0].mxu0
        %v3386 = vadd.f32 0.0, %v3385
        %v3387 = vpop.f32.mrb[0].mxu0
        %v3388 = vadd.f32 0.0, %v3387
        %v3389 = vpop.f32.mrb[0].mxu0
        %v3390 = vadd.f32 0.0, %v3389
        %v3391 = vpop.f32.mrb[0].mxu0
        %v3392 = vadd.f32 0.0, %v3391
        %3393 = vmatprep.mubr.bf16.mxu0 %v2854
        %3394 = vmatmul.mubr.bf16.gmra.mrb[0].mxu0 %v2853
        %v3395 = vpop.f32.mrb[0].mxu0
        %v3396 = vadd.f32 0.0, %v3395
        %v3397 = vpop.f32.mrb[0].mxu0
        %v3398 = vadd.f32 0.0, %v3397
        %v3399 = vpop.f32.mrb[0].mxu0
        %v3400 = vadd.f32 0.0, %v3399
        %v3401 = vpop.f32.mrb[0].mxu0
        %v3402 = vadd.f32 0.0, %v3401
        %3403 = vmatprep.mubr.bf16.mxu0 %v2858
        %3404 = vmatmul.mubr.bf16.gmra.mrb[0].mxu0 %v2857
        %v3405 = vpop.f32.mrb[0].mxu0
        %v3406 = vadd.f32 0.0, %v3405
        %v3407 = vpop.f32.mrb[0].mxu0
        %v3408 = vadd.f32 0.0, %v3407
        %v3409 = vpop.f32.mrb[0].mxu0
        %v3410 = vadd.f32 0.0, %v3409
        %v3411 = vpop.f32.mrb[0].mxu0
        %v3412 = vadd.f32 0.0, %v3411
        %3413 = vmatprep.mubr.bf16.mxu0 %v2862
        %3414 = vmatmul.mubr.bf16.gmra.mrb[0].mxu0 %v2861
        %v3415 = vpop.f32.mrb[0].mxu0
        %v3416 = vadd.f32 0.0, %v3415
        %v3417 = vpop.f32.mrb[0].mxu0
        %v3418 = vadd.f32 0.0, %v3417
        %v3419 = vpop.f32.mrb[0].mxu0
        %v3420 = vadd.f32 0.0, %v3419
        %v3421 = vpop.f32.mrb[0].mxu0
        %v3422 = vadd.f32 0.0, %v3421
        %3423 = vmatprep.mubr.bf16.mxu0 %v2866
        %3424 = vmatmul.mubr.bf16.gmra.mrb[0].mxu0 %v2865
        %v3425 = vpop.f32.mrb[0].mxu0
        %v3426 = vadd.f32 0.0, %v3425
        %v3427 = vpop.f32.mrb[0].mxu0
        %v3428 = vadd.f32 0.0, %v3427
        %v3429 = vpop.f32.mrb[0].mxu0
        %v3430 = vadd.f32 0.0, %v3429
        %v3431 = vpop.f32.mrb[0].mxu0
        %v3432 = vadd.f32 0.0, %v3431
        %3433 = vmatprep.mubr.bf16.mxu0 %v2870
        %3434 = vmatmul.mubr.bf16.gmra.mrb[0].mxu0 %v2869
        %v3435 = vpop.f32.mrb[0].mxu0
        %v3436 = vadd.f32 0.0, %v3435
        %v3437 = vpop.f32.mrb[0].mxu0
        %v3438 = vadd.f32 0.0, %v3437
        %v3439 = vpop.f32.mrb[0].mxu0
        %v3440 = vadd.f32 0.0, %v3439
        %v3441 = vpop.f32.mrb[0].mxu0
        %v3442 = vadd.f32 0.0, %v3441
        %3443 = vmatprep.mubr.bf16.mxu0 %v2874
        %3444 = vmatmul.mubr.bf16.gmra.mrb[0].mxu0 %v2873
        %v3445 = vpop.f32.mrb[0].mxu0
        %v3446 = vadd.f32 0.0, %v3445
        %v3447 = vpop.f32.mrb[0].mxu0
        %v3448 = vadd.f32 0.0, %v3447
        %v3449 = vpop.f32.mrb[0].mxu0
        %v3450 = vadd.f32 0.0, %v3449
        %v3451 = vpop.f32.mrb[0].mxu0
        %v3452 = vadd.f32 0.0, %v3451
        %3453 = vdwg.mxu0
        %3454 = vmatprep.subr.bf16.mxu0 %v3136
        %3455 = vmatpush1.bf16.xpose.msra.mxu0 %v3135
        %3456 = vmatprep.subr.bf16.mxu0 %v3140
        %3457 = vmatpush1.bf16.xpose.msra.mxu0 %v3139
        %3458 = vmatprep.subr.bf16.mxu0 %v3144
        %3459 = vmatpush1.bf16.xpose.msra.mxu0 %v3143
        %3460 = vmatprep.subr.bf16.mxu0 %v3148
        %3461 = vmatpush1.bf16.xpose.msra.mxu0 %v3147
        %3462 = vmatprep.subr.bf16.mxu0 %v3152
        %3463 = vmatpush1.bf16.xpose.msra.mxu0 %v3151
        %3464 = vmatprep.subr.bf16.mxu0 %v3156
        %3465 = vmatpush1.bf16.xpose.msra.mxu0 %v3155
        %3466 = vmatprep.subr.bf16.mxu0 %v3160
        %3467 = vmatpush1.bf16.xpose.msra.mxu0 %v3159
        %3468 = vmatprep.subr.bf16.mxu0 %v3164
        %3469 = vmatpush1.bf16.xpose.msra.mxu0 %v3163
        %3470 = vmatprep.subr.bf16.mxu0 %v3168
        %3471 = vmatpush1.bf16.xpose.msra.mxu0 %v3167
        %3472 = vmatprep.subr.bf16.mxu0 %v3172
        %3473 = vmatpush1.bf16.xpose.msra.mxu0 %v3171
        %3474 = vmatprep.subr.bf16.mxu0 %v3176
        %3475 = vmatpush1.bf16.xpose.msra.mxu0 %v3175
        %3476 = vmatprep.subr.bf16.mxu0 %v3180
        %3477 = vmatpush1.bf16.xpose.msra.mxu0 %v3179
        %3478 = vmatprep.subr.bf16.mxu0 %v3184
        %3479 = vmatpush1.bf16.xpose.msra.mxu0 %v3183
        %3480 = vmatprep.subr.bf16.mxu0 %v3188
        %3481 = vmatpush1.bf16.xpose.msra.mxu0 %v3187
        %3482 = vmatprep.subr.bf16.mxu0 %v3192
        %3483 = vmatpush1.bf16.xpose.msra.mxu0 %v3191
        %3484 = vmatprep.subr.bf16.mxu0 %v3196
        %3485 = vmatpush1.bf16.xpose.msra.mxu0 %v3195
        %3486 = vmatprep.mubr.bf16.mxu0 %v2816
        %3487 = vmatmul.mubr.bf16.gmra.mrb[0].mxu0 %v2815
        %v3488 = vpop.f32.mrb[0].mxu0
        %v3489 = vadd.f32 %v3296, %v3488
        %v3490 = vpop.f32.mrb[0].mxu0
        %v3491 = vadd.f32 %v3298, %v3490
        %v3492 = vpop.f32.mrb[0].mxu0
        %v3493 = vadd.f32 %v3300, %v3492
        %v3494 = vpop.f32.mrb[0].mxu0
        %v3495 = vadd.f32 %v3302, %v3494
        %3496 = vmatprep.mubr.bf16.mxu0 %v2820
        %3497 = vmatmul.mubr.bf16.gmra.mrb[0].mxu0 %v2819
        %v3498 = vpop.f32.mrb[0].mxu0
        %v3499 = vadd.f32 %v3306, %v3498
        %v3500 = vpop.f32.mrb[0].mxu0
        %v3501 = vadd.f32 %v3308, %v3500
        %v3502 = vpop.f32.mrb[0].mxu0
        %v3503 = vadd.f32 %v3310, %v3502
        %v3504 = vpop.f32.mrb[0].mxu0
        %v3505 = vadd.f32 %v3312, %v3504
        %3506 = vmatprep.mubr.bf16.mxu0 %v2824
        %3507 = vmatmul.mubr.bf16.gmra.mrb[0].mxu0 %v2823
        %v3508 = vpop.f32.mrb[0].mxu0
        %v3509 = vadd.f32 %v3316, %v3508
        %v3510 = vpop.f32.mrb[0].mxu0
        %v3511 = vadd.f32 %v3318, %v3510
        %v3512 = vpop.f32.mrb[0].mxu0
        %v3513 = vadd.f32 %v3320, %v3512
        %v3514 = vpop.f32.mrb[0].mxu0
        %v3515 = vadd.f32 %v3322, %v3514
        %3516 = vmatprep.mubr.bf16.mxu0 %v2828
        %3517 = vmatmul.mubr.bf16.gmra.mrb[0].mxu0 %v2827
        %v3518 = vpop.f32.mrb[0].mxu0
        %v3519 = vadd.f32 %v3326, %v3518
        %v3520 = vpop.f32.mrb[0].mxu0
        %v3521 = vadd.f32 %v3328, %v3520
        %v3522 = vpop.f32.mrb[0].mxu0
        %v3523 = vadd.f32 %v3330, %v3522
        %v3524 = vpop.f32.mrb[0].mxu0
        %v3525 = vadd.f32 %v3332, %v3524
        %3526 = vmatprep.mubr.bf16.mxu0 %v2832
        %3527 = vmatmul.mubr.bf16.gmra.mrb[0].mxu0 %v2831
        %v3528 = vpop.f32.mrb[0].mxu0
        %v3529 = vadd.f32 %v3336, %v3528
        %v3530 = vpop.f32.mrb[0].mxu0
        %v3531 = vadd.f32 %v3338, %v3530
        %v3532 = vpop.f32.mrb[0].mxu0
        %v3533 = vadd.f32 %v3340, %v3532
        %v3534 = vpop.f32.mrb[0].mxu0
        %v3535 = vadd.f32 %v3342, %v3534
        %3536 = vmatprep.mubr.bf16.mxu0 %v2836
        %3537 = vmatmul.mubr.bf16.gmra.mrb[0].mxu0 %v2835
        %v3538 = vpop.f32.mrb[0].mxu0
        %v3539 = vadd.f32 %v3346, %v3538
        %v3540 = vpop.f32.mrb[0].mxu0
        %v3541 = vadd.f32 %v3348, %v3540
        %v3542 = vpop.f32.mrb[0].mxu0
        %v3543 = vadd.f32 %v3350, %v3542
        %v3544 = vpop.f32.mrb[0].mxu0
        %v3545 = vadd.f32 %v3352, %v3544
        %3546 = vmatprep.mubr.bf16.mxu0 %v2840
        %3547 = vmatmul.mubr.bf16.gmra.mrb[0].mxu0 %v2839
        %v3548 = vpop.f32.mrb[0].mxu0
        %v3549 = vadd.f32 %v3356, %v3548
        %v3550 = vpop.f32.mrb[0].mxu0
        %v3551 = vadd.f32 %v3358, %v3550
        %v3552 = vpop.f32.mrb[0].mxu0
        %v3553 = vadd.f32 %v3360, %v3552
        %v3554 = vpop.f32.mrb[0].mxu0
        %v3555 = vadd.f32 %v3362, %v3554
        %3556 = vmatprep.mubr.bf16.mxu0 %v2844
        %3557 = vmatmul.mubr.bf16.gmra.mrb[0].mxu0 %v2843
        %v3558 = vpop.f32.mrb[0].mxu0
        %v3559 = vadd.f32 %v3366, %v3558
        %v3560 = vpop.f32.mrb[0].mxu0
        %v3561 = vadd.f32 %v3368, %v3560
        %v3562 = vpop.f32.mrb[0].mxu0
        %v3563 = vadd.f32 %v3370, %v3562
        %v3564 = vpop.f32.mrb[0].mxu0
        %v3565 = vadd.f32 %v3372, %v3564
        %3566 = vmatprep.mubr.bf16.mxu0 %v2848
        %3567 = vmatmul.mubr.bf16.gmra.mrb[0].mxu0 %v2847
        %v3568 = vpop.f32.mrb[0].mxu0
        %v3569 = vadd.f32 %v3376, %v3568
        %v3570 = vpop.f32.mrb[0].mxu0
        %v3571 = vadd.f32 %v3378, %v3570
        %v3572 = vpop.f32.mrb[0].mxu0
        %v3573 = vadd.f32 %v3380, %v3572
        %v3574 = vpop.f32.mrb[0].mxu0
        %v3575 = vadd.f32 %v3382, %v3574
        %3576 = vmatprep.mubr.bf16.mxu0 %v2852
        %3577 = vmatmul.mubr.bf16.gmra.mrb[0].mxu0 %v2851
        %v3578 = vpop.f32.mrb[0].mxu0
        %v3579 = vadd.f32 %v3386, %v3578
        %v3580 = vpop.f32.mrb[0].mxu0
        %v3581 = vadd.f32 %v3388, %v3580
        %v3582 = vpop.f32.mrb[0].mxu0
        %v3583 = vadd.f32 %v3390, %v3582
        %v3584 = vpop.f32.mrb[0].mxu0
        %v3585 = vadd.f32 %v3392, %v3584
        %3586 = vmatprep.mubr.bf16.mxu0 %v2856
        %3587 = vmatmul.mubr.bf16.gmra.mrb[0].mxu0 %v2855
        %v3588 = vpop.f32.mrb[0].mxu0
        %v3589 = vadd.f32 %v3396, %v3588
        %v3590 = vpop.f32.mrb[0].mxu0
        %v3591 = vadd.f32 %v3398, %v3590
        %v3592 = vpop.f32.mrb[0].mxu0
        %v3593 = vadd.f32 %v3400, %v3592
        %v3594 = vpop.f32.mrb[0].mxu0
        %v3595 = vadd.f32 %v3402, %v3594
        %3596 = vmatprep.mubr.bf16.mxu0 %v2860
        %3597 = vmatmul.mubr.bf16.gmra.mrb[0].mxu0 %v2859
        %v3598 = vpop.f32.mrb[0].mxu0
        %v3599 = vadd.f32 %v3406, %v3598
        %v3600 = vpop.f32.mrb[0].mxu0
        %v3601 = vadd.f32 %v3408, %v3600
        %v3602 = vpop.f32.mrb[0].mxu0
        %v3603 = vadd.f32 %v3410, %v3602
        %v3604 = vpop.f32.mrb[0].mxu0
        %v3605 = vadd.f32 %v3412, %v3604
        %3606 = vmatprep.mubr.bf16.mxu0 %v2864
        %3607 = vmatmul.mubr.bf16.gmra.mrb[0].mxu0 %v2863
        %v3608 = vpop.f32.mrb[0].mxu0
        %v3609 = vadd.f32 %v3416, %v3608
        %v3610 = vpop.f32.mrb[0].mxu0
        %v3611 = vadd.f32 %v3418, %v3610
        %v3612 = vpop.f32.mrb[0].mxu0
        %v3613 = vadd.f32 %v3420, %v3612
        %v3614 = vpop.f32.mrb[0].mxu0
        %v3615 = vadd.f32 %v3422, %v3614
        %3616 = vmatprep.mubr.bf16.mxu0 %v2868
        %3617 = vmatmul.mubr.bf16.gmra.mrb[0].mxu0 %v2867
        %v3618 = vpop.f32.mrb[0].mxu0
        %v3619 = vadd.f32 %v3426, %v3618
        %v3620 = vpop.f32.mrb[0].mxu0
        %v3621 = vadd.f32 %v3428, %v3620
        %v3622 = vpop.f32.mrb[0].mxu0
        %v3623 = vadd.f32 %v3430, %v3622
        %v3624 = vpop.f32.mrb[0].mxu0
        %v3625 = vadd.f32 %v3432, %v3624
        %3626 = vmatprep.mubr.bf16.mxu0 %v2872
        %3627 = vmatmul.mubr.bf16.gmra.mrb[0].mxu0 %v2871
        %v3628 = vpop.f32.mrb[0].mxu0
        %v3629 = vadd.f32 %v3436, %v3628
        %v3630 = vpop.f32.mrb[0].mxu0
        %v3631 = vadd.f32 %v3438, %v3630
        %v3632 = vpop.f32.mrb[0].mxu0
        %v3633 = vadd.f32 %v3440, %v3632
        %v3634 = vpop.f32.mrb[0].mxu0
        %v3635 = vadd.f32 %v3442, %v3634
        %3636 = vmatprep.mubr.bf16.mxu0 %v2876
        %3637 = vmatmul.mubr.bf16.gmra.mrb[0].mxu0 %v2875
        %v3638 = vpop.f32.mrb[0].mxu0
        %v3639 = vadd.f32 %v3446, %v3638
        %v3640 = vpop.f32.mrb[0].mxu0
        %v3641 = vadd.f32 %v3448, %v3640
        %v3642 = vpop.f32.mrb[0].mxu0
        %v3643 = vadd.f32 %v3450, %v3642
        %v3644 = vpop.f32.mrb[0].mxu0
        %v3645 = vadd.f32 %v3452, %v3644
        %3646 = vdwg.mxu0
        %v3647 = vmul.f32 %v1517, 0.088388346
        %v3648 = vmul.f32 %v1519, 0.088388346
        %v3649 = vmul.f32 %v1521, 0.088388346
        %v3650 = vmul.f32 %v1523, 0.088388346
        %v3651 = vmul.f32 %v1527, 0.088388346
        %v3652 = vmul.f32 %v1529, 0.088388346
        %v3653 = vmul.f32 %v1531, 0.088388346
        %v3654 = vmul.f32 %v1533, 0.088388346
        %v3655 = vmul.f32 %v1537, 0.088388346
        %v3656 = vmul.f32 %v1539, 0.088388346
        %v3657 = vmul.f32 %v1541, 0.088388346
        %v3658 = vmul.f32 %v1543, 0.088388346
        %v3659 = vmul.f32 %v1547, 0.088388346
        %v3660 = vmul.f32 %v1549, 0.088388346
        %v3661 = vmul.f32 %v1551, 0.088388346
        %v3662 = vmul.f32 %v1553, 0.088388346
        %v3663 = vmul.f32 %v1557, 0.088388346
        %v3664 = vmul.f32 %v1559, 0.088388346
        %v3665 = vmul.f32 %v1561, 0.088388346
        %v3666 = vmul.f32 %v1563, 0.088388346
        %v3667 = vmul.f32 %v1567, 0.088388346
        %v3668 = vmul.f32 %v1569, 0.088388346
        %v3669 = vmul.f32 %v1571, 0.088388346
        %v3670 = vmul.f32 %v1573, 0.088388346
        %v3671 = vmul.f32 %v1577, 0.088388346
        %v3672 = vmul.f32 %v1579, 0.088388346
        %v3673 = vmul.f32 %v1581, 0.088388346
        %v3674 = vmul.f32 %v1583, 0.088388346
        %v3675 = vmul.f32 %v1587, 0.088388346
        %v3676 = vmul.f32 %v1589, 0.088388346
        %v3677 = vmul.f32 %v1591, 0.088388346
        %v3678 = vmul.f32 %v1593, 0.088388346
        %v3679 = vpack.c.bf16 %v3649, %v3647
        %v3680 = vpack.c.bf16 %v3650, %v3648
        %v3681 = vpack.c.bf16 %v3653, %v3651
        %v3682 = vpack.c.bf16 %v3654, %v3652
        %v3683 = vpack.c.bf16 %v3657, %v3655
        %v3684 = vpack.c.bf16 %v3658, %v3656
        %v3685 = vpack.c.bf16 %v3661, %v3659
        %v3686 = vpack.c.bf16 %v3662, %v3660
        %v3687 = vpack.c.bf16 %v3665, %v3663
        %v3688 = vpack.c.bf16 %v3666, %v3664
        %v3689 = vpack.c.bf16 %v3669, %v3667
        %v3690 = vpack.c.bf16 %v3670, %v3668
        %v3691 = vpack.c.bf16 %v3673, %v3671
        %v3692 = vpack.c.bf16 %v3674, %v3672
        %v3693 = vpack.c.bf16 %v3677, %v3675
        %v3694 = vpack.c.bf16 %v3678, %v3676
        %v3695 = vpack.c.bf16 %v2467, %v2463
        %v3696 = vpack.c.bf16 %v2469, %v2465
        %v3697 = vpack.c.bf16 %v2477, %v2473
        %v3698 = vpack.c.bf16 %v2479, %v2475
        %v3699 = vpack.c.bf16 %v2487, %v2483
        %v3700 = vpack.c.bf16 %v2489, %v2485
        %v3701 = vpack.c.bf16 %v2497, %v2493
        %v3702 = vpack.c.bf16 %v2499, %v2495
        %v3703 = vpack.c.bf16 %v2507, %v2503
        %v3704 = vpack.c.bf16 %v2509, %v2505
        %v3705 = vpack.c.bf16 %v2517, %v2513
        %v3706 = vpack.c.bf16 %v2519, %v2515
        %v3707 = vpack.c.bf16 %v2527, %v2523
        %v3708 = vpack.c.bf16 %v2529, %v2525
        %v3709 = vpack.c.bf16 %v2537, %v2533
        %v3710 = vpack.c.bf16 %v2539, %v2535
        %v3711 = vpack.c.bf16 %v2547, %v2543
        %v3712 = vpack.c.bf16 %v2549, %v2545
        %v3713 = vpack.c.bf16 %v2557, %v2553
        %v3714 = vpack.c.bf16 %v2559, %v2555
        %v3715 = vpack.c.bf16 %v2567, %v2563
        %v3716 = vpack.c.bf16 %v2569, %v2565
        %v3717 = vpack.c.bf16 %v2577, %v2573
        %v3718 = vpack.c.bf16 %v2579, %v2575
        %v3719 = vpack.c.bf16 %v2587, %v2583
        %v3720 = vpack.c.bf16 %v2589, %v2585
        %v3721 = vpack.c.bf16 %v2597, %v2593
        %v3722 = vpack.c.bf16 %v2599, %v2595
        %v3723 = vpack.c.bf16 %v2607, %v2603
        %v3724 = vpack.c.bf16 %v2609, %v2605
        %v3725 = vpack.c.bf16 %v2617, %v2613
        %v3726 = vpack.c.bf16 %v2619, %v2615
        %v3727 = vpack.c.bf16 %v3493, %v3489
        %v3728 = vpack.c.bf16 %v3495, %v3491
        %v3729 = vpack.c.bf16 %v3503, %v3499
        %v3730 = vpack.c.bf16 %v3505, %v3501
        %v3731 = vpack.c.bf16 %v3513, %v3509
        %v3732 = vpack.c.bf16 %v3515, %v3511
        %v3733 = vpack.c.bf16 %v3523, %v3519
        %v3734 = vpack.c.bf16 %v3525, %v3521
        %v3735 = vpack.c.bf16 %v3533, %v3529
        %v3736 = vpack.c.bf16 %v3535, %v3531
        %v3737 = vpack.c.bf16 %v3543, %v3539
        %v3738 = vpack.c.bf16 %v3545, %v3541
        %v3739 = vpack.c.bf16 %v3553, %v3549
        %v3740 = vpack.c.bf16 %v3555, %v3551
        %v3741 = vpack.c.bf16 %v3563, %v3559
        %v3742 = vpack.c.bf16 %v3565, %v3561
        %v3743 = vpack.c.bf16 %v3573, %v3569
        %v3744 = vpack.c.bf16 %v3575, %v3571
        %v3745 = vpack.c.bf16 %v3583, %v3579
        %v3746 = vpack.c.bf16 %v3585, %v3581
        %v3747 = vpack.c.bf16 %v3593, %v3589
        %v3748 = vpack.c.bf16 %v3595, %v3591
        %v3749 = vpack.c.bf16 %v3603, %v3599
        %v3750 = vpack.c.bf16 %v3605, %v3601
        %v3751 = vpack.c.bf16 %v3613, %v3609
        %v3752 = vpack.c.bf16 %v3615, %v3611
        %v3753 = vpack.c.bf16 %v3623, %v3619
        %v3754 = vpack.c.bf16 %v3625, %v3621
        %v3755 = vpack.c.bf16 %v3633, %v3629
        %v3756 = vpack.c.bf16 %v3635, %v3631
        %v3757 = vpack.c.bf16 %v3643, %v3639
        %v3758 = vpack.c.bf16 %v3645, %v3641
        %3759 = vmatprep.subr.bf16.mxu0 0
        %3760 = vmatpush1.bf16.xpose.msra.mxu0 %v3695
        %3761 = vmatprep.subr.bf16.mxu0 0
        %3762 = vmatpush1.bf16.xpose.msra.mxu0 %v3697
        %3763 = vmatprep.subr.bf16.mxu0 0
        %3764 = vmatpush1.bf16.xpose.msra.mxu0 %v3699
        %3765 = vmatprep.subr.bf16.mxu0 0
        %3766 = vmatpush1.bf16.xpose.msra.mxu0 %v3701
        %3767 = vmatprep.subr.bf16.mxu0 0
        %3768 = vmatpush1.bf16.xpose.msra.mxu0 %v3703
        %3769 = vmatprep.subr.bf16.mxu0 0
        %3770 = vmatpush1.bf16.xpose.msra.mxu0 %v3705
        %3771 = vmatprep.subr.bf16.mxu0 0
        %3772 = vmatpush1.bf16.xpose.msra.mxu0 %v3707
        %3773 = vmatprep.subr.bf16.mxu0 0
        %3774 = vmatpush1.bf16.xpose.msra.mxu0 %v3709
        %3775 = vmatprep.subr.bf16.mxu0 0
        %3776 = vmatpush1.bf16.xpose.msra.mxu0 %v3711
        %3777 = vmatprep.subr.bf16.mxu0 0
        %3778 = vmatpush1.bf16.xpose.msra.mxu0 %v3713
        %3779 = vmatprep.subr.bf16.mxu0 0
        %3780 = vmatpush1.bf16.xpose.msra.mxu0 %v3715
        %3781 = vmatprep.subr.bf16.mxu0 0
        %3782 = vmatpush1.bf16.xpose.msra.mxu0 %v3717
        %3783 = vmatprep.subr.bf16.mxu0 0
        %3784 = vmatpush1.bf16.xpose.msra.mxu0 %v3719
        %3785 = vmatprep.subr.bf16.mxu0 0
        %3786 = vmatpush1.bf16.xpose.msra.mxu0 %v3721
        %3787 = vmatprep.subr.bf16.mxu0 0
        %3788 = vmatpush1.bf16.xpose.msra.mxu0 %v3723
        %3789 = vmatprep.subr.bf16.mxu0 0
        %3790 = vmatpush1.bf16.xpose.msra.mxu0 %v3725
        %3791 = vmatprep.mubr.bf16.mxu0 0
        %3792 = vmatmul.mubr.bf16.gmra.mrb[0].mxu0 %v3679
        %v3793 = vpop.f32.mrb[0].mxu0
        %v3794 = vadd.f32 0.0, %v3793
        %v3795 = vpop.f32.mrb[0].mxu0
        %v3796 = vadd.f32 0.0, %v3795
        %v3797 = vpop.f32.mrb[0].mxu0
        %v3798 = vadd.f32 0.0, %v3797
        %v3799 = vpop.f32.mrb[0].mxu0
        %v3800 = vadd.f32 0.0, %v3799
        %3801 = vmatprep.mubr.bf16.mxu0 0
        %3802 = vmatmul.mubr.bf16.gmra.mrb[0].mxu0 %v3681
        %v3803 = vpop.f32.mrb[0].mxu0
        %v3804 = vadd.f32 0.0, %v3803
        %v3805 = vpop.f32.mrb[0].mxu0
        %v3806 = vadd.f32 0.0, %v3805
        %v3807 = vpop.f32.mrb[0].mxu0
        %v3808 = vadd.f32 0.0, %v3807
        %v3809 = vpop.f32.mrb[0].mxu0
        %v3810 = vadd.f32 0.0, %v3809
        %3811 = vmatprep.mubr.bf16.mxu0 0
        %3812 = vmatmul.mubr.bf16.gmra.mrb[0].mxu0 %v3683
        %v3813 = vpop.f32.mrb[0].mxu0
        %v3814 = vadd.f32 0.0, %v3813
        %v3815 = vpop.f32.mrb[0].mxu0
        %v3816 = vadd.f32 0.0, %v3815
        %v3817 = vpop.f32.mrb[0].mxu0
        %v3818 = vadd.f32 0.0, %v3817
        %v3819 = vpop.f32.mrb[0].mxu0
        %v3820 = vadd.f32 0.0, %v3819
        %3821 = vmatprep.mubr.bf16.mxu0 0
        %3822 = vmatmul.mubr.bf16.gmra.mrb[0].mxu0 %v3685
        %v3823 = vpop.f32.mrb[0].mxu0
        %v3824 = vadd.f32 0.0, %v3823
        %v3825 = vpop.f32.mrb[0].mxu0
        %v3826 = vadd.f32 0.0, %v3825
        %v3827 = vpop.f32.mrb[0].mxu0
        %v3828 = vadd.f32 0.0, %v3827
        %v3829 = vpop.f32.mrb[0].mxu0
        %v3830 = vadd.f32 0.0, %v3829
        %3831 = vmatprep.mubr.bf16.mxu0 0
        %3832 = vmatmul.mubr.bf16.gmra.mrb[0].mxu0 %v3687
        %v3833 = vpop.f32.mrb[0].mxu0
        %v3834 = vadd.f32 0.0, %v3833
        %v3835 = vpop.f32.mrb[0].mxu0
        %v3836 = vadd.f32 0.0, %v3835
        %v3837 = vpop.f32.mrb[0].mxu0
        %v3838 = vadd.f32 0.0, %v3837
        %v3839 = vpop.f32.mrb[0].mxu0
        %v3840 = vadd.f32 0.0, %v3839
        %3841 = vmatprep.mubr.bf16.mxu0 0
        %3842 = vmatmul.mubr.bf16.gmra.mrb[0].mxu0 %v3689
        %v3843 = vpop.f32.mrb[0].mxu0
        %v3844 = vadd.f32 0.0, %v3843
        %v3845 = vpop.f32.mrb[0].mxu0
        %v3846 = vadd.f32 0.0, %v3845
        %v3847 = vpop.f32.mrb[0].mxu0
        %v3848 = vadd.f32 0.0, %v3847
        %v3849 = vpop.f32.mrb[0].mxu0
        %v3850 = vadd.f32 0.0, %v3849
        %3851 = vmatprep.mubr.bf16.mxu0 0
        %3852 = vmatmul.mubr.bf16.gmra.mrb[0].mxu0 %v3691
        %v3853 = vpop.f32.mrb[0].mxu0
        %v3854 = vadd.f32 0.0, %v3853
        %v3855 = vpop.f32.mrb[0].mxu0
        %v3856 = vadd.f32 0.0, %v3855
        %v3857 = vpop.f32.mrb[0].mxu0
        %v3858 = vadd.f32 0.0, %v3857
        %v3859 = vpop.f32.mrb[0].mxu0
        %v3860 = vadd.f32 0.0, %v3859
        %3861 = vmatprep.mubr.bf16.mxu0 0
        %3862 = vmatmul.mubr.bf16.gmra.mrb[0].mxu0 %v3693
        %v3863 = vpop.f32.mrb[0].mxu0
        %v3864 = vadd.f32 0.0, %v3863
        %v3865 = vpop.f32.mrb[0].mxu0
        %v3866 = vadd.f32 0.0, %v3865
        %v3867 = vpop.f32.mrb[0].mxu0
        %v3868 = vadd.f32 0.0, %v3867
        %v3869 = vpop.f32.mrb[0].mxu0
        %v3870 = vadd.f32 0.0, %v3869
        %3871 = vdwg.mxu0
        %v3872 = vmax.f32 %v3794, %v3796
        %3873 = vmax.xlane.f32.xlu0 %v3872
        %v3874 = vpop.xlane.xlu0 %3873
        %v3875 = vmax.f32 %v3798, %v3800
        %3876 = vmax.xlane.f32.xlu0 %v3875
        %v3877 = vpop.xlane.xlu0 %3876
        %v3878 = vmax.f32 %v3804, %v3806
        %3879 = vmax.xlane.f32.xlu0 %v3878
        %v3880 = vpop.xlane.xlu0 %3879
        %v3881 = vmax.f32 %v3808, %v3810
        %3882 = vmax.xlane.f32.xlu0 %v3881
        %v3883 = vpop.xlane.xlu0 %3882
        %v3884 = vmax.f32 %v3814, %v3816
        %3885 = vmax.xlane.f32.xlu0 %v3884
        %v3886 = vpop.xlane.xlu0 %3885
        %v3887 = vmax.f32 %v3818, %v3820
        %3888 = vmax.xlane.f32.xlu0 %v3887
        %v3889 = vpop.xlane.xlu0 %3888
        %v3890 = vmax.f32 %v3824, %v3826
        %3891 = vmax.xlane.f32.xlu0 %v3890
        %v3892 = vpop.xlane.xlu0 %3891
        %v3893 = vmax.f32 %v3828, %v3830
        %3894 = vmax.xlane.f32.xlu0 %v3893
        %v3895 = vpop.xlane.xlu0 %3894
        %v3896 = vmax.f32 %v3834, %v3836
        %3897 = vmax.xlane.f32.xlu0 %v3896
        %v3898 = vpop.xlane.xlu0 %3897
        %v3899 = vmax.f32 %v3838, %v3840
        %3900 = vmax.xlane.f32.xlu0 %v3899
        %v3901 = vpop.xlane.xlu0 %3900
        %v3902 = vmax.f32 %v3844, %v3846
        %3903 = vmax.xlane.f32.xlu0 %v3902
        %v3904 = vpop.xlane.xlu0 %3903
        %v3905 = vmax.f32 %v3848, %v3850
        %3906 = vmax.xlane.f32.xlu0 %v3905
        %v3907 = vpop.xlane.xlu0 %3906
        %v3908 = vmax.f32 %v3854, %v3856
        %3909 = vmax.xlane.f32.xlu0 %v3908
        %v3910 = vpop.xlane.xlu0 %3909
        %v3911 = vmax.f32 %v3858, %v3860
        %3912 = vmax.xlane.f32.xlu0 %v3911
        %v3913 = vpop.xlane.xlu0 %3912
        %v3914 = vmax.f32 %v3864, %v3866
        %3915 = vmax.xlane.f32.xlu0 %v3914
        %v3916 = vpop.xlane.xlu0 %3915
        %v3917 = vmax.f32 %v3868, %v3870
        %3918 = vmax.xlane.f32.xlu0 %v3917
        %v3919 = vpop.xlane.xlu0 %3918
        %v3920 = vsub.f32 %v3794, %v3874
        %v3921 = vsub.f32 %v3796, %v3874
        %v3922 = vsub.f32 %v3798, %v3877
        %v3923 = vsub.f32 %v3800, %v3877
        %v3924 = vsub.f32 %v3804, %v3880
        %v3925 = vsub.f32 %v3806, %v3880
        %v3926 = vsub.f32 %v3808, %v3883
        %v3927 = vsub.f32 %v3810, %v3883
        %v3928 = vsub.f32 %v3814, %v3886
        %v3929 = vsub.f32 %v3816, %v3886
        %v3930 = vsub.f32 %v3818, %v3889
        %v3931 = vsub.f32 %v3820, %v3889
        %v3932 = vsub.f32 %v3824, %v3892
        %v3933 = vsub.f32 %v3826, %v3892
        %v3934 = vsub.f32 %v3828, %v3895
        %v3935 = vsub.f32 %v3830, %v3895
        %v3936 = vsub.f32 %v3834, %v3898
        %v3937 = vsub.f32 %v3836, %v3898
        %v3938 = vsub.f32 %v3838, %v3901
        %v3939 = vsub.f32 %v3840, %v3901
        %v3940 = vsub.f32 %v3844, %v3904
        %v3941 = vsub.f32 %v3846, %v3904
        %v3942 = vsub.f32 %v3848, %v3907
        %v3943 = vsub.f32 %v3850, %v3907
        %v3944 = vsub.f32 %v3854, %v3910
        %v3945 = vsub.f32 %v3856, %v3910
        %v3946 = vsub.f32 %v3858, %v3913
        %v3947 = vsub.f32 %v3860, %v3913
        %v3948 = vsub.f32 %v3864, %v3916
        %v3949 = vsub.f32 %v3866, %v3916
        %v3950 = vsub.f32 %v3868, %v3919
        %v3951 = vsub.f32 %v3870, %v3919
        %v3952 = vmul.f32 %v3920, 1.442695
        %v3953 = vpow.pop %v3952
        %v3954 = vmul.f32 %v3921, 1.442695
        %v3955 = vpow.pop %v3954
        %v3956 = vmul.f32 %v3922, 1.442695
        %v3957 = vpow.pop %v3956
        %v3958 = vmul.f32 %v3923, 1.442695
        %v3959 = vpow.pop %v3958
        %v3960 = vmul.f32 %v3924, 1.442695
        %v3961 = vpow.pop %v3960
        %v3962 = vmul.f32 %v3925, 1.442695
        %v3963 = vpow.pop %v3962
        %v3964 = vmul.f32 %v3926, 1.442695
        %v3965 = vpow.pop %v3964
        %v3966 = vmul.f32 %v3927, 1.442695
        %v3967 = vpow.pop %v3966
        %v3968 = vmul.f32 %v3928, 1.442695
        %v3969 = vpow.pop %v3968
        %v3970 = vmul.f32 %v3929, 1.442695
        %v3971 = vpow.pop %v3970
        %v3972 = vmul.f32 %v3930, 1.442695
        %v3973 = vpow.pop %v3972
        %v3974 = vmul.f32 %v3931, 1.442695
        %v3975 = vpow.pop %v3974
        %v3976 = vmul.f32 %v3932, 1.442695
        %v3977 = vpow.pop %v3976
        %v3978 = vmul.f32 %v3933, 1.442695
        %v3979 = vpow.pop %v3978
        %v3980 = vmul.f32 %v3934, 1.442695
        %v3981 = vpow.pop %v3980
        %v3982 = vmul.f32 %v3935, 1.442695
        %v3983 = vpow.pop %v3982
        %v3984 = vmul.f32 %v3936, 1.442695
        %v3985 = vpow.pop %v3984
        %v3986 = vmul.f32 %v3937, 1.442695
        %v3987 = vpow.pop %v3986
        %v3988 = vmul.f32 %v3938, 1.442695
        %v3989 = vpow.pop %v3988
        %v3990 = vmul.f32 %v3939, 1.442695
        %v3991 = vpow.pop %v3990
        %v3992 = vmul.f32 %v3940, 1.442695
        %v3993 = vpow.pop %v3992
        %v3994 = vmul.f32 %v3941, 1.442695
        %v3995 = vpow.pop %v3994
        %v3996 = vmul.f32 %v3942, 1.442695
        %v3997 = vpow.pop %v3996
        %v3998 = vmul.f32 %v3943, 1.442695
        %v3999 = vpow.pop %v3998
        %v4000 = vmul.f32 %v3944, 1.442695
        %v4001 = vpow.pop %v4000
        %v4002 = vmul.f32 %v3945, 1.442695
        %v4003 = vpow.pop %v4002
        %v4004 = vmul.f32 %v3946, 1.442695
        %v4005 = vpow.pop %v4004
        %v4006 = vmul.f32 %v3947, 1.442695
        %v4007 = vpow.pop %v4006
        %v4008 = vmul.f32 %v3948, 1.442695
        %v4009 = vpow.pop %v4008
        %v4010 = vmul.f32 %v3949, 1.442695
        %v4011 = vpow.pop %v4010
        %v4012 = vmul.f32 %v3950, 1.442695
        %v4013 = vpow.pop %v4012
        %v4014 = vmul.f32 %v3951, 1.442695
        %v4015 = vpow.pop %v4014
        %v4016 = vadd.f32 %v3953, %v3955
        %4017 = vadd.xlane.f32.xlu0 %v4016
        %v4018 = vpop.xlane.xlu0 %4017
        %v4019 = vadd.f32 %v3957, %v3959
        %4020 = vadd.xlane.f32.xlu0 %v4019
        %v4021 = vpop.xlane.xlu0 %4020
        %v4022 = vadd.f32 %v3961, %v3963
        %4023 = vadd.xlane.f32.xlu0 %v4022
        %v4024 = vpop.xlane.xlu0 %4023
        %v4025 = vadd.f32 %v3965, %v3967
        %4026 = vadd.xlane.f32.xlu0 %v4025
        %v4027 = vpop.xlane.xlu0 %4026
        %v4028 = vadd.f32 %v3969, %v3971
        %4029 = vadd.xlane.f32.xlu0 %v4028
        %v4030 = vpop.xlane.xlu0 %4029
        %v4031 = vadd.f32 %v3973, %v3975
        %4032 = vadd.xlane.f32.xlu0 %v4031
        %v4033 = vpop.xlane.xlu0 %4032
        %v4034 = vadd.f32 %v3977, %v3979
        %4035 = vadd.xlane.f32.xlu0 %v4034
        %v4036 = vpop.xlane.xlu0 %4035
        %v4037 = vadd.f32 %v3981, %v3983
        %4038 = vadd.xlane.f32.xlu0 %v4037
        %v4039 = vpop.xlane.xlu0 %4038
        %v4040 = vadd.f32 %v3985, %v3987
        %4041 = vadd.xlane.f32.xlu0 %v4040
        %v4042 = vpop.xlane.xlu0 %4041
        %v4043 = vadd.f32 %v3989, %v3991
        %4044 = vadd.xlane.f32.xlu0 %v4043
        %v4045 = vpop.xlane.xlu0 %4044
        %v4046 = vadd.f32 %v3993, %v3995
        %4047 = vadd.xlane.f32.xlu0 %v4046
        %v4048 = vpop.xlane.xlu0 %4047
        %v4049 = vadd.f32 %v3997, %v3999
        %4050 = vadd.xlane.f32.xlu0 %v4049
        %v4051 = vpop.xlane.xlu0 %4050
        %v4052 = vadd.f32 %v4001, %v4003
        %4053 = vadd.xlane.f32.xlu0 %v4052
        %v4054 = vpop.xlane.xlu0 %4053
        %v4055 = vadd.f32 %v4005, %v4007
        %4056 = vadd.xlane.f32.xlu0 %v4055
        %v4057 = vpop.xlane.xlu0 %4056
        %v4058 = vadd.f32 %v4009, %v4011
        %4059 = vadd.xlane.f32.xlu0 %v4058
        %v4060 = vpop.xlane.xlu0 %4059
        %v4061 = vadd.f32 %v4013, %v4015
        %4062 = vadd.xlane.f32.xlu0 %v4061
        %v4063 = vpop.xlane.xlu0 %4062
        %v4064 = vpack.c.bf16 %v3957, %v3953
        %v4065 = vpack.c.bf16 %v3959, %v3955
        %v4066 = vpack.c.bf16 %v3965, %v3961
        %v4067 = vpack.c.bf16 %v3967, %v3963
        %v4068 = vpack.c.bf16 %v3973, %v3969
        %v4069 = vpack.c.bf16 %v3975, %v3971
        %v4070 = vpack.c.bf16 %v3981, %v3977
        %v4071 = vpack.c.bf16 %v3983, %v3979
        %v4072 = vpack.c.bf16 %v3989, %v3985
        %v4073 = vpack.c.bf16 %v3991, %v3987
        %v4074 = vpack.c.bf16 %v3997, %v3993
        %v4075 = vpack.c.bf16 %v3999, %v3995
        %v4076 = vpack.c.bf16 %v4005, %v4001
        %v4077 = vpack.c.bf16 %v4007, %v4003
        %v4078 = vpack.c.bf16 %v4013, %v4009
        %v4079 = vpack.c.bf16 %v4015, %v4011
        %4080 = vmatprep.subr.bf16.mxu0 0
        %4081 = vmatpush1.bf16.msra.mxu0 %v3727
        %4082 = vmatprep.subr.bf16.mxu0 0
        %4083 = vmatpush1.bf16.msra.mxu0 %v3729
        %4084 = vmatprep.subr.bf16.mxu0 0
        %4085 = vmatpush1.bf16.msra.mxu0 %v3731
        %4086 = vmatprep.subr.bf16.mxu0 0
        %4087 = vmatpush1.bf16.msra.mxu0 %v3733
        %4088 = vmatprep.subr.bf16.mxu0 0
        %4089 = vmatpush1.bf16.msra.mxu0 %v3735
        %4090 = vmatprep.subr.bf16.mxu0 0
        %4091 = vmatpush1.bf16.msra.mxu0 %v3737
        %4092 = vmatprep.subr.bf16.mxu0 0
        %4093 = vmatpush1.bf16.msra.mxu0 %v3739
        %4094 = vmatprep.subr.bf16.mxu0 0
        %4095 = vmatpush1.bf16.msra.mxu0 %v3741
        %4096 = vmatprep.subr.bf16.mxu0 0
        %4097 = vmatpush1.bf16.msra.mxu0 %v3743
        %4098 = vmatprep.subr.bf16.mxu0 0
        %4099 = vmatpush1.bf16.msra.mxu0 %v3745
        %4100 = vmatprep.subr.bf16.mxu0 0
        %4101 = vmatpush1.bf16.msra.mxu0 %v3747
        %4102 = vmatprep.subr.bf16.mxu0 0
        %4103 = vmatpush1.bf16.msra.mxu0 %v3749
        %4104 = vmatprep.subr.bf16.mxu0 0
        %4105 = vmatpush1.bf16.msra.mxu0 %v3751
        %4106 = vmatprep.subr.bf16.mxu0 0
        %4107 = vmatpush1.bf16.msra.mxu0 %v3753
        %4108 = vmatprep.subr.bf16.mxu0 0
        %4109 = vmatpush1.bf16.msra.mxu0 %v3755
        %4110 = vmatprep.subr.bf16.mxu0 0
        %4111 = vmatpush1.bf16.msra.mxu0 %v3757
        %4112 = vmatprep.mubr.bf16.mxu0 %v4065
        %4113 = vmatmul.mubr.bf16.gmra.mrb[0].mxu0 %v4064
        %v4114 = vpop.f32.mrb[0].mxu0
        %v4115 = vadd.f32 0.0, %v4114
        %v4116 = vpop.f32.mrb[0].mxu0
        %v4117 = vpop.f32.mrb[0].mxu0
        %v4118 = vadd.f32 0.0, %v4117
        %v4119 = vpop.f32.mrb[0].mxu0
        %4120 = vmatprep.mubr.bf16.mxu0 %v4067
        %4121 = vmatmul.mubr.bf16.gmra.mrb[0].mxu0 %v4066
        %v4122 = vpop.f32.mrb[0].mxu0
        %v4123 = vadd.f32 0.0, %v4122
        %v4124 = vpop.f32.mrb[0].mxu0
        %v4125 = vpop.f32.mrb[0].mxu0
        %v4126 = vadd.f32 0.0, %v4125
        %v4127 = vpop.f32.mrb[0].mxu0
        %4128 = vmatprep.mubr.bf16.mxu0 %v4069
        %4129 = vmatmul.mubr.bf16.gmra.mrb[0].mxu0 %v4068
        %v4130 = vpop.f32.mrb[0].mxu0
        %v4131 = vadd.f32 0.0, %v4130
        %v4132 = vpop.f32.mrb[0].mxu0
        %v4133 = vpop.f32.mrb[0].mxu0
        %v4134 = vadd.f32 0.0, %v4133
        %v4135 = vpop.f32.mrb[0].mxu0
        %4136 = vmatprep.mubr.bf16.mxu0 %v4071
        %4137 = vmatmul.mubr.bf16.gmra.mrb[0].mxu0 %v4070
        %v4138 = vpop.f32.mrb[0].mxu0
        %v4139 = vadd.f32 0.0, %v4138
        %v4140 = vpop.f32.mrb[0].mxu0
        %v4141 = vpop.f32.mrb[0].mxu0
        %v4142 = vadd.f32 0.0, %v4141
        %v4143 = vpop.f32.mrb[0].mxu0
        %4144 = vmatprep.mubr.bf16.mxu0 %v4073
        %4145 = vmatmul.mubr.bf16.gmra.mrb[0].mxu0 %v4072
        %v4146 = vpop.f32.mrb[0].mxu0
        %v4147 = vadd.f32 0.0, %v4146
        %v4148 = vpop.f32.mrb[0].mxu0
        %v4149 = vpop.f32.mrb[0].mxu0
        %v4150 = vadd.f32 0.0, %v4149
        %v4151 = vpop.f32.mrb[0].mxu0
        %4152 = vmatprep.mubr.bf16.mxu0 %v4075
        %4153 = vmatmul.mubr.bf16.gmra.mrb[0].mxu0 %v4074
        %v4154 = vpop.f32.mrb[0].mxu0
        %v4155 = vadd.f32 0.0, %v4154
        %v4156 = vpop.f32.mrb[0].mxu0
        %v4157 = vpop.f32.mrb[0].mxu0
        %v4158 = vadd.f32 0.0, %v4157
        %v4159 = vpop.f32.mrb[0].mxu0
        %4160 = vmatprep.mubr.bf16.mxu0 %v4077
        %4161 = vmatmul.mubr.bf16.gmra.mrb[0].mxu0 %v4076
        %v4162 = vpop.f32.mrb[0].mxu0
        %v4163 = vadd.f32 0.0, %v4162
        %v4164 = vpop.f32.mrb[0].mxu0
        %v4165 = vpop.f32.mrb[0].mxu0
        %v4166 = vadd.f32 0.0, %v4165
        %v4167 = vpop.f32.mrb[0].mxu0
        %4168 = vmatprep.mubr.bf16.mxu0 %v4079
        %4169 = vmatmul.mubr.bf16.gmra.mrb[0].mxu0 %v4078
        %v4170 = vpop.f32.mrb[0].mxu0
        %v4171 = vadd.f32 0.0, %v4170
        %v4172 = vpop.f32.mrb[0].mxu0
        %v4173 = vpop.f32.mrb[0].mxu0
        %v4174 = vadd.f32 0.0, %v4173
        %v4175 = vpop.f32.mrb[0].mxu0
        %4176 = vdwg.mxu0
        %v4177 = vrcp.pop %v4018
        %v4178 = vrcp.pop %v4021
        %v4179 = vrcp.pop %v4024
        %v4180 = vrcp.pop %v4027
        %v4181 = vrcp.pop %v4030
        %v4182 = vrcp.pop %v4033
        %v4183 = vrcp.pop %v4036
        %v4184 = vrcp.pop %v4039
        %v4185 = vrcp.pop %v4042
        %v4186 = vrcp.pop %v4045
        %v4187 = vrcp.pop %v4048
        %v4188 = vrcp.pop %v4051
        %v4189 = vrcp.pop %v4054
        %v4190 = vrcp.pop %v4057
        %v4191 = vrcp.pop %v4060
        %v4192 = vrcp.pop %v4063
        %v4193 = vmul.f32 %v4115, %v4177
        %v4194 = vmul.f32 %v4118, %v4178
        %v4195 = vmul.f32 %v4123, %v4179
        %v4196 = vmul.f32 %v4126, %v4180
        %v4197 = vmul.f32 %v4131, %v4181
        %v4198 = vmul.f32 %v4134, %v4182
        %v4199 = vmul.f32 %v4139, %v4183
        %v4200 = vmul.f32 %v4142, %v4184
        %v4201 = vmul.f32 %v4147, %v4185
        %v4202 = vmul.f32 %v4150, %v4186
        %v4203 = vmul.f32 %v4155, %v4187
        %v4204 = vmul.f32 %v4158, %v4188
        %v4205 = vmul.f32 %v4163, %v4189
        %v4206 = vmul.f32 %v4166, %v4190
        %v4207 = vmul.f32 %v4171, %v4191
        %v4208 = vmul.f32 %v4174, %v4192
        %v4209 = vpack.c.bf16 %v4194, %v4193
        %v4210 = vpack.c.bf16 %v4196, %v4195
        %v4211 = vpack.c.bf16 %v4198, %v4197
        %v4212 = vpack.c.bf16 %v4200, %v4199
        %v4213 = vpack.c.bf16 %v4202, %v4201
        %v4214 = vpack.c.bf16 %v4204, %v4203
        %v4215 = vpack.c.bf16 %v4206, %v4205
        %v4216 = vpack.c.bf16 %v4208, %v4207
        %4217 = vmatprep.subr.bf16.mxu0 0
        %4218 = vmatpush1.bf16.xpose.msra.mxu0 %v3696
        %4219 = vmatprep.subr.bf16.mxu0 0
        %4220 = vmatpush1.bf16.xpose.msra.mxu0 %v3698
        %4221 = vmatprep.subr.bf16.mxu0 0
        %4222 = vmatpush1.bf16.xpose.msra.mxu0 %v3700
        %4223 = vmatprep.subr.bf16.mxu0 0
        %4224 = vmatpush1.bf16.xpose.msra.mxu0 %v3702
        %4225 = vmatprep.subr.bf16.mxu0 0
        %4226 = vmatpush1.bf16.xpose.msra.mxu0 %v3704
        %4227 = vmatprep.subr.bf16.mxu0 0
        %4228 = vmatpush1.bf16.xpose.msra.mxu0 %v3706
        %4229 = vmatprep.subr.bf16.mxu0 0
        %4230 = vmatpush1.bf16.xpose.msra.mxu0 %v3708
        %4231 = vmatprep.subr.bf16.mxu0 0
        %4232 = vmatpush1.bf16.xpose.msra.mxu0 %v3710
        %4233 = vmatprep.subr.bf16.mxu0 0
        %4234 = vmatpush1.bf16.xpose.msra.mxu0 %v3712
        %4235 = vmatprep.subr.bf16.mxu0 0
        %4236 = vmatpush1.bf16.xpose.msra.mxu0 %v3714
        %4237 = vmatprep.subr.bf16.mxu0 0
        %4238 = vmatpush1.bf16.xpose.msra.mxu0 %v3716
        %4239 = vmatprep.subr.bf16.mxu0 0
        %4240 = vmatpush1.bf16.xpose.msra.mxu0 %v3718
        %4241 = vmatprep.subr.bf16.mxu0 0
        %4242 = vmatpush1.bf16.xpose.msra.mxu0 %v3720
        %4243 = vmatprep.subr.bf16.mxu0 0
        %4244 = vmatpush1.bf16.xpose.msra.mxu0 %v3722
        %4245 = vmatprep.subr.bf16.mxu0 0
        %4246 = vmatpush1.bf16.xpose.msra.mxu0 %v3724
        %4247 = vmatprep.subr.bf16.mxu0 0
        %4248 = vmatpush1.bf16.xpose.msra.mxu0 %v3726
        %4249 = vmatprep.mubr.bf16.mxu0 0
        %4250 = vmatmul.mubr.bf16.gmra.mrb[0].mxu0 %v3680
        %v4251 = vpop.f32.mrb[0].mxu0
        %v4252 = vadd.f32 0.0, %v4251
        %v4253 = vpop.f32.mrb[0].mxu0
        %v4254 = vadd.f32 0.0, %v4253
        %v4255 = vpop.f32.mrb[0].mxu0
        %v4256 = vadd.f32 0.0, %v4255
        %v4257 = vpop.f32.mrb[0].mxu0
        %v4258 = vadd.f32 0.0, %v4257
        %4259 = vmatprep.mubr.bf16.mxu0 0
        %4260 = vmatmul.mubr.bf16.gmra.mrb[0].mxu0 %v3682
        %v4261 = vpop.f32.mrb[0].mxu0
        %v4262 = vadd.f32 0.0, %v4261
        %v4263 = vpop.f32.mrb[0].mxu0
        %v4264 = vadd.f32 0.0, %v4263
        %v4265 = vpop.f32.mrb[0].mxu0
        %v4266 = vadd.f32 0.0, %v4265
        %v4267 = vpop.f32.mrb[0].mxu0
        %v4268 = vadd.f32 0.0, %v4267
        %4269 = vmatprep.mubr.bf16.mxu0 0
        %4270 = vmatmul.mubr.bf16.gmra.mrb[0].mxu0 %v3684
        %v4271 = vpop.f32.mrb[0].mxu0
        %v4272 = vadd.f32 0.0, %v4271
        %v4273 = vpop.f32.mrb[0].mxu0
        %v4274 = vadd.f32 0.0, %v4273
        %v4275 = vpop.f32.mrb[0].mxu0
        %v4276 = vadd.f32 0.0, %v4275
        %v4277 = vpop.f32.mrb[0].mxu0
        %v4278 = vadd.f32 0.0, %v4277
        %4279 = vmatprep.mubr.bf16.mxu0 0
        %4280 = vmatmul.mubr.bf16.gmra.mrb[0].mxu0 %v3686
        %v4281 = vpop.f32.mrb[0].mxu0
        %v4282 = vadd.f32 0.0, %v4281
        %v4283 = vpop.f32.mrb[0].mxu0
        %v4284 = vadd.f32 0.0, %v4283
        %v4285 = vpop.f32.mrb[0].mxu0
        %v4286 = vadd.f32 0.0, %v4285
        %v4287 = vpop.f32.mrb[0].mxu0
        %v4288 = vadd.f32 0.0, %v4287
        %4289 = vmatprep.mubr.bf16.mxu0 0
        %4290 = vmatmul.mubr.bf16.gmra.mrb[0].mxu0 %v3688
        %v4291 = vpop.f32.mrb[0].mxu0
        %v4292 = vadd.f32 0.0, %v4291
        %v4293 = vpop.f32.mrb[0].mxu0
        %v4294 = vadd.f32 0.0, %v4293
        %v4295 = vpop.f32.mrb[0].mxu0
        %v4296 = vadd.f32 0.0, %v4295
        %v4297 = vpop.f32.mrb[0].mxu0
        %v4298 = vadd.f32 0.0, %v4297
        %4299 = vmatprep.mubr.bf16.mxu0 0
        %4300 = vmatmul.mubr.bf16.gmra.mrb[0].mxu0 %v3690
        %v4301 = vpop.f32.mrb[0].mxu0
        %v4302 = vadd.f32 0.0, %v4301
        %v4303 = vpop.f32.mrb[0].mxu0
        %v4304 = vadd.f32 0.0, %v4303
        %v4305 = vpop.f32.mrb[0].mxu0
        %v4306 = vadd.f32 0.0, %v4305
        %v4307 = vpop.f32.mrb[0].mxu0
        %v4308 = vadd.f32 0.0, %v4307
        %4309 = vmatprep.mubr.bf16.mxu0 0
        %4310 = vmatmul.mubr.bf16.gmra.mrb[0].mxu0 %v3692
        %v4311 = vpop.f32.mrb[0].mxu0
        %v4312 = vadd.f32 0.0, %v4311
        %v4313 = vpop.f32.mrb[0].mxu0
        %v4314 = vadd.f32 0.0, %v4313
        %v4315 = vpop.f32.mrb[0].mxu0
        %v4316 = vadd.f32 0.0, %v4315
        %v4317 = vpop.f32.mrb[0].mxu0
        %v4318 = vadd.f32 0.0, %v4317
        %4319 = vmatprep.mubr.bf16.mxu0 0
        %4320 = vmatmul.mubr.bf16.gmra.mrb[0].mxu0 %v3694
        %v4321 = vpop.f32.mrb[0].mxu0
        %v4322 = vadd.f32 0.0, %v4321
        %v4323 = vpop.f32.mrb[0].mxu0
        %v4324 = vadd.f32 0.0, %v4323
        %v4325 = vpop.f32.mrb[0].mxu0
        %v4326 = vadd.f32 0.0, %v4325
        %v4327 = vpop.f32.mrb[0].mxu0
        %v4328 = vadd.f32 0.0, %v4327
        %4329 = vdwg.mxu0
        %v4330 = vmax.f32 %v4252, %v4254
        %4331 = vmax.xlane.f32.xlu0 %v4330
        %v4332 = vpop.xlane.xlu0 %4331
        %v4333 = vmax.f32 %v4256, %v4258
        %4334 = vmax.xlane.f32.xlu0 %v4333
        %v4335 = vpop.xlane.xlu0 %4334
        %v4336 = vmax.f32 %v4262, %v4264
        %4337 = vmax.xlane.f32.xlu0 %v4336
        %v4338 = vpop.xlane.xlu0 %4337
        %v4339 = vmax.f32 %v4266, %v4268
        %4340 = vmax.xlane.f32.xlu0 %v4339
        %v4341 = vpop.xlane.xlu0 %4340
        %v4342 = vmax.f32 %v4272, %v4274
        %4343 = vmax.xlane.f32.xlu0 %v4342
        %v4344 = vpop.xlane.xlu0 %4343
        %v4345 = vmax.f32 %v4276, %v4278
        %4346 = vmax.xlane.f32.xlu0 %v4345
        %v4347 = vpop.xlane.xlu0 %4346
        %v4348 = vmax.f32 %v4282, %v4284
        %4349 = vmax.xlane.f32.xlu0 %v4348
        %v4350 = vpop.xlane.xlu0 %4349
        %v4351 = vmax.f32 %v4286, %v4288
        %4352 = vmax.xlane.f32.xlu0 %v4351
        %v4353 = vpop.xlane.xlu0 %4352
        %v4354 = vmax.f32 %v4292, %v4294
        %4355 = vmax.xlane.f32.xlu0 %v4354
        %v4356 = vpop.xlane.xlu0 %4355
        %v4357 = vmax.f32 %v4296, %v4298
        %4358 = vmax.xlane.f32.xlu0 %v4357
        %v4359 = vpop.xlane.xlu0 %4358
        %v4360 = vmax.f32 %v4302, %v4304
        %4361 = vmax.xlane.f32.xlu0 %v4360
        %v4362 = vpop.xlane.xlu0 %4361
        %v4363 = vmax.f32 %v4306, %v4308
        %4364 = vmax.xlane.f32.xlu0 %v4363
        %v4365 = vpop.xlane.xlu0 %4364
        %v4366 = vmax.f32 %v4312, %v4314
        %4367 = vmax.xlane.f32.xlu0 %v4366
        %v4368 = vpop.xlane.xlu0 %4367
        %v4369 = vmax.f32 %v4316, %v4318
        %4370 = vmax.xlane.f32.xlu0 %v4369
        %v4371 = vpop.xlane.xlu0 %4370
        %v4372 = vmax.f32 %v4322, %v4324
        %4373 = vmax.xlane.f32.xlu0 %v4372
        %v4374 = vpop.xlane.xlu0 %4373
        %v4375 = vmax.f32 %v4326, %v4328
        %4376 = vmax.xlane.f32.xlu0 %v4375
        %v4377 = vpop.xlane.xlu0 %4376
        %v4378 = vsub.f32 %v4252, %v4332
        %v4379 = vsub.f32 %v4254, %v4332
        %v4380 = vsub.f32 %v4256, %v4335
        %v4381 = vsub.f32 %v4258, %v4335
        %v4382 = vsub.f32 %v4262, %v4338
        %v4383 = vsub.f32 %v4264, %v4338
        %v4384 = vsub.f32 %v4266, %v4341
        %v4385 = vsub.f32 %v4268, %v4341
        %v4386 = vsub.f32 %v4272, %v4344
        %v4387 = vsub.f32 %v4274, %v4344
        %v4388 = vsub.f32 %v4276, %v4347
        %v4389 = vsub.f32 %v4278, %v4347
        %v4390 = vsub.f32 %v4282, %v4350
        %v4391 = vsub.f32 %v4284, %v4350
        %v4392 = vsub.f32 %v4286, %v4353
        %v4393 = vsub.f32 %v4288, %v4353
        %v4394 = vsub.f32 %v4292, %v4356
        %v4395 = vsub.f32 %v4294, %v4356
        %v4396 = vsub.f32 %v4296, %v4359
        %v4397 = vsub.f32 %v4298, %v4359
        %v4398 = vsub.f32 %v4302, %v4362
        %v4399 = vsub.f32 %v4304, %v4362
        %v4400 = vsub.f32 %v4306, %v4365
        %v4401 = vsub.f32 %v4308, %v4365
        %v4402 = vsub.f32 %v4312, %v4368
        %v4403 = vsub.f32 %v4314, %v4368
        %v4404 = vsub.f32 %v4316, %v4371
        %v4405 = vsub.f32 %v4318, %v4371
        %v4406 = vsub.f32 %v4322, %v4374
        %v4407 = vsub.f32 %v4324, %v4374
        %v4408 = vsub.f32 %v4326, %v4377
        %v4409 = vsub.f32 %v4328, %v4377
        %v4410 = vmul.f32 %v4378, 1.442695
        %v4411 = vpow.pop %v4410
        %v4412 = vmul.f32 %v4379, 1.442695
        %v4413 = vpow.pop %v4412
        %v4414 = vmul.f32 %v4380, 1.442695
        %v4415 = vpow.pop %v4414
        %v4416 = vmul.f32 %v4381, 1.442695
        %v4417 = vpow.pop %v4416
        %v4418 = vmul.f32 %v4382, 1.442695
        %v4419 = vpow.pop %v4418
        %v4420 = vmul.f32 %v4383, 1.442695
        %v4421 = vpow.pop %v4420
        %v4422 = vmul.f32 %v4384, 1.442695
        %v4423 = vpow.pop %v4422
        %v4424 = vmul.f32 %v4385, 1.442695
        %v4425 = vpow.pop %v4424
        %v4426 = vmul.f32 %v4386, 1.442695
        %v4427 = vpow.pop %v4426
        %v4428 = vmul.f32 %v4387, 1.442695
        %v4429 = vpow.pop %v4428
        %v4430 = vmul.f32 %v4388, 1.442695
        %v4431 = vpow.pop %v4430
        %v4432 = vmul.f32 %v4389, 1.442695
        %v4433 = vpow.pop %v4432
        %v4434 = vmul.f32 %v4390, 1.442695
        %v4435 = vpow.pop %v4434
        %v4436 = vmul.f32 %v4391, 1.442695
        %v4437 = vpow.pop %v4436
        %v4438 = vmul.f32 %v4392, 1.442695
        %v4439 = vpow.pop %v4438
        %v4440 = vmul.f32 %v4393, 1.442695
        %v4441 = vpow.pop %v4440
        %v4442 = vmul.f32 %v4394, 1.442695
        %v4443 = vpow.pop %v4442
        %v4444 = vmul.f32 %v4395, 1.442695
        %v4445 = vpow.pop %v4444
        %v4446 = vmul.f32 %v4396, 1.442695
        %v4447 = vpow.pop %v4446
        %v4448 = vmul.f32 %v4397, 1.442695
        %v4449 = vpow.pop %v4448
        %v4450 = vmul.f32 %v4398, 1.442695
        %v4451 = vpow.pop %v4450
        %v4452 = vmul.f32 %v4399, 1.442695
        %v4453 = vpow.pop %v4452
        %v4454 = vmul.f32 %v4400, 1.442695
        %v4455 = vpow.pop %v4454
        %v4456 = vmul.f32 %v4401, 1.442695
        %v4457 = vpow.pop %v4456
        %v4458 = vmul.f32 %v4402, 1.442695
        %v4459 = vpow.pop %v4458
        %v4460 = vmul.f32 %v4403, 1.442695
        %v4461 = vpow.pop %v4460
        %v4462 = vmul.f32 %v4404, 1.442695
        %v4463 = vpow.pop %v4462
        %v4464 = vmul.f32 %v4405, 1.442695
        %v4465 = vpow.pop %v4464
        %v4466 = vmul.f32 %v4406, 1.442695
        %v4467 = vpow.pop %v4466
        %v4468 = vmul.f32 %v4407, 1.442695
        %v4469 = vpow.pop %v4468
        %v4470 = vmul.f32 %v4408, 1.442695
        %v4471 = vpow.pop %v4470
        %v4472 = vmul.f32 %v4409, 1.442695
        %v4473 = vpow.pop %v4472
        %v4474 = vadd.f32 %v4411, %v4413
        %4475 = vadd.xlane.f32.xlu0 %v4474
        %v4476 = vpop.xlane.xlu0 %4475
        %v4477 = vadd.f32 %v4415, %v4417
        %4478 = vadd.xlane.f32.xlu0 %v4477
        %v4479 = vpop.xlane.xlu0 %4478
        %v4480 = vadd.f32 %v4419, %v4421
        %4481 = vadd.xlane.f32.xlu0 %v4480
        %v4482 = vpop.xlane.xlu0 %4481
        %v4483 = vadd.f32 %v4423, %v4425
        %4484 = vadd.xlane.f32.xlu0 %v4483
        %v4485 = vpop.xlane.xlu0 %4484
        %v4486 = vadd.f32 %v4427, %v4429
        %4487 = vadd.xlane.f32.xlu0 %v4486
        %v4488 = vpop.xlane.xlu0 %4487
        %v4489 = vadd.f32 %v4431, %v4433
        %4490 = vadd.xlane.f32.xlu0 %v4489
        %v4491 = vpop.xlane.xlu0 %4490
        %v4492 = vadd.f32 %v4435, %v4437
        %4493 = vadd.xlane.f32.xlu0 %v4492
        %v4494 = vpop.xlane.xlu0 %4493
        %v4495 = vadd.f32 %v4439, %v4441
        %4496 = vadd.xlane.f32.xlu0 %v4495
        %v4497 = vpop.xlane.xlu0 %4496
        %v4498 = vadd.f32 %v4443, %v4445
        %4499 = vadd.xlane.f32.xlu0 %v4498
        %v4500 = vpop.xlane.xlu0 %4499
        %v4501 = vadd.f32 %v4447, %v4449
        %4502 = vadd.xlane.f32.xlu0 %v4501
        %v4503 = vpop.xlane.xlu0 %4502
        %v4504 = vadd.f32 %v4451, %v4453
        %4505 = vadd.xlane.f32.xlu0 %v4504
        %v4506 = vpop.xlane.xlu0 %4505
        %v4507 = vadd.f32 %v4455, %v4457
        %4508 = vadd.xlane.f32.xlu0 %v4507
        %v4509 = vpop.xlane.xlu0 %4508
        %v4510 = vadd.f32 %v4459, %v4461
        %4511 = vadd.xlane.f32.xlu0 %v4510
        %v4512 = vpop.xlane.xlu0 %4511
        %v4513 = vadd.f32 %v4463, %v4465
        %4514 = vadd.xlane.f32.xlu0 %v4513
        %v4515 = vpop.xlane.xlu0 %4514
        %v4516 = vadd.f32 %v4467, %v4469
        %4517 = vadd.xlane.f32.xlu0 %v4516
        %v4518 = vpop.xlane.xlu0 %4517
        %v4519 = vadd.f32 %v4471, %v4473
        %4520 = vadd.xlane.f32.xlu0 %v4519
        %v4521 = vpop.xlane.xlu0 %4520
        %v4522 = vpack.c.bf16 %v4415, %v4411
        %v4523 = vpack.c.bf16 %v4417, %v4413
        %v4524 = vpack.c.bf16 %v4423, %v4419
        %v4525 = vpack.c.bf16 %v4425, %v4421
        %v4526 = vpack.c.bf16 %v4431, %v4427
        %v4527 = vpack.c.bf16 %v4433, %v4429
        %v4528 = vpack.c.bf16 %v4439, %v4435
        %v4529 = vpack.c.bf16 %v4441, %v4437
        %v4530 = vpack.c.bf16 %v4447, %v4443
        %v4531 = vpack.c.bf16 %v4449, %v4445
        %v4532 = vpack.c.bf16 %v4455, %v4451
        %v4533 = vpack.c.bf16 %v4457, %v4453
        %v4534 = vpack.c.bf16 %v4463, %v4459
        %v4535 = vpack.c.bf16 %v4465, %v4461
        %v4536 = vpack.c.bf16 %v4471, %v4467
        %v4537 = vpack.c.bf16 %v4473, %v4469
        %4538 = vmatprep.subr.bf16.mxu0 0
        %4539 = vmatpush1.bf16.msra.mxu0 %v3728
        %4540 = vmatprep.subr.bf16.mxu0 0
        %4541 = vmatpush1.bf16.msra.mxu0 %v3730
        %4542 = vmatprep.subr.bf16.mxu0 0
        %4543 = vmatpush1.bf16.msra.mxu0 %v3732
        %4544 = vmatprep.subr.bf16.mxu0 0
        %4545 = vmatpush1.bf16.msra.mxu0 %v3734
        %4546 = vmatprep.subr.bf16.mxu0 0
        %4547 = vmatpush1.bf16.msra.mxu0 %v3736
        %4548 = vmatprep.subr.bf16.mxu0 0
        %4549 = vmatpush1.bf16.msra.mxu0 %v3738
        %4550 = vmatprep.subr.bf16.mxu0 0
        %4551 = vmatpush1.bf16.msra.mxu0 %v3740
        %4552 = vmatprep.subr.bf16.mxu0 0
        %4553 = vmatpush1.bf16.msra.mxu0 %v3742
        %4554 = vmatprep.subr.bf16.mxu0 0
        %4555 = vmatpush1.bf16.msra.mxu0 %v3744
        %4556 = vmatprep.subr.bf16.mxu0 0
        %4557 = vmatpush1.bf16.msra.mxu0 %v3746
        %4558 = vmatprep.subr.bf16.mxu0 0
        %4559 = vmatpush1.bf16.msra.mxu0 %v3748
        %4560 = vmatprep.subr.bf16.mxu0 0
        %4561 = vmatpush1.bf16.msra.mxu0 %v3750
        %4562 = vmatprep.subr.bf16.mxu0 0
        %4563 = vmatpush1.bf16.msra.mxu0 %v3752
        %4564 = vmatprep.subr.bf16.mxu0 0
        %4565 = vmatpush1.bf16.msra.mxu0 %v3754
        %4566 = vmatprep.subr.bf16.mxu0 0
        %4567 = vmatpush1.bf16.msra.mxu0 %v3756
        %4568 = vmatprep.subr.bf16.mxu0 0
        %4569 = vmatpush1.bf16.msra.mxu0 %v3758
        %4570 = vmatprep.mubr.bf16.mxu0 %v4523
        %4571 = vmatmul.mubr.bf16.gmra.mrb[0].mxu0 %v4522
        %v4572 = vpop.f32.mrb[0].mxu0
        %v4573 = vadd.f32 0.0, %v4572
        %v4574 = vpop.f32.mrb[0].mxu0
        %v4575 = vpop.f32.mrb[0].mxu0
        %v4576 = vadd.f32 0.0, %v4575
        %v4577 = vpop.f32.mrb[0].mxu0
        %4578 = vmatprep.mubr.bf16.mxu0 %v4525
        %4579 = vmatmul.mubr.bf16.gmra.mrb[0].mxu0 %v4524
        %v4580 = vpop.f32.mrb[0].mxu0
        %v4581 = vadd.f32 0.0, %v4580
        %v4582 = vpop.f32.mrb[0].mxu0
        %v4583 = vpop.f32.mrb[0].mxu0
        %v4584 = vadd.f32 0.0, %v4583
        %v4585 = vpop.f32.mrb[0].mxu0
        %4586 = vmatprep.mubr.bf16.mxu0 %v4527
        %4587 = vmatmul.mubr.bf16.gmra.mrb[0].mxu0 %v4526
        %v4588 = vpop.f32.mrb[0].mxu0
        %v4589 = vadd.f32 0.0, %v4588
        %v4590 = vpop.f32.mrb[0].mxu0
        %v4591 = vpop.f32.mrb[0].mxu0
        %v4592 = vadd.f32 0.0, %v4591
        %v4593 = vpop.f32.mrb[0].mxu0
        %4594 = vmatprep.mubr.bf16.mxu0 %v4529
        %4595 = vmatmul.mubr.bf16.gmra.mrb[0].mxu0 %v4528
        %v4596 = vpop.f32.mrb[0].mxu0
        %v4597 = vadd.f32 0.0, %v4596
        %v4598 = vpop.f32.mrb[0].mxu0
        %v4599 = vpop.f32.mrb[0].mxu0
        %v4600 = vadd.f32 0.0, %v4599
        %v4601 = vpop.f32.mrb[0].mxu0
        %4602 = vmatprep.mubr.bf16.mxu0 %v4531
        %4603 = vmatmul.mubr.bf16.gmra.mrb[0].mxu0 %v4530
        %v4604 = vpop.f32.mrb[0].mxu0
        %v4605 = vadd.f32 0.0, %v4604
        %v4606 = vpop.f32.mrb[0].mxu0
        %v4607 = vpop.f32.mrb[0].mxu0
        %v4608 = vadd.f32 0.0, %v4607
        %v4609 = vpop.f32.mrb[0].mxu0
        %4610 = vmatprep.mubr.bf16.mxu0 %v4533
        %4611 = vmatmul.mubr.bf16.gmra.mrb[0].mxu0 %v4532
        %v4612 = vpop.f32.mrb[0].mxu0
        %v4613 = vadd.f32 0.0, %v4612
        %v4614 = vpop.f32.mrb[0].mxu0
        %v4615 = vpop.f32.mrb[0].mxu0
        %v4616 = vadd.f32 0.0, %v4615
        %v4617 = vpop.f32.mrb[0].mxu0
        %4618 = vmatprep.mubr.bf16.mxu0 %v4535
        %4619 = vmatmul.mubr.bf16.gmra.mrb[0].mxu0 %v4534
        %v4620 = vpop.f32.mrb[0].mxu0
        %v4621 = vadd.f32 0.0, %v4620
        %v4622 = vpop.f32.mrb[0].mxu0
        %v4623 = vpop.f32.mrb[0].mxu0
        %v4624 = vadd.f32 0.0, %v4623
        %v4625 = vpop.f32.mrb[0].mxu0
        %4626 = vmatprep.mubr.bf16.mxu0 %v4537
        %4627 = vmatmul.mubr.bf16.gmra.mrb[0].mxu0 %v4536
        %v4628 = vpop.f32.mrb[0].mxu0
        %v4629 = vadd.f32 0.0, %v4628
        %v4630 = vpop.f32.mrb[0].mxu0
        %v4631 = vpop.f32.mrb[0].mxu0
        %v4632 = vadd.f32 0.0, %v4631
        %v4633 = vpop.f32.mrb[0].mxu0
        %4634 = vdwg.mxu0
        %v4635 = vrcp.pop %v4476
        %v4636 = vrcp.pop %v4479
        %v4637 = vrcp.pop %v4482
        %v4638 = vrcp.pop %v4485
        %v4639 = vrcp.pop %v4488
        %v4640 = vrcp.pop %v4491
        %v4641 = vrcp.pop %v4494
        %v4642 = vrcp.pop %v4497
        %v4643 = vrcp.pop %v4500
        %v4644 = vrcp.pop %v4503
        %v4645 = vrcp.pop %v4506
        %v4646 = vrcp.pop %v4509
        %v4647 = vrcp.pop %v4512
        %v4648 = vrcp.pop %v4515
        %v4649 = vrcp.pop %v4518
        %v4650 = vrcp.pop %v4521
        %v4651 = vmul.f32 %v4573, %v4635
        %v4652 = vmul.f32 %v4576, %v4636
        %v4653 = vmul.f32 %v4581, %v4637
        %v4654 = vmul.f32 %v4584, %v4638
        %v4655 = vmul.f32 %v4589, %v4639
        %v4656 = vmul.f32 %v4592, %v4640
        %v4657 = vmul.f32 %v4597, %v4641
        %v4658 = vmul.f32 %v4600, %v4642
        %v4659 = vmul.f32 %v4605, %v4643
        %v4660 = vmul.f32 %v4608, %v4644
        %v4661 = vmul.f32 %v4613, %v4645
        %v4662 = vmul.f32 %v4616, %v4646
        %v4663 = vmul.f32 %v4621, %v4647
        %v4664 = vmul.f32 %v4624, %v4648
        %v4665 = vmul.f32 %v4629, %v4649
        %v4666 = vmul.f32 %v4632, %v4650
        %v4667 = vpack.c.bf16 %v4652, %v4651
        %v4668 = vpack.c.bf16 %v4654, %v4653
        %v4669 = vpack.c.bf16 %v4656, %v4655
        %v4670 = vpack.c.bf16 %v4658, %v4657
        %v4671 = vpack.c.bf16 %v4660, %v4659
        %v4672 = vpack.c.bf16 %v4662, %v4661
        %v4673 = vpack.c.bf16 %v4664, %v4663
        %v4674 = vpack.c.bf16 %v4666, %v4665
        %v4739 = vunpack.c.l.b16 %v825
        %v4740 = vunpack.c.h.b16 %v825
        %v4741 = vunpack.c.l.b16 %v826
        %v4742 = vunpack.c.h.b16 %v826
        %v4743 = vunpack.c.l.b16 %v827
        %v4744 = vunpack.c.h.b16 %v827
        %v4745 = vunpack.c.l.b16 %v828
        %v4746 = vunpack.c.h.b16 %v828
        %v4747 = vunpack.c.l.b16 %v829
        %v4748 = vunpack.c.h.b16 %v829
        %v4749 = vunpack.c.l.b16 %v830
        %v4750 = vunpack.c.h.b16 %v830
        %v4751 = vunpack.c.l.b16 %v831
        %v4752 = vunpack.c.h.b16 %v831
        %v4753 = vunpack.c.l.b16 %v832
        %v4754 = vunpack.c.h.b16 %v832
        %v4755 = vunpack.c.l.b16 %v833
        %v4756 = vunpack.c.h.b16 %v833
        %v4757 = vunpack.c.l.b16 %v834
        %v4758 = vunpack.c.h.b16 %v834
        %v4759 = vunpack.c.l.b16 %v835
        %v4760 = vunpack.c.h.b16 %v835
        %v4761 = vunpack.c.l.b16 %v836
        %v4762 = vunpack.c.h.b16 %v836
        %v4763 = vunpack.c.l.b16 %v837
        %v4764 = vunpack.c.h.b16 %v837
        %v4765 = vunpack.c.l.b16 %v838
        %v4766 = vunpack.c.h.b16 %v838
        %v4767 = vunpack.c.l.b16 %v839
        %v4768 = vunpack.c.h.b16 %v839
        %v4769 = vunpack.c.l.b16 %v840
        %v4770 = vunpack.c.h.b16 %v840
        %v4771 = vunpack.c.l.b16 %v841
        %v4772 = vunpack.c.h.b16 %v841
        %v4773 = vunpack.c.l.b16 %v842
        %v4774 = vunpack.c.h.b16 %v842
        %v4775 = vunpack.c.l.b16 %v843
        %v4776 = vunpack.c.h.b16 %v843
        %v4777 = vunpack.c.l.b16 %v844
        %v4778 = vunpack.c.h.b16 %v844
        %v4779 = vunpack.c.l.b16 %v845
        %v4780 = vunpack.c.h.b16 %v845
        %v4781 = vunpack.c.l.b16 %v846
        %v4782 = vunpack.c.h.b16 %v846
        %v4783 = vunpack.c.l.b16 %v847
        %v4784 = vunpack.c.h.b16 %v847
        %v4785 = vunpack.c.l.b16 %v848
        %v4786 = vunpack.c.h.b16 %v848
        %v4787 = vunpack.c.l.b16 %v849
        %v4788 = vunpack.c.h.b16 %v849
        %v4789 = vunpack.c.l.b16 %v850
        %v4790 = vunpack.c.h.b16 %v850
        %v4791 = vunpack.c.l.b16 %v851
        %v4792 = vunpack.c.h.b16 %v851
        %v4793 = vunpack.c.l.b16 %v852
        %v4794 = vunpack.c.h.b16 %v852
        %v4795 = vunpack.c.l.b16 %v853
        %v4796 = vunpack.c.h.b16 %v853
        %v4797 = vunpack.c.l.b16 %v854
        %v4798 = vunpack.c.h.b16 %v854
        %v4799 = vunpack.c.l.b16 %v855
        %v4800 = vunpack.c.h.b16 %v855
        %v4801 = vunpack.c.l.b16 %v856
        %v4802 = vunpack.c.h.b16 %v856
        %v4803 = vunpack.c.l.b16 %v857
        %v4804 = vunpack.c.h.b16 %v857
        %v4805 = vunpack.c.l.b16 %v858
        %v4806 = vunpack.c.h.b16 %v858
        %v4807 = vunpack.c.l.b16 %v859
        %v4808 = vunpack.c.h.b16 %v859
        %v4809 = vunpack.c.l.b16 %v860
        %v4810 = vunpack.c.h.b16 %v860
        %v4811 = vunpack.c.l.b16 %v861
        %v4812 = vunpack.c.h.b16 %v861
        %v4813 = vunpack.c.l.b16 %v862
        %v4814 = vunpack.c.h.b16 %v862
        %v4815 = vunpack.c.l.b16 %v863
        %v4816 = vunpack.c.h.b16 %v863
        %v4817 = vunpack.c.l.b16 %v864
        %v4818 = vunpack.c.h.b16 %v864
        %v4819 = vunpack.c.l.b16 %v865
        %v4820 = vunpack.c.h.b16 %v865
        %v4821 = vunpack.c.l.b16 %v866
        %v4822 = vunpack.c.h.b16 %v866
        %v4823 = vunpack.c.l.b16 %v867
        %v4824 = vunpack.c.h.b16 %v867
        %v4825 = vunpack.c.l.b16 %v868
        %v4826 = vunpack.c.h.b16 %v868
        %v4827 = vunpack.c.l.b16 %v869
        %v4828 = vunpack.c.h.b16 %v869
        %v4829 = vunpack.c.l.b16 %v870
        %v4830 = vunpack.c.h.b16 %v870
        %v4831 = vunpack.c.l.b16 %v871
        %v4832 = vunpack.c.h.b16 %v871
        %v4833 = vunpack.c.l.b16 %v872
        %v4834 = vunpack.c.h.b16 %v872
        %v4835 = vunpack.c.l.b16 %v873
        %v4836 = vunpack.c.h.b16 %v873
        %v4837 = vunpack.c.l.b16 %v874
        %v4838 = vunpack.c.h.b16 %v874
        %v4839 = vunpack.c.l.b16 %v875
        %v4840 = vunpack.c.h.b16 %v875
        %v4841 = vunpack.c.l.b16 %v876
        %v4842 = vunpack.c.h.b16 %v876
        %v4843 = vunpack.c.l.b16 %v877
        %v4844 = vunpack.c.h.b16 %v877
        %v4845 = vunpack.c.l.b16 %v878
        %v4846 = vunpack.c.h.b16 %v878
        %v4847 = vunpack.c.l.b16 %v879
        %v4848 = vunpack.c.h.b16 %v879
        %v4849 = vunpack.c.l.b16 %v880
        %v4850 = vunpack.c.h.b16 %v880
        %v4851 = vunpack.c.l.b16 %v881
        %v4852 = vunpack.c.h.b16 %v881
        %v4853 = vunpack.c.l.b16 %v882
        %v4854 = vunpack.c.h.b16 %v882
        %v4855 = vunpack.c.l.b16 %v883
        %v4856 = vunpack.c.h.b16 %v883
        %v4857 = vunpack.c.l.b16 %v884
        %v4858 = vunpack.c.h.b16 %v884
        %v4859 = vunpack.c.l.b16 %v885
        %v4860 = vunpack.c.h.b16 %v885
        %v4861 = vunpack.c.l.b16 %v886
        %v4862 = vunpack.c.h.b16 %v886
        %v4863 = vunpack.c.l.b16 %v887
        %v4864 = vunpack.c.h.b16 %v887
        %v4865 = vunpack.c.l.b16 %v888
        %v4866 = vunpack.c.h.b16 %v888
        %v4867 = vpack.c.b16 %v4743, %v4739
        %v4868 = vpack.c.b16 %v4744, %v4740
        %v4869 = vpack.c.b16 %v4745, %v4741
        %v4870 = vpack.c.b16 %v4746, %v4742
        %v4871 = vpack.c.b16 %v4751, %v4747
        %v4872 = vpack.c.b16 %v4752, %v4748
        %v4873 = vpack.c.b16 %v4753, %v4749
        %v4874 = vpack.c.b16 %v4754, %v4750
        %v4875 = vpack.c.b16 %v4759, %v4755
        %v4876 = vpack.c.b16 %v4760, %v4756
        %v4877 = vpack.c.b16 %v4761, %v4757
        %v4878 = vpack.c.b16 %v4762, %v4758
        %v4879 = vpack.c.b16 %v4767, %v4763
        %v4880 = vpack.c.b16 %v4768, %v4764
        %v4881 = vpack.c.b16 %v4769, %v4765
        %v4882 = vpack.c.b16 %v4770, %v4766
        %v4883 = vpack.c.b16 %v4775, %v4771
        %v4884 = vpack.c.b16 %v4776, %v4772
        %v4885 = vpack.c.b16 %v4777, %v4773
        %v4886 = vpack.c.b16 %v4778, %v4774
        %v4887 = vpack.c.b16 %v4783, %v4779
        %v4888 = vpack.c.b16 %v4784, %v4780
        %v4889 = vpack.c.b16 %v4785, %v4781
        %v4890 = vpack.c.b16 %v4786, %v4782
        %v4891 = vpack.c.b16 %v4791, %v4787
        %v4892 = vpack.c.b16 %v4792, %v4788
        %v4893 = vpack.c.b16 %v4793, %v4789
        %v4894 = vpack.c.b16 %v4794, %v4790
        %v4895 = vpack.c.b16 %v4799, %v4795
        %v4896 = vpack.c.b16 %v4800, %v4796
        %v4897 = vpack.c.b16 %v4801, %v4797
        %v4898 = vpack.c.b16 %v4802, %v4798
        %v4899 = vpack.c.b16 %v4807, %v4803
        %v4900 = vpack.c.b16 %v4808, %v4804
        %v4901 = vpack.c.b16 %v4809, %v4805
        %v4902 = vpack.c.b16 %v4810, %v4806
        %v4903 = vpack.c.b16 %v4815, %v4811
        %v4904 = vpack.c.b16 %v4816, %v4812
        %v4905 = vpack.c.b16 %v4817, %v4813
        %v4906 = vpack.c.b16 %v4818, %v4814
        %v4907 = vpack.c.b16 %v4823, %v4819
        %v4908 = vpack.c.b16 %v4824, %v4820
        %v4909 = vpack.c.b16 %v4825, %v4821
        %v4910 = vpack.c.b16 %v4826, %v4822
        %v4911 = vpack.c.b16 %v4831, %v4827
        %v4912 = vpack.c.b16 %v4832, %v4828
        %v4913 = vpack.c.b16 %v4833, %v4829
        %v4914 = vpack.c.b16 %v4834, %v4830
        %v4915 = vpack.c.b16 %v4839, %v4835
        %v4916 = vpack.c.b16 %v4840, %v4836
        %v4917 = vpack.c.b16 %v4841, %v4837
        %v4918 = vpack.c.b16 %v4842, %v4838
        %v4919 = vpack.c.b16 %v4847, %v4843
        %v4920 = vpack.c.b16 %v4848, %v4844
        %v4921 = vpack.c.b16 %v4849, %v4845
        %v4922 = vpack.c.b16 %v4850, %v4846
        %v4923 = vpack.c.b16 %v4855, %v4851
        %v4924 = vpack.c.b16 %v4856, %v4852
        %v4925 = vpack.c.b16 %v4857, %v4853
        %v4926 = vpack.c.b16 %v4858, %v4854
        %v4927 = vpack.c.b16 %v4863, %v4859
        %v4928 = vpack.c.b16 %v4864, %v4860
        %v4929 = vpack.c.b16 %v4865, %v4861
        %v4930 = vpack.c.b16 %v4866, %v4862
        %4995 = vmatprep.subr.bf16.mxu0 %v4868
        %4996 = vmatpush1.bf16.msra.mxu0 %v4867
        %4997 = vmatprep.subr.bf16.mxu0 %v4872
        %4998 = vmatpush1.bf16.msra.mxu0 %v4871
        %4999 = vmatprep.subr.bf16.mxu0 %v4876
        %5000 = vmatpush1.bf16.msra.mxu0 %v4875
        %5001 = vmatprep.subr.bf16.mxu0 %v4880
        %5002 = vmatpush1.bf16.msra.mxu0 %v4879
        %5003 = vmatprep.subr.bf16.mxu0 %v4884
        %5004 = vmatpush1.bf16.msra.mxu0 %v4883
        %5005 = vmatprep.subr.bf16.mxu0 %v4888
        %5006 = vmatpush1.bf16.msra.mxu0 %v4887
        %5007 = vmatprep.subr.bf16.mxu0 %v4892
        %5008 = vmatpush1.bf16.msra.mxu0 %v4891
        %5009 = vmatprep.subr.bf16.mxu0 %v4896
        %5010 = vmatpush1.bf16.msra.mxu0 %v4895
        %5011 = vmatprep.subr.bf16.mxu0 %v4900
        %5012 = vmatpush1.bf16.msra.mxu0 %v4899
        %5013 = vmatprep.subr.bf16.mxu0 %v4904
        %5014 = vmatpush1.bf16.msra.mxu0 %v4903
        %5015 = vmatprep.subr.bf16.mxu0 %v4908
        %5016 = vmatpush1.bf16.msra.mxu0 %v4907
        %5017 = vmatprep.subr.bf16.mxu0 %v4912
        %5018 = vmatpush1.bf16.msra.mxu0 %v4911
        %5019 = vmatprep.subr.bf16.mxu0 %v4916
        %5020 = vmatpush1.bf16.msra.mxu0 %v4915
        %5021 = vmatprep.subr.bf16.mxu0 %v4920
        %5022 = vmatpush1.bf16.msra.mxu0 %v4919
        %5023 = vmatprep.subr.bf16.mxu0 %v4924
        %5024 = vmatpush1.bf16.msra.mxu0 %v4923
        %5025 = vmatprep.subr.bf16.mxu0 %v4928
        %5026 = vmatpush1.bf16.msra.mxu0 %v4927
        %5027 = vmatprep.mubr.bf16.mxu0 %v4667
        %5028 = vmatmul.mubr.bf16.gmra.mrb[0].mxu0 %v4209
        %v5029 = vpop.f32.mrb[0].mxu0
        %v5030 = vadd.f32 0.0, %v5029
        %v5031 = vpop.f32.mrb[0].mxu0
        %v5032 = vadd.f32 0.0, %v5031
        %v5033 = vpop.f32.mrb[0].mxu0
        %v5034 = vadd.f32 0.0, %v5033
        %v5035 = vpop.f32.mrb[0].mxu0
        %v5036 = vadd.f32 0.0, %v5035
        %5037 = vmatprep.mubr.bf16.mxu0 %v4668
        %5038 = vmatmul.mubr.bf16.gmra.mrb[0].mxu0 %v4210
        %v5039 = vpop.f32.mrb[0].mxu0
        %v5040 = vadd.f32 0.0, %v5039
        %v5041 = vpop.f32.mrb[0].mxu0
        %v5042 = vadd.f32 0.0, %v5041
        %v5043 = vpop.f32.mrb[0].mxu0
        %v5044 = vadd.f32 0.0, %v5043
        %v5045 = vpop.f32.mrb[0].mxu0
        %v5046 = vadd.f32 0.0, %v5045
        %5047 = vmatprep.mubr.bf16.mxu0 %v4669
        %5048 = vmatmul.mubr.bf16.gmra.mrb[0].mxu0 %v4211
        %v5049 = vpop.f32.mrb[0].mxu0
        %v5050 = vadd.f32 0.0, %v5049
        %v5051 = vpop.f32.mrb[0].mxu0
        %v5052 = vadd.f32 0.0, %v5051
        %v5053 = vpop.f32.mrb[0].mxu0
        %v5054 = vadd.f32 0.0, %v5053
        %v5055 = vpop.f32.mrb[0].mxu0
        %v5056 = vadd.f32 0.0, %v5055
        %5057 = vmatprep.mubr.bf16.mxu0 %v4670
        %5058 = vmatmul.mubr.bf16.gmra.mrb[0].mxu0 %v4212
        %v5059 = vpop.f32.mrb[0].mxu0
        %v5060 = vadd.f32 0.0, %v5059
        %v5061 = vpop.f32.mrb[0].mxu0
        %v5062 = vadd.f32 0.0, %v5061
        %v5063 = vpop.f32.mrb[0].mxu0
        %v5064 = vadd.f32 0.0, %v5063
        %v5065 = vpop.f32.mrb[0].mxu0
        %v5066 = vadd.f32 0.0, %v5065
        %5067 = vmatprep.mubr.bf16.mxu0 %v4671
        %5068 = vmatmul.mubr.bf16.gmra.mrb[0].mxu0 %v4213
        %v5069 = vpop.f32.mrb[0].mxu0
        %v5070 = vadd.f32 0.0, %v5069
        %v5071 = vpop.f32.mrb[0].mxu0
        %v5072 = vadd.f32 0.0, %v5071
        %v5073 = vpop.f32.mrb[0].mxu0
        %v5074 = vadd.f32 0.0, %v5073
        %v5075 = vpop.f32.mrb[0].mxu0
        %v5076 = vadd.f32 0.0, %v5075
        %5077 = vmatprep.mubr.bf16.mxu0 %v4672
        %5078 = vmatmul.mubr.bf16.gmra.mrb[0].mxu0 %v4214
        %v5079 = vpop.f32.mrb[0].mxu0
        %v5080 = vadd.f32 0.0, %v5079
        %v5081 = vpop.f32.mrb[0].mxu0
        %v5082 = vadd.f32 0.0, %v5081
        %v5083 = vpop.f32.mrb[0].mxu0
        %v5084 = vadd.f32 0.0, %v5083
        %v5085 = vpop.f32.mrb[0].mxu0
        %v5086 = vadd.f32 0.0, %v5085
        %5087 = vmatprep.mubr.bf16.mxu0 %v4673
        %5088 = vmatmul.mubr.bf16.gmra.mrb[0].mxu0 %v4215
        %v5089 = vpop.f32.mrb[0].mxu0
        %v5090 = vadd.f32 0.0, %v5089
        %v5091 = vpop.f32.mrb[0].mxu0
        %v5092 = vadd.f32 0.0, %v5091
        %v5093 = vpop.f32.mrb[0].mxu0
        %v5094 = vadd.f32 0.0, %v5093
        %v5095 = vpop.f32.mrb[0].mxu0
        %v5096 = vadd.f32 0.0, %v5095
        %5097 = vmatprep.mubr.bf16.mxu0 %v4674
        %5098 = vmatmul.mubr.bf16.gmra.mrb[0].mxu0 %v4216
        %v5099 = vpop.f32.mrb[0].mxu0
        %v5100 = vadd.f32 0.0, %v5099
        %v5101 = vpop.f32.mrb[0].mxu0
        %v5102 = vadd.f32 0.0, %v5101
        %v5103 = vpop.f32.mrb[0].mxu0
        %v5104 = vadd.f32 0.0, %v5103
        %v5105 = vpop.f32.mrb[0].mxu0
        %v5106 = vadd.f32 0.0, %v5105
        %5107 = vdwg.mxu0
        %5108 = vmatprep.subr.bf16.mxu0 %v4870
        %5109 = vmatpush1.bf16.msra.mxu0 %v4869
        %5110 = vmatprep.subr.bf16.mxu0 %v4874
        %5111 = vmatpush1.bf16.msra.mxu0 %v4873
        %5112 = vmatprep.subr.bf16.mxu0 %v4878
        %5113 = vmatpush1.bf16.msra.mxu0 %v4877
        %5114 = vmatprep.subr.bf16.mxu0 %v4882
        %5115 = vmatpush1.bf16.msra.mxu0 %v4881
        %5116 = vmatprep.subr.bf16.mxu0 %v4886
        %5117 = vmatpush1.bf16.msra.mxu0 %v4885
        %5118 = vmatprep.subr.bf16.mxu0 %v4890
        %5119 = vmatpush1.bf16.msra.mxu0 %v4889
        %5120 = vmatprep.subr.bf16.mxu0 %v4894
        %5121 = vmatpush1.bf16.msra.mxu0 %v4893
        %5122 = vmatprep.subr.bf16.mxu0 %v4898
        %5123 = vmatpush1.bf16.msra.mxu0 %v4897
        %5124 = vmatprep.subr.bf16.mxu0 %v4902
        %5125 = vmatpush1.bf16.msra.mxu0 %v4901
        %5126 = vmatprep.subr.bf16.mxu0 %v4906
        %5127 = vmatpush1.bf16.msra.mxu0 %v4905
        %5128 = vmatprep.subr.bf16.mxu0 %v4910
        %5129 = vmatpush1.bf16.msra.mxu0 %v4909
        %5130 = vmatprep.subr.bf16.mxu0 %v4914
        %5131 = vmatpush1.bf16.msra.mxu0 %v4913
        %5132 = vmatprep.subr.bf16.mxu0 %v4918
        %5133 = vmatpush1.bf16.msra.mxu0 %v4917
        %5134 = vmatprep.subr.bf16.mxu0 %v4922
        %5135 = vmatpush1.bf16.msra.mxu0 %v4921
        %5136 = vmatprep.subr.bf16.mxu0 %v4926
        %5137 = vmatpush1.bf16.msra.mxu0 %v4925
        %5138 = vmatprep.subr.bf16.mxu0 %v4930
        %5139 = vmatpush1.bf16.msra.mxu0 %v4929
        %5140 = vmatprep.mubr.bf16.mxu0 %v4667
        %5141 = vmatmul.mubr.bf16.gmra.mrb[0].mxu0 %v4209
        %v5142 = vpop.f32.mrb[0].mxu0
        %v5143 = vadd.f32 0.0, %v5142
        %v5144 = vpop.f32.mrb[0].mxu0
        %v5145 = vadd.f32 0.0, %v5144
        %v5146 = vpop.f32.mrb[0].mxu0
        %v5147 = vadd.f32 0.0, %v5146
        %v5148 = vpop.f32.mrb[0].mxu0
        %v5149 = vadd.f32 0.0, %v5148
        %5150 = vmatprep.mubr.bf16.mxu0 %v4668
        %5151 = vmatmul.mubr.bf16.gmra.mrb[0].mxu0 %v4210
        %v5152 = vpop.f32.mrb[0].mxu0
        %v5153 = vadd.f32 0.0, %v5152
        %v5154 = vpop.f32.mrb[0].mxu0
        %v5155 = vadd.f32 0.0, %v5154
        %v5156 = vpop.f32.mrb[0].mxu0
        %v5157 = vadd.f32 0.0, %v5156
        %v5158 = vpop.f32.mrb[0].mxu0
        %v5159 = vadd.f32 0.0, %v5158
        %5160 = vmatprep.mubr.bf16.mxu0 %v4669
        %5161 = vmatmul.mubr.bf16.gmra.mrb[0].mxu0 %v4211
        %v5162 = vpop.f32.mrb[0].mxu0
        %v5163 = vadd.f32 0.0, %v5162
        %v5164 = vpop.f32.mrb[0].mxu0
        %v5165 = vadd.f32 0.0, %v5164
        %v5166 = vpop.f32.mrb[0].mxu0
        %v5167 = vadd.f32 0.0, %v5166
        %v5168 = vpop.f32.mrb[0].mxu0
        %v5169 = vadd.f32 0.0, %v5168
        %5170 = vmatprep.mubr.bf16.mxu0 %v4670
        %5171 = vmatmul.mubr.bf16.gmra.mrb[0].mxu0 %v4212
        %v5172 = vpop.f32.mrb[0].mxu0
        %v5173 = vadd.f32 0.0, %v5172
        %v5174 = vpop.f32.mrb[0].mxu0
        %v5175 = vadd.f32 0.0, %v5174
        %v5176 = vpop.f32.mrb[0].mxu0
        %v5177 = vadd.f32 0.0, %v5176
        %v5178 = vpop.f32.mrb[0].mxu0
        %v5179 = vadd.f32 0.0, %v5178
        %5180 = vmatprep.mubr.bf16.mxu0 %v4671
        %5181 = vmatmul.mubr.bf16.gmra.mrb[0].mxu0 %v4213
        %v5182 = vpop.f32.mrb[0].mxu0
        %v5183 = vadd.f32 0.0, %v5182
        %v5184 = vpop.f32.mrb[0].mxu0
        %v5185 = vadd.f32 0.0, %v5184
        %v5186 = vpop.f32.mrb[0].mxu0
        %v5187 = vadd.f32 0.0, %v5186
        %v5188 = vpop.f32.mrb[0].mxu0
        %v5189 = vadd.f32 0.0, %v5188
        %5190 = vmatprep.mubr.bf16.mxu0 %v4672
        %5191 = vmatmul.mubr.bf16.gmra.mrb[0].mxu0 %v4214
        %v5192 = vpop.f32.mrb[0].mxu0
        %v5193 = vadd.f32 0.0, %v5192
        %v5194 = vpop.f32.mrb[0].mxu0
        %v5195 = vadd.f32 0.0, %v5194
        %v5196 = vpop.f32.mrb[0].mxu0
        %v5197 = vadd.f32 0.0, %v5196
        %v5198 = vpop.f32.mrb[0].mxu0
        %v5199 = vadd.f32 0.0, %v5198
        %5200 = vmatprep.mubr.bf16.mxu0 %v4673
        %5201 = vmatmul.mubr.bf16.gmra.mrb[0].mxu0 %v4215
        %v5202 = vpop.f32.mrb[0].mxu0
        %v5203 = vadd.f32 0.0, %v5202
        %v5204 = vpop.f32.mrb[0].mxu0
        %v5205 = vadd.f32 0.0, %v5204
        %v5206 = vpop.f32.mrb[0].mxu0
        %v5207 = vadd.f32 0.0, %v5206
        %v5208 = vpop.f32.mrb[0].mxu0
        %v5209 = vadd.f32 0.0, %v5208
        %5210 = vmatprep.mubr.bf16.mxu0 %v4674
        %5211 = vmatmul.mubr.bf16.gmra.mrb[0].mxu0 %v4216
        %v5212 = vpop.f32.mrb[0].mxu0
        %v5213 = vadd.f32 0.0, %v5212
        %v5214 = vpop.f32.mrb[0].mxu0
        %v5215 = vadd.f32 0.0, %v5214
        %v5216 = vpop.f32.mrb[0].mxu0
        %v5217 = vadd.f32 0.0, %v5216
        %v5218 = vpop.f32.mrb[0].mxu0
        %v5219 = vadd.f32 0.0, %v5218
        %5220 = vdwg.mxu0
        %p5221 = scmp.eq.s32.totalorder %s36, 0
        // Predicated region
        $region77: #{tpu_custom_call.1} parent=47 // pred_check
          %p5222 = pneg %p5221
        $region78: #{tpu_custom_call.1} parent=47 // pred_check_branch
          %5224 = sbr.rel (%p5222) target = $region80
        $region79: #{tpu_custom_call.1} parent=47 // pred_region
          %5225 = vst [vmem:[%s457] sm:$0xff] %v5030
          %5226 = vst [vmem:[%s457 + $0x8] sm:$0xff] %v5032
          %5227 = vst [vmem:[%s457 + $0x10] sm:$0xff] %v5143
          %5228 = vst [vmem:[%s457 + $0x18] sm:$0xff] %v5145
          %5229 = vst [vmem:[%s457 + $0x20] sm:$0xff] %v5034
          %5230 = vst [vmem:[%s457 + $0x28] sm:$0xff] %v5036
          %5231 = vst [vmem:[%s457 + $0x30] sm:$0xff] %v5147
          %5232 = vst [vmem:[%s457 + $0x38] sm:$0xff] %v5149
          %5233 = vst [vmem:[%s457 + $0x40] sm:$0xff] %v5040
          %5234 = vst [vmem:[%s457 + $0x48] sm:$0xff] %v5042
          %5235 = vst [vmem:[%s457 + $0x50] sm:$0xff] %v5153
          %5236 = vst [vmem:[%s457 + $0x58] sm:$0xff] %v5155
          %5237 = vst [vmem:[%s457 + $0x60] sm:$0xff] %v5044
          %5238 = vst [vmem:[%s457 + $0x68] sm:$0xff] %v5046
          %5239 = vst [vmem:[%s457 + $0x70] sm:$0xff] %v5157
          %5240 = vst [vmem:[%s457 + $0x78] sm:$0xff] %v5159
          %5241 = vst [vmem:[%s457 + $0x80] sm:$0xff] %v5050
          %5242 = vst [vmem:[%s457 + $0x88] sm:$0xff] %v5052
          %5243 = vst [vmem:[%s457 + $0x90] sm:$0xff] %v5163
          %5244 = vst [vmem:[%s457 + $0x98] sm:$0xff] %v5165
          %5245 = vst [vmem:[%s457 + $0xa0] sm:$0xff] %v5054
          %5246 = vst [vmem:[%s457 + $0xa8] sm:$0xff] %v5056
          %5247 = vst [vmem:[%s457 + $0xb0] sm:$0xff] %v5167
          %5248 = vst [vmem:[%s457 + $0xb8] sm:$0xff] %v5169
          %5249 = vst [vmem:[%s457 + $0xc0] sm:$0xff] %v5060
          %5250 = vst [vmem:[%s457 + $0xc8] sm:$0xff] %v5062
          %5251 = vst [vmem:[%s457 + $0xd0] sm:$0xff] %v5173
          %5252 = vst [vmem:[%s457 + $0xd8] sm:$0xff] %v5175
          %5253 = vst [vmem:[%s457 + $0xe0] sm:$0xff] %v5064
          %5254 = vst [vmem:[%s457 + $0xe8] sm:$0xff] %v5066
          %5255 = vst [vmem:[%s457 + $0xf0] sm:$0xff] %v5177
          %5256 = vst [vmem:[%s457 + $0xf8] sm:$0xff] %v5179
          %5257 = vst [vmem:[%s457 + $0x100] sm:$0xff] %v5070
          %5258 = vst [vmem:[%s457 + $0x108] sm:$0xff] %v5072
          %5259 = vst [vmem:[%s457 + $0x110] sm:$0xff] %v5183
          %5260 = vst [vmem:[%s457 + $0x118] sm:$0xff] %v5185
          %5261 = vst [vmem:[%s457 + $0x120] sm:$0xff] %v5074
          %5262 = vst [vmem:[%s457 + $0x128] sm:$0xff] %v5076
          %5263 = vst [vmem:[%s457 + $0x130] sm:$0xff] %v5187
          %5264 = vst [vmem:[%s457 + $0x138] sm:$0xff] %v5189
          %5265 = vst [vmem:[%s457 + $0x140] sm:$0xff] %v5080
          %5266 = vst [vmem:[%s457 + $0x148] sm:$0xff] %v5082
          %5267 = vst [vmem:[%s457 + $0x150] sm:$0xff] %v5193
          %5268 = vst [vmem:[%s457 + $0x158] sm:$0xff] %v5195
          %5269 = vst [vmem:[%s457 + $0x160] sm:$0xff] %v5084
          %5270 = vst [vmem:[%s457 + $0x168] sm:$0xff] %v5086
          %5271 = vst [vmem:[%s457 + $0x170] sm:$0xff] %v5197
          %5272 = vst [vmem:[%s457 + $0x178] sm:$0xff] %v5199
          %5273 = vst [vmem:[%s457 + $0x180] sm:$0xff] %v5090
          %5274 = vst [vmem:[%s457 + $0x188] sm:$0xff] %v5092
          %5275 = vst [vmem:[%s457 + $0x190] sm:$0xff] %v5203
          %5276 = vst [vmem:[%s457 + $0x198] sm:$0xff] %v5205
          %5277 = vst [vmem:[%s457 + $0x1a0] sm:$0xff] %v5094
          %5278 = vst [vmem:[%s457 + $0x1a8] sm:$0xff] %v5096
          %5279 = vst [vmem:[%s457 + $0x1b0] sm:$0xff] %v5207
          %5280 = vst [vmem:[%s457 + $0x1b8] sm:$0xff] %v5209
          %5281 = vst [vmem:[%s457 + $0x1c0] sm:$0xff] %v5100
          %5282 = vst [vmem:[%s457 + $0x1c8] sm:$0xff] %v5102
          %5283 = vst [vmem:[%s457 + $0x1d0] sm:$0xff] %v5213
          %5284 = vst [vmem:[%s457 + $0x1d8] sm:$0xff] %v5215
          %5285 = vst [vmem:[%s457 + $0x1e0] sm:$0xff] %v5104
          %5286 = vst [vmem:[%s457 + $0x1e8] sm:$0xff] %v5106
          %5287 = vst [vmem:[%s457 + $0x1f0] sm:$0xff] %v5217
          %5288 = vst [vmem:[%s457 + $0x1f8] sm:$0xff] %v5219
        $region80: #{tpu_custom_call.1} parent=47 // pred_fallthru
          _
        %p5289 = scmp.gt.s32.totalorder %s36, 0
        // Predicated region
        $region81: #{tpu_custom_call.1} parent=47 // pred_check
          %p5290 = pneg %p5289
        $region82: #{tpu_custom_call.1} parent=47 // pred_check_branch
          %5292 = sbr.rel (%p5290) target = $region84
        $region83: #{tpu_custom_call.1} parent=47 // pred_region
          %v5293 = vld [vmem:[%s457] sm:$0xff]
          %v5294 = vld [vmem:[%s457 + $0x8] sm:$0xff]
          %v5295 = vld [vmem:[%s457 + $0x10] sm:$0xff]
          %v5296 = vld [vmem:[%s457 + $0x18] sm:$0xff]
          %v5297 = vld [vmem:[%s457 + $0x20] sm:$0xff]
          %v5298 = vld [vmem:[%s457 + $0x28] sm:$0xff]
          %v5299 = vld [vmem:[%s457 + $0x30] sm:$0xff]
          %v5300 = vld [vmem:[%s457 + $0x38] sm:$0xff]
          %v5301 = vld [vmem:[%s457 + $0x40] sm:$0xff]
          %v5302 = vld [vmem:[%s457 + $0x48] sm:$0xff]
          %v5303 = vld [vmem:[%s457 + $0x50] sm:$0xff]
          %v5304 = vld [vmem:[%s457 + $0x58] sm:$0xff]
          %v5305 = vld [vmem:[%s457 + $0x60] sm:$0xff]
          %v5306 = vld [vmem:[%s457 + $0x68] sm:$0xff]
          %v5307 = vld [vmem:[%s457 + $0x70] sm:$0xff]
          %v5308 = vld [vmem:[%s457 + $0x78] sm:$0xff]
          %v5309 = vld [vmem:[%s457 + $0x80] sm:$0xff]
          %v5310 = vld [vmem:[%s457 + $0x88] sm:$0xff]
          %v5311 = vld [vmem:[%s457 + $0x90] sm:$0xff]
          %v5312 = vld [vmem:[%s457 + $0x98] sm:$0xff]
          %v5313 = vld [vmem:[%s457 + $0xa0] sm:$0xff]
          %v5314 = vld [vmem:[%s457 + $0xa8] sm:$0xff]
          %v5315 = vld [vmem:[%s457 + $0xb0] sm:$0xff]
          %v5316 = vld [vmem:[%s457 + $0xb8] sm:$0xff]
          %v5317 = vld [vmem:[%s457 + $0xc0] sm:$0xff]
          %v5318 = vld [vmem:[%s457 + $0xc8] sm:$0xff]
          %v5319 = vld [vmem:[%s457 + $0xd0] sm:$0xff]
          %v5320 = vld [vmem:[%s457 + $0xd8] sm:$0xff]
          %v5321 = vld [vmem:[%s457 + $0xe0] sm:$0xff]
          %v5322 = vld [vmem:[%s457 + $0xe8] sm:$0xff]
          %v5323 = vld [vmem:[%s457 + $0xf0] sm:$0xff]
          %v5324 = vld [vmem:[%s457 + $0xf8] sm:$0xff]
          %v5325 = vld [vmem:[%s457 + $0x100] sm:$0xff]
          %v5326 = vld [vmem:[%s457 + $0x108] sm:$0xff]
          %v5327 = vld [vmem:[%s457 + $0x110] sm:$0xff]
          %v5328 = vld [vmem:[%s457 + $0x118] sm:$0xff]
          %v5329 = vld [vmem:[%s457 + $0x120] sm:$0xff]
          %v5330 = vld [vmem:[%s457 + $0x128] sm:$0xff]
          %v5331 = vld [vmem:[%s457 + $0x130] sm:$0xff]
          %v5332 = vld [vmem:[%s457 + $0x138] sm:$0xff]
          %v5333 = vld [vmem:[%s457 + $0x140] sm:$0xff]
          %v5334 = vld [vmem:[%s457 + $0x148] sm:$0xff]
          %v5335 = vld [vmem:[%s457 + $0x150] sm:$0xff]
          %v5336 = vld [vmem:[%s457 + $0x158] sm:$0xff]
          %v5337 = vld [vmem:[%s457 + $0x160] sm:$0xff]
          %v5338 = vld [vmem:[%s457 + $0x168] sm:$0xff]
          %v5339 = vld [vmem:[%s457 + $0x170] sm:$0xff]
          %v5340 = vld [vmem:[%s457 + $0x178] sm:$0xff]
          %v5341 = vld [vmem:[%s457 + $0x180] sm:$0xff]
          %v5342 = vld [vmem:[%s457 + $0x188] sm:$0xff]
          %v5343 = vld [vmem:[%s457 + $0x190] sm:$0xff]
          %v5344 = vld [vmem:[%s457 + $0x198] sm:$0xff]
          %v5345 = vld [vmem:[%s457 + $0x1a0] sm:$0xff]
          %v5346 = vld [vmem:[%s457 + $0x1a8] sm:$0xff]
          %v5347 = vld [vmem:[%s457 + $0x1b0] sm:$0xff]
          %v5348 = vld [vmem:[%s457 + $0x1b8] sm:$0xff]
          %v5349 = vld [vmem:[%s457 + $0x1c0] sm:$0xff]
          %v5350 = vld [vmem:[%s457 + $0x1c8] sm:$0xff]
          %v5351 = vld [vmem:[%s457 + $0x1d0] sm:$0xff]
          %v5352 = vld [vmem:[%s457 + $0x1d8] sm:$0xff]
          %v5353 = vld [vmem:[%s457 + $0x1e0] sm:$0xff]
          %v5354 = vld [vmem:[%s457 + $0x1e8] sm:$0xff]
          %v5355 = vld [vmem:[%s457 + $0x1f0] sm:$0xff]
          %v5356 = vld [vmem:[%s457 + $0x1f8] sm:$0xff]
          %v5357 = vadd.f32 %v5293, %v5030
          %v5358 = vadd.f32 %v5294, %v5032
          %v5359 = vadd.f32 %v5295, %v5143
          %v5360 = vadd.f32 %v5296, %v5145
          %v5361 = vadd.f32 %v5297, %v5034
          %v5362 = vadd.f32 %v5298, %v5036
          %v5363 = vadd.f32 %v5299, %v5147
          %v5364 = vadd.f32 %v5300, %v5149
          %v5365 = vadd.f32 %v5301, %v5040
          %v5366 = vadd.f32 %v5302, %v5042
          %v5367 = vadd.f32 %v5303, %v5153
          %v5368 = vadd.f32 %v5304, %v5155
          %v5369 = vadd.f32 %v5305, %v5044
          %v5370 = vadd.f32 %v5306, %v5046
          %v5371 = vadd.f32 %v5307, %v5157
          %v5372 = vadd.f32 %v5308, %v5159
          %v5373 = vadd.f32 %v5309, %v5050
          %v5374 = vadd.f32 %v5310, %v5052
          %v5375 = vadd.f32 %v5311, %v5163
          %v5376 = vadd.f32 %v5312, %v5165
          %v5377 = vadd.f32 %v5313, %v5054
          %v5378 = vadd.f32 %v5314, %v5056
          %v5379 = vadd.f32 %v5315, %v5167
          %v5380 = vadd.f32 %v5316, %v5169
          %v5381 = vadd.f32 %v5317, %v5060
          %v5382 = vadd.f32 %v5318, %v5062
          %v5383 = vadd.f32 %v5319, %v5173
          %v5384 = vadd.f32 %v5320, %v5175
          %v5385 = vadd.f32 %v5321, %v5064
          %v5386 = vadd.f32 %v5322, %v5066
          %v5387 = vadd.f32 %v5323, %v5177
          %v5388 = vadd.f32 %v5324, %v5179
          %v5389 = vadd.f32 %v5325, %v5070
          %v5390 = vadd.f32 %v5326, %v5072
          %v5391 = vadd.f32 %v5327, %v5183
          %v5392 = vadd.f32 %v5328, %v5185
          %v5393 = vadd.f32 %v5329, %v5074
          %v5394 = vadd.f32 %v5330, %v5076
          %v5395 = vadd.f32 %v5331, %v5187
          %v5396 = vadd.f32 %v5332, %v5189
          %v5397 = vadd.f32 %v5333, %v5080
          %v5398 = vadd.f32 %v5334, %v5082
          %v5399 = vadd.f32 %v5335, %v5193
          %v5400 = vadd.f32 %v5336, %v5195
          %v5401 = vadd.f32 %v5337, %v5084
          %v5402 = vadd.f32 %v5338, %v5086
          %v5403 = vadd.f32 %v5339, %v5197
          %v5404 = vadd.f32 %v5340, %v5199
          %v5405 = vadd.f32 %v5341, %v5090
          %v5406 = vadd.f32 %v5342, %v5092
          %v5407 = vadd.f32 %v5343, %v5203
          %v5408 = vadd.f32 %v5344, %v5205
          %v5409 = vadd.f32 %v5345, %v5094
          %v5410 = vadd.f32 %v5346, %v5096
          %v5411 = vadd.f32 %v5347, %v5207
          %v5412 = vadd.f32 %v5348, %v5209
          %v5413 = vadd.f32 %v5349, %v5100
          %v5414 = vadd.f32 %v5350, %v5102
          %v5415 = vadd.f32 %v5351, %v5213
          %v5416 = vadd.f32 %v5352, %v5215
          %v5417 = vadd.f32 %v5353, %v5104
          %v5418 = vadd.f32 %v5354, %v5106
          %v5419 = vadd.f32 %v5355, %v5217
          %v5420 = vadd.f32 %v5356, %v5219
          %5421 = vst [vmem:[%s457] sm:$0xff] %v5357
          %5422 = vst [vmem:[%s457 + $0x8] sm:$0xff] %v5358
          %5423 = vst [vmem:[%s457 + $0x10] sm:$0xff] %v5359
          %5424 = vst [vmem:[%s457 + $0x18] sm:$0xff] %v5360
          %5425 = vst [vmem:[%s457 + $0x20] sm:$0xff] %v5361
          %5426 = vst [vmem:[%s457 + $0x28] sm:$0xff] %v5362
          %5427 = vst [vmem:[%s457 + $0x30] sm:$0xff] %v5363
          %5428 = vst [vmem:[%s457 + $0x38] sm:$0xff] %v5364
          %5429 = vst [vmem:[%s457 + $0x40] sm:$0xff] %v5365
          %5430 = vst [vmem:[%s457 + $0x48] sm:$0xff] %v5366
          %5431 = vst [vmem:[%s457 + $0x50] sm:$0xff] %v5367
          %5432 = vst [vmem:[%s457 + $0x58] sm:$0xff] %v5368
          %5433 = vst [vmem:[%s457 + $0x60] sm:$0xff] %v5369
          %5434 = vst [vmem:[%s457 + $0x68] sm:$0xff] %v5370
          %5435 = vst [vmem:[%s457 + $0x70] sm:$0xff] %v5371
          %5436 = vst [vmem:[%s457 + $0x78] sm:$0xff] %v5372
          %5437 = vst [vmem:[%s457 + $0x80] sm:$0xff] %v5373
          %5438 = vst [vmem:[%s457 + $0x88] sm:$0xff] %v5374
          %5439 = vst [vmem:[%s457 + $0x90] sm:$0xff] %v5375
          %5440 = vst [vmem:[%s457 + $0x98] sm:$0xff] %v5376
          %5441 = vst [vmem:[%s457 + $0xa0] sm:$0xff] %v5377
          %5442 = vst [vmem:[%s457 + $0xa8] sm:$0xff] %v5378
          %5443 = vst [vmem:[%s457 + $0xb0] sm:$0xff] %v5379
          %5444 = vst [vmem:[%s457 + $0xb8] sm:$0xff] %v5380
          %5445 = vst [vmem:[%s457 + $0xc0] sm:$0xff] %v5381
          %5446 = vst [vmem:[%s457 + $0xc8] sm:$0xff] %v5382
          %5447 = vst [vmem:[%s457 + $0xd0] sm:$0xff] %v5383
          %5448 = vst [vmem:[%s457 + $0xd8] sm:$0xff] %v5384
          %5449 = vst [vmem:[%s457 + $0xe0] sm:$0xff] %v5385
          %5450 = vst [vmem:[%s457 + $0xe8] sm:$0xff] %v5386
          %5451 = vst [vmem:[%s457 + $0xf0] sm:$0xff] %v5387
          %5452 = vst [vmem:[%s457 + $0xf8] sm:$0xff] %v5388
          %5453 = vst [vmem:[%s457 + $0x100] sm:$0xff] %v5389
          %5454 = vst [vmem:[%s457 + $0x108] sm:$0xff] %v5390
          %5455 = vst [vmem:[%s457 + $0x110] sm:$0xff] %v5391
          %5456 = vst [vmem:[%s457 + $0x118] sm:$0xff] %v5392
          %5457 = vst [vmem:[%s457 + $0x120] sm:$0xff] %v5393
          %5458 = vst [vmem:[%s457 + $0x128] sm:$0xff] %v5394
          %5459 = vst [vmem:[%s457 + $0x130] sm:$0xff] %v5395
          %5460 = vst [vmem:[%s457 + $0x138] sm:$0xff] %v5396
          %5461 = vst [vmem:[%s457 + $0x140] sm:$0xff] %v5397
          %5462 = vst [vmem:[%s457 + $0x148] sm:$0xff] %v5398
          %5463 = vst [vmem:[%s457 + $0x150] sm:$0xff] %v5399
          %5464 = vst [vmem:[%s457 + $0x158] sm:$0xff] %v5400
          %5465 = vst [vmem:[%s457 + $0x160] sm:$0xff] %v5401
          %5466 = vst [vmem:[%s457 + $0x168] sm:$0xff] %v5402
          %5467 = vst [vmem:[%s457 + $0x170] sm:$0xff] %v5403
          %5468 = vst [vmem:[%s457 + $0x178] sm:$0xff] %v5404
          %5469 = vst [vmem:[%s457 + $0x180] sm:$0xff] %v5405
          %5470 = vst [vmem:[%s457 + $0x188] sm:$0xff] %v5406
          %5471 = vst [vmem:[%s457 + $0x190] sm:$0xff] %v5407
          %5472 = vst [vmem:[%s457 + $0x198] sm:$0xff] %v5408
          %5473 = vst [vmem:[%s457 + $0x1a0] sm:$0xff] %v5409
          %5474 = vst [vmem:[%s457 + $0x1a8] sm:$0xff] %v5410
          %5475 = vst [vmem:[%s457 + $0x1b0] sm:$0xff] %v5411
          %5476 = vst [vmem:[%s457 + $0x1b8] sm:$0xff] %v5412
          %5477 = vst [vmem:[%s457 + $0x1c0] sm:$0xff] %v5413
          %5478 = vst [vmem:[%s457 + $0x1c8] sm:$0xff] %v5414
          %5479 = vst [vmem:[%s457 + $0x1d0] sm:$0xff] %v5415
          %5480 = vst [vmem:[%s457 + $0x1d8] sm:$0xff] %v5416
          %5481 = vst [vmem:[%s457 + $0x1e0] sm:$0xff] %v5417
          %5482 = vst [vmem:[%s457 + $0x1e8] sm:$0xff] %v5418
          %5483 = vst [vmem:[%s457 + $0x1f0] sm:$0xff] %v5419
          %5484 = vst [vmem:[%s457 + $0x1f8] sm:$0xff] %v5420
        $region84: #{tpu_custom_call.1} parent=47 // pred_fallthru
          _
        %s5485 = sand.u32 %s222, 1
        %s5486 = scalar_lea.sflag [#allocation4], %s5485
        %s5487 = sand.u32 %s222, 1
        %s5488 = smul.addr %s5487, 512
        %s5489 = scalar_lea.vmem [#allocation14], %s5488
        // Predicated region
        $region85: #{tpu_custom_call.1} parent=47 // pred_check
          %p5490 = pneg %p232
        $region86: #{tpu_custom_call.1} parent=47 // pred_check_branch
          %5492 = sbr.rel (%p5490) target = $region88
        $region87: #{tpu_custom_call.1} parent=47 // pred_region
          %s5493 = smul.u32 16, %s35
          %s5495 = ssub.s32 8192, 8192
          %5496 = vsyncadd %s5486, %s5495
          %s5497 = smul.addr %s5493, 4
          %s5498 = smul.addr %s34, 64
          %s5499 = sadd.s32 %s5497, %s5498
          %s5500 = smul.addr %s5499, 128
          %s5501 = scalar_lea.hbm %s7, %s5500
          %s5502 = sshll.u32 %s5489, 4
          %s5503 = int_to_ptr.vmem [resolvable:$true] %s5502
          %5508 = dma.vmem_to_hbm [thread:$0]  %s5503, 8192, %s5501, %s5486, 512, 512, 32
        $region88: #{tpu_custom_call.1} parent=47 // pred_fallthru
          _
      $region48: #{tpu_custom_call.1} parent=5 // pred_fallthru
        _
      %p5509 = scmp.le.s32.totalorder 2, %s24
      // Predicated region
      $region89: #{tpu_custom_call.1} parent=5 // pred_check
        %p5510 = pneg %p5509
      $region90: #{tpu_custom_call.1} parent=5 // pred_check_branch
        %5512 = sbr.rel (%p5510) target = $region92
      $region91: #{tpu_custom_call.1} parent=5 // pred_region
        %s5513 = ssub.s32 %s24, 2
        // Predicated region
        $region93: #{tpu_custom_call.1} parent=91 // pred_check
          %p5514 = pneg %p238
        $region94: #{tpu_custom_call.1} parent=91 // pred_check_branch
          %5516 = sbr.rel (%p5514) target = $region96
        $region95: #{tpu_custom_call.1} parent=91 // pred_region
          %s5517 = sand.u32 %s223, 1
          %s5518 = scalar_lea.sflag [#allocation4], %s5517
          %s5519 = sand.u32 %s223, 1
          %s5520 = smul.addr %s5519, 512
          %s5521 = scalar_lea.vmem [#allocation14], %s5520
          %5522 = dma.done %s5518, 8192
        $region96: #{tpu_custom_call.1} parent=91 // pred_fallthru
          _
      $region92: #{tpu_custom_call.1} parent=5 // pred_fallthru
        _
    $region6: #{tpu_custom_call.1} parent=1 // loop_footer
      %s28 = sadd.s32 1, %s24
    $region7: #{tpu_custom_call.1} parent=1 // loop_footer_branch
      %23 = sbr.rel target = $region3
    $region8: #{tpu_custom_call.1} parent=1 // loop_exit
      _
    %5523 = vsyncpa [#allocation3], 1
    %s5524 = scalar_lea.sflag [#allocation3], 1
    %5525 = vsyncpa %s5524, 1
    %5526 = vsyncpa [#allocation6], 1
    %s5527 = scalar_lea.sflag [#allocation6], 1
    %5528 = vsyncpa %s5527, 1
    %5529 = vsyncpa [#allocation9], 1
    %5530 = vsyncpa [#allocation12], 1
    %5531 = vsyncpa [#allocation4], 1
    %s5532 = scalar_lea.sflag [#allocation4], 1
    %5533 = vsyncpa %s5532, 1

</llo_original>
